<compile_context>
chip_gen: v7x
topology: tpu7x:2x2x1
jax: 0.10.0
libtpu: 0.0.40
codegen_flags: <defaults>
</compile_context>

<pallas_src>
import functools

import numpy as np
import jax
import jax.numpy as jnp
from jax import lax
from jax.experimental import pallas as pl
from jax.experimental.pallas import tpu as pltpu


_LOG_HALF = float(np.log(0.5))


def _round_up(v, a):
    return (v + a - 1) // a * a


def _tpu_defaults():
    """Per-generation (TM, vmem_limit_bytes)."""
    try:
        kind = jax.devices()[0].device_kind.lower()
    except Exception:
        kind = ""
    if "v5" in kind or "v6" in kind:
        # 128 MiB physical VMEM: big m-tiles amortize per-grid-step overhead.
        return 512, 100 * 1024 * 1024
    # v7x (64 MiB VMEM) and unknown chips: conservative tile / limit.
    return 128, 52 * 1024 * 1024


# ----------------------------------------------------------------------------
# Pure-JAX helpers (reference path only)
# ----------------------------------------------------------------------------
def _expm1_neg(x):
    """Accurate exp(x) - 1 for x <= 0 (reference path)."""
    big = jnp.exp(x) - 1.0
    small = x * (1.0 + 0.5 * x * (1.0 + x * (1.0 / 3.0)))
    return jnp.where(x > -0.1, small, big)


def _log1mexp(x):
    """log(1 - exp(x)) for x <= 0 (forward value of the PyTorch log1mexp)."""
    # TODO(synk): torch adds a straight-through gradient guard (expm1_guard);
    # this is forward-only, matching the forward value.
    x = jnp.minimum(x, 0.0)
    return jnp.where(x < _LOG_HALF,
                     jnp.log(1.0 - jnp.exp(x)),
                     jnp.log(-_expm1_neg(x)))


def _log_softmax_lastdim(x):
    mx = jnp.max(x, axis=-1, keepdims=True)
    lse = jnp.log(jnp.sum(jnp.exp(x - mx), axis=-1, keepdims=True)) + mx
    return x - lse


# ----------------------------------------------------------------------------
# Pallas kernel: masked distances + NeuralNearestNeighbors + aggregation
# ----------------------------------------------------------------------------
def _n3_agg_kernel(lt_ref, t1_ref, t2_ref, rown_ref, coln_ref, xesq_ref,
                   x_ref, xe_ref, ye_ref, z_ref, *, k, window, f_pad):
    x_bf = x_ref[0]                    # (n_pad, f_pad) bf16, batch-resident
    xe_bf = xe_ref[0]                  # (n_pad, e)     bf16, batch-resident
    ye_bf = ye_ref[0]                  # (TM, e)        bf16, m-tiled
    t1 = t1_ref[...]                   # (TM, 1) int32  window row base per query
    t2 = t2_ref[...]                   # (TM, 1) int32  window col base per query
    rown = rown_ref[...]               # (1, n_pad) int32 (sentinel n1 on padding)
    coln = coln_ref[...]               # (1, n_pad) int32 (sentinel n2 on padding)
    xe_sq = xesq_ref[0]                # (1, n_pad) f32  |xe_j|^2 (from bf16 values)

    # ---- pairwise sq-distances (bf16 MXU, f32 accumulate) -> scaled logits -----
    g = lax.dot_general(ye_bf, xe_bf, (((1,), (1,)), ((), ())),
                        preferred_element_type=jnp.float32)        # (TM, n_pad)
    ye32 = ye_bf.astype(jnp.float32)
    ye_sq = jnp.sum(ye32 * ye32, axis=1, keepdims=True)            # (TM, 1)
    inv_temp = jnp.exp(-lt_ref[0, 0])
    logits = (2.0 * g - xe_sq - ye_sq) * inv_temp                  # -dist / temp

    # ---- window candidate mask: valid iff row/col fall inside the query window
    in_rows = (rown >= t1) & (rown < t1 + window)
    in_cols = (coln >= t2) & (coln < t2 + window)
    logits = jnp.where(in_rows & in_cols, logits, -jnp.inf)        # (TM, n_pad)

    # ---- k rounds of neural-nearest-neighbour relaxation + aggregation ---------
    # Per round: ONE (TM,n) exp, ONE (TM,n) log (skipped on the last round), plus
    # tiny (TM,1) log / approx reciprocal.  The softmax exponentials are reused
    # for the weights AND for log1mexp(log_w).
    for r in range(k):
        mx = jnp.max(logits, axis=-1, keepdims=True)               # (TM, 1)
        p = jnp.exp(logits - mx)                                   # (TM, n_pad)
        sum_p = jnp.sum(p, axis=-1, keepdims=True)                 # (TM, 1)
        w = p * pl.reciprocal(sum_p, approx=True)                  # softmax weights
        z_ref[0, :, r * f_pad:(r + 1) * f_pad] = jnp.dot(
            w.astype(jnp.bfloat16), x_bf,
            preferred_element_type=jnp.float32)                    # (TM, f_pad)
        if r + 1 < k:
            log_w = (logits - mx) - jnp.log(sum_p)                 # exact log-softmax
            # 1 - exp(log_w): Taylor in log_w when w -> 1, else directly 1 - w.
            taylor = -log_w * (1.0 + 0.5 * log_w * (1.0 + log_w * (1.0 / 3.0)))
            one_minus_w = jnp.where(log_w > -0.05, taylor, 1.0 - w)
            logits = logits + jnp.log(one_minus_w)                 # log1mexp(log_w)


def n3_aggregate_pallas(x_flat, xe_flat, ye_flat, t1, t2, n1, n2, window,
                        log_temp_total, k, tm=None, vmem_limit_bytes=None):
    b, n, f = x_flat.shape
    e = xe_flat.shape[2]
    m = ye_flat.shape[1]
    assert n == n1 * n2
    assert window <= min(n1, n2), "window must fit inside the db patch grid"

    d_tm, d_vmem = _tpu_defaults()
    tm = d_tm if tm is None else tm
    vmem_limit_bytes = d_vmem if vmem_limit_bytes is None else vmem_limit_bytes

    # --- lane padding: n (candidates) and f (features) -> multiples of 128 ------
    n_pad = _round_up(n, 128)
    f_pad = _round_up(f, 128)

    idx = jnp.arange(n, dtype=jnp.int32)
    # Sentinel row id n1 guarantees the window mask is False on padded columns
    # (t1 + window <= n1 always, since t1 <= n1 - window).
    rown = jnp.full((1, n_pad), n1, dtype=jnp.int32).at[0, :n].set(idx // n2)
    coln = jnp.full((1, n_pad), n2, dtype=jnp.int32).at[0, :n].set(idx % n2)

    x_bf = jnp.zeros((b, n_pad, f_pad), jnp.bfloat16)
    x_bf = x_bf.at[:, :n, :f].set(x_flat.astype(jnp.bfloat16))
    xe_bf = jnp.zeros((b, n_pad, e), jnp.bfloat16)
    xe_bf = xe_bf.at[:, :n, :].set(xe_flat.astype(jnp.bfloat16))
    # |xe|^2 from the bf16-rounded values -> the self-distance stays ~0.
    xe32 = xe_bf.astype(jnp.float32)
    xe_sq = jnp.sum(xe32 * xe32, axis=2)[:, None, :]               # (b, 1, n_pad)

    # --- m tiling (sublane-aligned for bf16 ye) ---------------------------------
    tm = max(16, min(tm, _round_up(m, 16)))
    m_pad = _round_up(m, tm)
    ye_bf = jnp.zeros((b, m_pad, e), jnp.bfloat16)
    ye_bf = ye_bf.at[:, :m, :].set(ye_flat.astype(jnp.bfloat16))
    t1p = jnp.zeros((m_pad, 1), jnp.int32).at[:m, 0].set(t1.astype(jnp.int32))
    t2p = jnp.zeros((m_pad, 1), jnp.int32).at[:m, 0].set(t2.astype(jnp.int32))
    num_mt = m_pad // tm
    kf = k * f_pad

    lt = jnp.full((1, 1), log_temp_total, dtype=jnp.float32)
    kernel = functools.partial(_n3_agg_kernel, k=k, window=window, f_pad=f_pad)

    cost = pl.CostEstimate(
        flops=2 * b * m_pad * n_pad * e + 2 * b * k * m_pad * n_pad * f_pad,
        transcendentals=(2 * k - 1) * b * m_pad * n_pad,
        bytes_accessed=(2 * (x_bf.size + xe_bf.size + ye_bf.size)
                        + 4 * (xe_sq.size + b * m_pad * kf)
                        + 4 * (2 * m_pad + 2 * n_pad)))

    z = pl.pallas_call(
        kernel,
        out_shape=jax.ShapeDtypeStruct((b, m_pad, kf), jnp.float32),
        grid=(b, num_mt),
        in_specs=[
            pl.BlockSpec(memory_space=pltpu.MemorySpace.SMEM),          # log_temp
            pl.BlockSpec((tm, 1), lambda bi, mi: (mi, 0)),              # t1 bases
            pl.BlockSpec((tm, 1), lambda bi, mi: (mi, 0)),              # t2 bases
            pl.BlockSpec((1, n_pad), lambda bi, mi: (0, 0)),            # db rows
            pl.BlockSpec((1, n_pad), lambda bi, mi: (0, 0)),            # db cols
            pl.BlockSpec((1, 1, n_pad), lambda bi, mi: (bi, 0, 0)),     # |xe|^2
            pl.BlockSpec((1, n_pad, f_pad), lambda bi, mi: (bi, 0, 0)), # x (resident)
            pl.BlockSpec((1, n_pad, e), lambda bi, mi: (bi, 0, 0)),     # xe (resident)
            pl.BlockSpec((1, tm, e), lambda bi, mi: (bi, mi, 0)),       # ye (m-tiled)
        ],
        out_specs=pl.BlockSpec((1, tm, kf), lambda bi, mi: (bi, mi, 0)),
        compiler_params=pltpu.CompilerParams(
            dimension_semantics=("parallel", "parallel"),
            vmem_limit_bytes=vmem_limit_bytes),
        cost_estimate=cost,
    )(lt, t1p, t2p, rown, coln, xe_sq, x_bf, xe_bf, ye_bf)

    return z[:, :m, :].reshape(b, m, k, f_pad)[..., :f]


# ----------------------------------------------------------------------------
# Pure-JAX reference for the same aggregation (for correctness check)
# ----------------------------------------------------------------------------
def n3_aggregate_ref(x_flat, xe_flat, ye_flat, I, log_temp_total, k):
    hp = jax.lax.Precision.HIGHEST
    d_full = (jnp.sum(ye_flat ** 2, axis=2)[:, :, None]
              + jnp.sum(xe_flat ** 2, axis=2)[:, None, :]
              - 2.0 * jnp.einsum('bme,bne->bmn', ye_flat, xe_flat, precision=hp))
    d = -jnp.take_along_axis(d_full, I, axis=2)                      # (b, m, o)
    logits = d * jnp.exp(jnp.float32(-log_temp_total))
    ws = []
    for _ in range(k):
        log_w = _log_softmax_lastdim(logits)
        ws.append(jnp.exp(log_w))
        logits = logits + _log1mexp(log_w)
    W = jnp.stack(ws, axis=3)                                        # (b, m, o, k)
    xg = jax.vmap(lambda xb, ib: xb[ib])(x_flat, I)                  # (b, m, o, f)
    return jnp.einsum('bmok,bmof->bmkf', W, xg, precision=hp)        # (b, m, k, f)


# ----------------------------------------------------------------------------
# Glue: im2patch / patch2im / neighbour indexing (plain JAX)
# ----------------------------------------------------------------------------
def im2patch(x, patchsize, stride, padding=None):
    b, c, H, W = x.shape
    if padding is None:
        padvert = (-(H - patchsize)) % stride
        padhorz = (-(W - patchsize)) % stride
        padtop = int(np.floor(padvert / 2.0)); padbottom = int(np.ceil(padvert / 2.0))
        padleft = int(np.floor(padhorz / 2.0)); padright = int(np.ceil(padhorz / 2.0))
    else:
        padtop, padbottom, padleft, padright = padding
    xp = jnp.pad(x, ((0, 0), (0, 0), (padtop, padbottom), (padleft, padright)))
    Hp, Wp = xp.shape[2], xp.shape[3]
    n1 = (Hp - patchsize) // stride + 1
    n2 = (Wp - patchsize) // stride + 1
    rows = []
    for i in range(patchsize):
        cols = []
        for j in range(patchsize):
            v = xp[:, :, i:i + (n1 - 1) * stride + 1:stride,
                         j:j + (n2 - 1) * stride + 1:stride]         # (b, c, n1, n2)
            cols.append(v)
        rows.append(jnp.stack(cols, axis=2))                         # (b, c, p2, n1, n2)
    patches = jnp.stack(rows, axis=2)                                # (b, c, p1, p2, n1, n2)
    return patches, (padtop, padbottom, padleft, padright)


def patch2im(x_patch, patchsize, stride, padding):
    b, C, p1, p2, n1, n2 = x_patch.shape
    Hp = (n1 - 1) * stride + patchsize
    Wp = (n2 - 1) * stride + patchsize
    out = jnp.zeros((b, C, Hp, Wp), x_patch.dtype)
    for i in range(p1):
        for j in range(p2):
            out = out.at[:, :, i:i + (n1 - 1) * stride + 1:stride,
                               j:j + (n2 - 1) * stride + 1:stride].add(x_patch[:, :, i, j])
    pt, pb, plft, prgt = padding
    return out[:, :, pt:Hp - pb, plft:Wp - prgt]


def window_bases(m1, m2, n1, n2, window):
    """Per-query window bases (t1, t2): candidate set for query (i1, i2) is the
    window x window block of db-patch indices rooted at (t1, t2) (border-clamped)."""
    s = window
    i1 = jnp.arange(m1, dtype=jnp.int32)[:, None]
    i2 = jnp.arange(m2, dtype=jnp.int32)[None, :]
    t1 = jnp.clip(i1 - s // 2, 0, n1 - s)
    t2 = jnp.clip(i2 - s // 2, 0, n2 - s)
    t1 = jnp.broadcast_to(t1, (m1, m2)).reshape(m1 * m2)
    t2 = jnp.broadcast_to(t2, (m1, m2)).reshape(m1 * m2)
    return t1, t2


def index_neighbours(m1, m2, n1, n2, window):
    """Explicit (m, o) int32 neighbour indices (reference path only)."""
    s = window
    t1, t2 = window_bases(m1, m2, n1, n2, window)
    r = t1[:, None, None] + jnp.arange(s, dtype=jnp.int32)[None, :, None]
    c = t2[:, None, None] + jnp.arange(s, dtype=jnp.int32)[None, None, :]
    return (r * n2 + c).reshape(m1 * m2, s * s).astype(jnp.int32)


# ----------------------------------------------------------------------------
# Full N3Aggregation2D forward (training mode, y=None so y := x, ye := xe)
# ----------------------------------------------------------------------------
def n3_aggregation_2d(x, xe, *, patchsize, stride, k, window,
                      log_temp=0.0, temp_bias=1.0, use_pallas=True, tm=None):
    # TODO(synk): only the training forward path (y=None, internal scalar
    # temperature, no distance-BN / per-pixel external log_temp) is implemented.
    x_patch, padding = im2patch(x, patchsize, stride, None)
    xe_patch, _ = im2patch(xe, patchsize, stride, None)
    ye_patch = xe_patch
    y = x

    b, c, p1, p2, n1, n2 = x_patch.shape
    _, ce, e1, e2, m1, m2 = ye_patch.shape
    H, W = y.shape[2], y.shape[3]
    n, m = n1 * n2, m1 * m2
    f, e = c * p1 * p2, ce * e1 * e2

    x_flat = x_patch.transpose(0, 4, 5, 1, 2, 3).reshape(b, n, f)
    xe_flat = xe_patch.transpose(0, 4, 5, 1, 2, 3).reshape(b, n, e)
    ye_flat = ye_patch.transpose(0, 4, 5, 1, 2, 3).reshape(b, m, e)

    # NeuralNearestNeighbors params (deterministic init): log_temp = 0, bias = log(1)
    log_temp_total = float(log_temp) + float(np.log(temp_bias))

    if use_pallas:
        t1, t2 = window_bases(m1, m2, n1, n2, window)
        z = n3_aggregate_pallas(x_flat, xe_flat, ye_flat, t1, t2,
                                n1, n2, window, log_temp_total, k, tm=tm)
    else:
        I1 = index_neighbours(m1, m2, n1, n2, window)                # (m, o)
        I = jnp.broadcast_to(I1[None], (b, m, I1.shape[1]))
        z = n3_aggregate_ref(x_flat, xe_flat, ye_flat, I, log_temp_total, k)

    # z: (b, m, k, f)  ==  torch's (b, m, k, f) right before the view
    z_patch = z.reshape(b, m1, m2, k * c, p1, p2).transpose(0, 3, 4, 5, 1, 2)
    z = patch2im(z_patch, patchsize, stride, padding)                # (b, k*c, H, W)
    z = z.reshape(b, k, c, H, W) - y.reshape(b, 1, c, H, W)
    z = z.reshape(b, k * c, H, W)
    return jnp.concatenate([y, z], axis=1)                           # (b, (k+1)*c, H, W)


if __name__ == "__main__":
    key = jax.random.PRNGKey(0)
    kx, ke = jax.random.split(key)

    b, c, H, W = 2, 4, 16, 16          # image:     (2, 4, 16, 16)
    ce = 8                              # embedding: (2, 8, 16, 16)
    patchsize, stride, k, window = 4, 2, 4, 3

    x = jax.random.normal(kx, (b, c, H, W), dtype=jnp.float32)
    xe = 0.3 * jax.random.normal(ke, (b, ce, H, W), dtype=jnp.float32)

    fwd_pallas = jax.jit(functools.partial(
        n3_aggregation_2d, patchsize=patchsize, stride=stride, k=k,
        window=window, use_pallas=True))
    fwd_ref = jax.jit(functools.partial(
        n3_aggregation_2d, patchsize=patchsize, stride=stride, k=k,
        window=window, use_pallas=False))

    out = jax.block_until_ready(fwd_pallas(x, xe))
    ref = jax.block_until_ready(fwd_ref(x, xe))

    assert out.shape == (b, (k + 1) * c, H, W), out.shape
    # bf16 MXU operands in BOTH matmuls are an intentional, documented precision
    # tradeoff (per the performance review); check a robust global relative error
    # against the f32 HIGHEST-precision reference.
    out_np = np.asarray(out, dtype=np.float64)
    ref_np = np.asarray(ref, dtype=np.float64)
    rel_err = np.linalg.norm(out_np - ref_np) / np.linalg.norm(ref_np)
    assert np.isfinite(rel_err) and rel_err < 4e-2, f"rel_err={rel_err}"
    print("KERNEL_OK")
</pallas_src>

<mosaic_0001>
module attributes {stable_mosaic.version = 11 : i64} {
  func.func @_n3_agg_kernel(%arg0: i32, %arg1: i32, %arg2: memref<1x1xf32, #tpu.memory_space<smem>>, %arg3: memref<64x1xi32, #tpu.memory_space<vmem>>, %arg4: memref<64x1xi32, #tpu.memory_space<vmem>>, %arg5: memref<1x128xi32, #tpu.memory_space<vmem>>, %arg6: memref<1x128xi32, #tpu.memory_space<vmem>>, %arg7: memref<1x1x128xf32, #tpu.memory_space<vmem>>, %arg8: memref<1x128x128xbf16, #tpu.memory_space<vmem>>, %arg9: memref<1x128x128xbf16, #tpu.memory_space<vmem>>, %arg10: memref<1x64x128xbf16, #tpu.memory_space<vmem>>, %arg11: memref<1x64x512xf32, #tpu.memory_space<vmem>>) attributes {dimension_semantics = [#tpu.dimension_semantics<parallel>, #tpu.dimension_semantics<parallel>], iteration_bounds = array<i64: 2, 1>, scalar_prefetch = 0 : i64, scratch_operands = 0 : i64, tpu.core_type = #tpu.core_type<tc>, window_params = [{transform_indices = @transform_0, window_bounds = array<i64: 1, 1>}, {transform_indices = @transform_1, window_bounds = array<i64: 64, 1>}, {transform_indices = @transform_2, window_bounds = array<i64: 64, 1>}, {pipeline_mode = #tpu.pipeline_mode<synchronous>, transform_indices = @transform_3, window_bounds = array<i64: 1, 128>}, {pipeline_mode = #tpu.pipeline_mode<synchronous>, transform_indices = @transform_4, window_bounds = array<i64: 1, 128>}, {transform_indices = @transform_5, window_bounds = array<i64: 1, 1, 128>}, {transform_indices = @transform_6, window_bounds = array<i64: 1, 128, 128>}, {transform_indices = @transform_7, window_bounds = array<i64: 1, 128, 128>}, {transform_indices = @transform_8, window_bounds = array<i64: 1, 64, 128>}, {transform_indices = @transform_9, window_bounds = array<i64: 1, 64, 512>}]} {
    %c0 = arith.constant 0 : index
    %c0_0 = arith.constant 0 : index
    %c0_1 = arith.constant 0 : index
    %0 = vector.load %arg8[%c0, %c0_0, %c0_1] : memref<1x128x128xbf16, #tpu.memory_space<vmem>>, vector<1x128x128xbf16>
    %1 = vector.shape_cast %0 : vector<1x128x128xbf16> to vector<128x128xbf16>
    %c0_2 = arith.constant 0 : index
    %c0_3 = arith.constant 0 : index
    %c0_4 = arith.constant 0 : index
    %2 = vector.load %arg9[%c0_2, %c0_3, %c0_4] : memref<1x128x128xbf16, #tpu.memory_space<vmem>>, vector<1x128x128xbf16>
    %3 = vector.shape_cast %2 : vector<1x128x128xbf16> to vector<128x128xbf16>
    %c0_5 = arith.constant 0 : index
    %c0_6 = arith.constant 0 : index
    %c0_7 = arith.constant 0 : index
    %4 = vector.load %arg10[%c0_5, %c0_6, %c0_7] : memref<1x64x128xbf16, #tpu.memory_space<vmem>>, vector<1x64x128xbf16>
    %5 = vector.shape_cast %4 : vector<1x64x128xbf16> to vector<64x128xbf16>
    %c0_8 = arith.constant 0 : index
    %c0_9 = arith.constant 0 : index
    %6 = vector.load %arg3[%c0_8, %c0_9] : memref<64x1xi32, #tpu.memory_space<vmem>>, vector<64x1xi32>
    %c0_10 = arith.constant 0 : index
    %c0_11 = arith.constant 0 : index
    %7 = vector.load %arg4[%c0_10, %c0_11] : memref<64x1xi32, #tpu.memory_space<vmem>>, vector<64x1xi32>
    %c0_12 = arith.constant 0 : index
    %c0_13 = arith.constant 0 : index
    %8 = vector.load %arg5[%c0_12, %c0_13] : memref<1x128xi32, #tpu.memory_space<vmem>>, vector<1x128xi32>
    %c0_14 = arith.constant 0 : index
    %c0_15 = arith.constant 0 : index
    %9 = vector.load %arg6[%c0_14, %c0_15] : memref<1x128xi32, #tpu.memory_space<vmem>>, vector<1x128xi32>
    %c0_16 = arith.constant 0 : index
    %c0_17 = arith.constant 0 : index
    %c0_18 = arith.constant 0 : index
    %10 = vector.load %arg7[%c0_16, %c0_17, %c0_18] : memref<1x1x128xf32, #tpu.memory_space<vmem>>, vector<1x1x128xf32>
    %11 = vector.shape_cast %10 : vector<1x1x128xf32> to vector<1x128xf32>
    %cst = arith.constant dense<0.000000e+00> : vector<64x128xf32>
    %12 = tpu.matmul %5, %3, %cst {dimension_numbers = #tpu.dot_dimension_numbers<[1], [1], [0], [0], [0, 0, 1, 0], [], []>} : vector<64x128xbf16>, vector<128x128xbf16>, vector<64x128xf32> -> vector<64x128xf32>
    %13 = arith.extf %5 : vector<64x128xbf16> to vector<64x128xf32>
    %14 = arith.mulf %13, %13 : vector<64x128xf32>
    %cst_19 = arith.constant dense<0.000000e+00> : vector<64xf32>
    %15 = vector.multi_reduction <add>, %14, %cst_19 [1] : vector<64x128xf32> to vector<64xf32>
    %16 = vector.shape_cast %15 : vector<64xf32> to vector<64x1xf32>
    %c0_20 = arith.constant 0 : index
    %c0_21 = arith.constant 0 : index
    %17 = memref.load %arg2[%c0_20, %c0_21] : memref<1x1xf32, #tpu.memory_space<smem>>
    %cst_22 = arith.constant 0.000000e+00 : f32
    %18 = arith.subf %cst_22, %17 : f32
    %19 = math.exp %18 : f32
    %cst_23 = arith.constant 2.000000e+00 : f32
    %20 = vector.broadcast %cst_23 : f32 to vector<64x128xf32>
    %21 = arith.mulf %20, %12 : vector<64x128xf32>
    %22 = vector.broadcast %11 : vector<1x128xf32> to vector<64x128xf32>
    %23 = arith.subf %21, %22 : vector<64x128xf32>
    %24 = vector.broadcast %16 : vector<64x1xf32> to vector<64x128xf32>
    %25 = arith.subf %23, %24 : vector<64x128xf32>
    %26 = vector.broadcast %19 : f32 to vector<64x128xf32>
    %27 = arith.mulf %25, %26 : vector<64x128xf32>
    %28 = vector.broadcast %8 : vector<1x128xi32> to vector<64x128xi32>
    %29 = vector.broadcast %6 : vector<64x1xi32> to vector<64x128xi32>
    %30 = arith.cmpi sge, %28, %29 : vector<64x128xi32>
    %c3_i32 = arith.constant 3 : i32
    %31 = vector.broadcast %c3_i32 : i32 to vector<64x1xi32>
    %32 = arith.addi %6, %31 : vector<64x1xi32>
    %33 = vector.broadcast %8 : vector<1x128xi32> to vector<64x128xi32>
    %34 = vector.broadcast %32 : vector<64x1xi32> to vector<64x128xi32>
    %35 = arith.cmpi slt, %33, %34 : vector<64x128xi32>
    %36 = arith.andi %30, %35 : vector<64x128xi1>
    %37 = vector.broadcast %9 : vector<1x128xi32> to vector<64x128xi32>
    %38 = vector.broadcast %7 : vector<64x1xi32> to vector<64x128xi32>
    %39 = arith.cmpi sge, %37, %38 : vector<64x128xi32>
    %c3_i32_24 = arith.constant 3 : i32
    %40 = vector.broadcast %c3_i32_24 : i32 to vector<64x1xi32>
    %41 = arith.addi %7, %40 : vector<64x1xi32>
    %42 = vector.broadcast %9 : vector<1x128xi32> to vector<64x128xi32>
    %43 = vector.broadcast %41 : vector<64x1xi32> to vector<64x128xi32>
    %44 = arith.cmpi slt, %42, %43 : vector<64x128xi32>
    %45 = arith.andi %39, %44 : vector<64x128xi1>
    %46 = arith.andi %36, %45 : vector<64x128xi1>
    %cst_25 = arith.constant 0xFF800000 : f32
    %47 = vector.broadcast %cst_25 : f32 to vector<64x128xf32>
    %48 = arith.select %46, %27, %47 : vector<64x128xi1>, vector<64x128xf32>
    %cst_26 = arith.constant dense<0xFF800000> : vector<64xf32>
    %49 = vector.multi_reduction <maximumf>, %48, %cst_26 [1] : vector<64x128xf32> to vector<64xf32>
    %50 = vector.shape_cast %49 : vector<64xf32> to vector<64x1xf32>
    %51 = vector.broadcast %50 : vector<64x1xf32> to vector<64x128xf32>
    %52 = arith.subf %48, %51 : vector<64x128xf32>
    %53 = math.exp %52 : vector<64x128xf32>
    %cst_27 = arith.constant dense<0.000000e+00> : vector<64xf32>
    %54 = vector.multi_reduction <add>, %53, %cst_27 [1] : vector<64x128xf32> to vector<64xf32>
    %55 = vector.shape_cast %54 : vector<64xf32> to vector<64x1xf32>
    %56 = tpu.reciprocal %55 {approx = true} : vector<64x1xf32> -> vector<64x1xf32>
    %57 = vector.broadcast %56 : vector<64x1xf32> to vector<64x128xf32>
    %58 = arith.mulf %53, %57 : vector<64x128xf32>
    %59 = arith.truncf %58 : vector<64x128xf32> to vector<64x128xbf16>
    %cst_28 = arith.constant dense<0.000000e+00> : vector<64x128xf32>
    %60 = tpu.matmul %59, %1, %cst_28 {dimension_numbers = #tpu.dot_dimension_numbers<[1], [0], [0], [1], [0, 0, 1, 1], [], []>} : vector<64x128xbf16>, vector<128x128xbf16>, vector<64x128xf32> -> vector<64x128xf32>
    %c0_29 = arith.constant 0 : index
    %c0_30 = arith.constant 0 : index
    %c0_31 = arith.constant 0 : index
    %61 = vector.load %arg11[%c0_29, %c0_30, %c0_31] : memref<1x64x512xf32, #tpu.memory_space<vmem>>, vector<1x64x128xf32>
    %62 = vector.shape_cast %61 : vector<1x64x128xf32> to vector<64x128xf32>
    %63 = vector.shape_cast %60 : vector<64x128xf32> to vector<1x64x128xf32>
    tpu.vector_store %arg11[%c0_29, %c0_30, %c0_31], %63 {strides = array<i32>} : memref<1x64x512xf32, #tpu.memory_space<vmem>>, vector<1x64x128xf32>,
    %64 = vector.broadcast %50 : vector<64x1xf32> to vector<64x128xf32>
    %65 = arith.subf %48, %64 : vector<64x128xf32>
    %66 = math.log %55 : vector<64x1xf32>
    %67 = vector.broadcast %66 : vector<64x1xf32> to vector<64x128xf32>
    %68 = arith.subf %65, %67 : vector<64x128xf32>
    %cst_32 = arith.constant 0.000000e+00 : f32
    %69 = vector.broadcast %cst_32 : f32 to vector<64x128xf32>
    %70 = arith.subf %69, %68 : vector<64x128xf32>
    %cst_33 = arith.constant 5.000000e-01 : f32
    %71 = vector.broadcast %cst_33 : f32 to vector<64x128xf32>
    %72 = arith.mulf %71, %68 : vector<64x128xf32>
    %cst_34 = arith.constant 0.333333343 : f32
    %73 = vector.broadcast %cst_34 : f32 to vector<64x128xf32>
    %74 = arith.mulf %68, %73 : vector<64x128xf32>
    %cst_35 = arith.constant 1.000000e+00 : f32
    %75 = vector.broadcast %cst_35 : f32 to vector<64x128xf32>
    %76 = arith.addf %75, %74 : vector<64x128xf32>
    %77 = arith.mulf %72, %76 : vector<64x128xf32>
    %cst_36 = arith.constant 1.000000e+00 : f32
    %78 = vector.broadcast %cst_36 : f32 to vector<64x128xf32>
    %79 = arith.addf %78, %77 : vector<64x128xf32>
    %80 = arith.mulf %70, %79 : vector<64x128xf32>
    %cst_37 = arith.constant -5.000000e-02 : f32
    %81 = vector.broadcast %cst_37 : f32 to vector<64x128xf32>
    %82 = arith.cmpf ogt, %68, %81 : vector<64x128xf32>
    %cst_38 = arith.constant 1.000000e+00 : f32
    %83 = vector.broadcast %cst_38 : f32 to vector<64x128xf32>
    %84 = arith.subf %83, %58 : vector<64x128xf32>
    %85 = arith.select %82, %80, %84 : vector<64x128xi1>, vector<64x128xf32>
    %86 = math.log %85 : vector<64x128xf32>
    %87 = arith.addf %48, %86 : vector<64x128xf32>
    %cst_39 = arith.constant dense<0xFF800000> : vector<64xf32>
    %88 = vector.multi_reduction <maximumf>, %87, %cst_39 [1] : vector<64x128xf32> to vector<64xf32>
    %89 = vector.shape_cast %88 : vector<64xf32> to vector<64x1xf32>
    %90 = vector.broadcast %89 : vector<64x1xf32> to vector<64x128xf32>
    %91 = arith.subf %87, %90 : vector<64x128xf32>
    %92 = math.exp %91 : vector<64x128xf32>
    %cst_40 = arith.constant dense<0.000000e+00> : vector<64xf32>
    %93 = vector.multi_reduction <add>, %92, %cst_40 [1] : vector<64x128xf32> to vector<64xf32>
    %94 = vector.shape_cast %93 : vector<64xf32> to vector<64x1xf32>
    %95 = tpu.reciprocal %94 {approx = true} : vector<64x1xf32> -> vector<64x1xf32>
    %96 = vector.broadcast %95 : vector<64x1xf32> to vector<64x128xf32>
    %97 = arith.mulf %92, %96 : vector<64x128xf32>
    %98 = arith.truncf %97 : vector<64x128xf32> to vector<64x128xbf16>
    %cst_41 = arith.constant dense<0.000000e+00> : vector<64x128xf32>
    %99 = tpu.matmul %98, %1, %cst_41 {dimension_numbers = #tpu.dot_dimension_numbers<[1], [0], [0], [1], [0, 0, 1, 1], [], []>} : vector<64x128xbf16>, vector<128x128xbf16>, vector<64x128xf32> -> vector<64x128xf32>
    %c0_42 = arith.constant 0 : index
    %c0_43 = arith.constant 0 : index
    %c128 = arith.constant 128 : index
    %100 = vector.load %arg11[%c0_42, %c0_43, %c128] : memref<1x64x512xf32, #tpu.memory_space<vmem>>, vector<1x64x128xf32>
    %101 = vector.shape_cast %100 : vector<1x64x128xf32> to vector<64x128xf32>
    %102 = vector.shape_cast %99 : vector<64x128xf32> to vector<1x64x128xf32>
    tpu.vector_store %arg11[%c0_42, %c0_43, %c128], %102 {strides = array<i32>} : memref<1x64x512xf32, #tpu.memory_space<vmem>>, vector<1x64x128xf32>,
    %103 = vector.broadcast %89 : vector<64x1xf32> to vector<64x128xf32>
    %104 = arith.subf %87, %103 : vector<64x128xf32>
    %105 = math.log %94 : vector<64x1xf32>
    %106 = vector.broadcast %105 : vector<64x1xf32> to vector<64x128xf32>
    %107 = arith.subf %104, %106 : vector<64x128xf32>
    %cst_44 = arith.constant 0.000000e+00 : f32
    %108 = vector.broadcast %cst_44 : f32 to vector<64x128xf32>
    %109 = arith.subf %108, %107 : vector<64x128xf32>
    %cst_45 = arith.constant 5.000000e-01 : f32
    %110 = vector.broadcast %cst_45 : f32 to vector<64x128xf32>
    %111 = arith.mulf %110, %107 : vector<64x128xf32>
    %cst_46 = arith.constant 0.333333343 : f32
    %112 = vector.broadcast %cst_46 : f32 to vector<64x128xf32>
    %113 = arith.mulf %107, %112 : vector<64x128xf32>
    %cst_47 = arith.constant 1.000000e+00 : f32
    %114 = vector.broadcast %cst_47 : f32 to vector<64x128xf32>
    %115 = arith.addf %114, %113 : vector<64x128xf32>
    %116 = arith.mulf %111, %115 : vector<64x128xf32>
    %cst_48 = arith.constant 1.000000e+00 : f32
    %117 = vector.broadcast %cst_48 : f32 to vector<64x128xf32>
    %118 = arith.addf %117, %116 : vector<64x128xf32>
    %119 = arith.mulf %109, %118 : vector<64x128xf32>
    %cst_49 = arith.constant -5.000000e-02 : f32
    %120 = vector.broadcast %cst_49 : f32 to vector<64x128xf32>
    %121 = arith.cmpf ogt, %107, %120 : vector<64x128xf32>
    %cst_50 = arith.constant 1.000000e+00 : f32
    %122 = vector.broadcast %cst_50 : f32 to vector<64x128xf32>
    %123 = arith.subf %122, %97 : vector<64x128xf32>
    %124 = arith.select %121, %119, %123 : vector<64x128xi1>, vector<64x128xf32>
    %125 = math.log %124 : vector<64x128xf32>
    %126 = arith.addf %87, %125 : vector<64x128xf32>
    %cst_51 = arith.constant dense<0xFF800000> : vector<64xf32>
    %127 = vector.multi_reduction <maximumf>, %126, %cst_51 [1] : vector<64x128xf32> to vector<64xf32>
    %128 = vector.shape_cast %127 : vector<64xf32> to vector<64x1xf32>
    %129 = vector.broadcast %128 : vector<64x1xf32> to vector<64x128xf32>
    %130 = arith.subf %126, %129 : vector<64x128xf32>
    %131 = math.exp %130 : vector<64x128xf32>
    %cst_52 = arith.constant dense<0.000000e+00> : vector<64xf32>
    %132 = vector.multi_reduction <add>, %131, %cst_52 [1] : vector<64x128xf32> to vector<64xf32>
    %133 = vector.shape_cast %132 : vector<64xf32> to vector<64x1xf32>
    %134 = tpu.reciprocal %133 {approx = true} : vector<64x1xf32> -> vector<64x1xf32>
    %135 = vector.broadcast %134 : vector<64x1xf32> to vector<64x128xf32>
    %136 = arith.mulf %131, %135 : vector<64x128xf32>
    %137 = arith.truncf %136 : vector<64x128xf32> to vector<64x128xbf16>
    %cst_53 = arith.constant dense<0.000000e+00> : vector<64x128xf32>
    %138 = tpu.matmul %137, %1, %cst_53 {dimension_numbers = #tpu.dot_dimension_numbers<[1], [0], [0], [1], [0, 0, 1, 1], [], []>} : vector<64x128xbf16>, vector<128x128xbf16>, vector<64x128xf32> -> vector<64x128xf32>
    %c0_54 = arith.constant 0 : index
    %c0_55 = arith.constant 0 : index
    %c256 = arith.constant 256 : index
    %139 = vector.load %arg11[%c0_54, %c0_55, %c256] : memref<1x64x512xf32, #tpu.memory_space<vmem>>, vector<1x64x128xf32>
    %140 = vector.shape_cast %139 : vector<1x64x128xf32> to vector<64x128xf32>
    %141 = vector.shape_cast %138 : vector<64x128xf32> to vector<1x64x128xf32>
    tpu.vector_store %arg11[%c0_54, %c0_55, %c256], %141 {strides = array<i32>} : memref<1x64x512xf32, #tpu.memory_space<vmem>>, vector<1x64x128xf32>,
    %142 = vector.broadcast %128 : vector<64x1xf32> to vector<64x128xf32>
    %143 = arith.subf %126, %142 : vector<64x128xf32>
    %144 = math.log %133 : vector<64x1xf32>
    %145 = vector.broadcast %144 : vector<64x1xf32> to vector<64x128xf32>
    %146 = arith.subf %143, %145 : vector<64x128xf32>
    %cst_56 = arith.constant 0.000000e+00 : f32
    %147 = vector.broadcast %cst_56 : f32 to vector<64x128xf32>
    %148 = arith.subf %147, %146 : vector<64x128xf32>
    %cst_57 = arith.constant 5.000000e-01 : f32
    %149 = vector.broadcast %cst_57 : f32 to vector<64x128xf32>
    %150 = arith.mulf %149, %146 : vector<64x128xf32>
    %cst_58 = arith.constant 0.333333343 : f32
    %151 = vector.broadcast %cst_58 : f32 to vector<64x128xf32>
    %152 = arith.mulf %146, %151 : vector<64x128xf32>
    %cst_59 = arith.constant 1.000000e+00 : f32
    %153 = vector.broadcast %cst_59 : f32 to vector<64x128xf32>
    %154 = arith.addf %153, %152 : vector<64x128xf32>
    %155 = arith.mulf %150, %154 : vector<64x128xf32>
    %cst_60 = arith.constant 1.000000e+00 : f32
    %156 = vector.broadcast %cst_60 : f32 to vector<64x128xf32>
    %157 = arith.addf %156, %155 : vector<64x128xf32>
    %158 = arith.mulf %148, %157 : vector<64x128xf32>
    %cst_61 = arith.constant -5.000000e-02 : f32
    %159 = vector.broadcast %cst_61 : f32 to vector<64x128xf32>
    %160 = arith.cmpf ogt, %146, %159 : vector<64x128xf32>
    %cst_62 = arith.constant 1.000000e+00 : f32
    %161 = vector.broadcast %cst_62 : f32 to vector<64x128xf32>
    %162 = arith.subf %161, %136 : vector<64x128xf32>
    %163 = arith.select %160, %158, %162 : vector<64x128xi1>, vector<64x128xf32>
    %164 = math.log %163 : vector<64x128xf32>
    %165 = arith.addf %126, %164 : vector<64x128xf32>
    %cst_63 = arith.constant dense<0xFF800000> : vector<64xf32>
    %166 = vector.multi_reduction <maximumf>, %165, %cst_63 [1] : vector<64x128xf32> to vector<64xf32>
    %167 = vector.shape_cast %166 : vector<64xf32> to vector<64x1xf32>
    %168 = vector.broadcast %167 : vector<64x1xf32> to vector<64x128xf32>
    %169 = arith.subf %165, %168 : vector<64x128xf32>
    %170 = math.exp %169 : vector<64x128xf32>
    %cst_64 = arith.constant dense<0.000000e+00> : vector<64xf32>
    %171 = vector.multi_reduction <add>, %170, %cst_64 [1] : vector<64x128xf32> to vector<64xf32>
    %172 = vector.shape_cast %171 : vector<64xf32> to vector<64x1xf32>
    %173 = tpu.reciprocal %172 {approx = true} : vector<64x1xf32> -> vector<64x1xf32>
    %174 = vector.broadcast %173 : vector<64x1xf32> to vector<64x128xf32>
    %175 = arith.mulf %170, %174 : vector<64x128xf32>
    %176 = arith.truncf %175 : vector<64x128xf32> to vector<64x128xbf16>
    %cst_65 = arith.constant dense<0.000000e+00> : vector<64x128xf32>
    %177 = tpu.matmul %176, %1, %cst_65 {dimension_numbers = #tpu.dot_dimension_numbers<[1], [0], [0], [1], [0, 0, 1, 1], [], []>} : vector<64x128xbf16>, vector<128x128xbf16>, vector<64x128xf32> -> vector<64x128xf32>
    %c0_66 = arith.constant 0 : index
    %c0_67 = arith.constant 0 : index
    %c384 = arith.constant 384 : index
    %178 = vector.load %arg11[%c0_66, %c0_67, %c384] : memref<1x64x512xf32, #tpu.memory_space<vmem>>, vector<1x64x128xf32>
    %179 = vector.shape_cast %178 : vector<1x64x128xf32> to vector<64x128xf32>
    %180 = vector.shape_cast %177 : vector<64x128xf32> to vector<1x64x128xf32>
    tpu.vector_store %arg11[%c0_66, %c0_67, %c384], %180 {strides = array<i32>} : memref<1x64x512xf32, #tpu.memory_space<vmem>>, vector<1x64x128xf32>,
    return
  }
  func.func @transform_0(%arg0: i32, %arg1: i32) -> (i32, i32) {
    %c0_i32 = arith.constant 0 : i32
    %c0_i32_0 = arith.constant 0 : i32
    %c0_i32_1 = arith.constant 0 : i32
    return %c0_i32, %c0_i32_0 : i32, i32
  }
  func.func @transform_1(%arg0: i32, %arg1: i32) -> (i32, i32) {
    %c0_i32 = arith.constant 0 : i32
    %c0_i32_0 = arith.constant 0 : i32
    return %arg1, %c0_i32 : i32, i32
  }
  func.func @transform_2(%arg0: i32, %arg1: i32) -> (i32, i32) {
    %c0_i32 = arith.constant 0 : i32
    %c0_i32_0 = arith.constant 0 : i32
    return %arg1, %c0_i32 : i32, i32
  }
  func.func @transform_3(%arg0: i32, %arg1: i32) -> (i32, i32) {
    %c0_i32 = arith.constant 0 : i32
    %c0_i32_0 = arith.constant 0 : i32
    %c0_i32_1 = arith.constant 0 : i32
    return %c0_i32, %c0_i32_0 : i32, i32
  }
  func.func @transform_4(%arg0: i32, %arg1: i32) -> (i32, i32) {
    %c0_i32 = arith.constant 0 : i32
    %c0_i32_0 = arith.constant 0 : i32
    %c0_i32_1 = arith.constant 0 : i32
    return %c0_i32, %c0_i32_0 : i32, i32
  }
  func.func @transform_5(%arg0: i32, %arg1: i32) -> (i32, i32, i32) {
    %c0_i32 = arith.constant 0 : i32
    %c0_i32_0 = arith.constant 0 : i32
    %c0_i32_1 = arith.constant 0 : i32
    return %arg0, %c0_i32, %c0_i32_0 : i32, i32, i32
  }
  func.func @transform_6(%arg0: i32, %arg1: i32) -> (i32, i32, i32) {
    %c0_i32 = arith.constant 0 : i32
    %c0_i32_0 = arith.constant 0 : i32
    %c0_i32_1 = arith.constant 0 : i32
    return %arg0, %c0_i32, %c0_i32_0 : i32, i32, i32
  }
  func.func @transform_7(%arg0: i32, %arg1: i32) -> (i32, i32, i32) {
    %c0_i32 = arith.constant 0 : i32
    %c0_i32_0 = arith.constant 0 : i32
    %c0_i32_1 = arith.constant 0 : i32
    return %arg0, %c0_i32, %c0_i32_0 : i32, i32, i32
  }
  func.func @transform_8(%arg0: i32, %arg1: i32) -> (i32, i32, i32) {
    %c0_i32 = arith.constant 0 : i32
    %c0_i32_0 = arith.constant 0 : i32
    return %arg0, %arg1, %c0_i32 : i32, i32, i32
  }
  func.func @transform_9(%arg0: i32, %arg1: i32) -> (i32, i32, i32) {
    %c0_i32 = arith.constant 0 : i32
    %c0_i32_0 = arith.constant 0 : i32
    return %arg0, %arg1, %c0_i32 : i32, i32, i32
  }
}

</mosaic_0001>

<llo_original>
// kernel: n3_aggregation_2d.1
$region0: #{n3_aggregation_2d.1}
  #allocation0 [shape = 'u32[]', space=smem, size = 0x4, offset = 0x4, fixed_abs, tag = 'smem constant byte address 0x4 - core index']
  #allocation1 [shape = 'u32[144,128]{1,0:T(1,128)}', space=vmem, size = 0x12000, scoped, tag = 'internal scratch']
  #allocation2 [shape = 'f32[1,1]{1,0:T(1,128)S(6)}', space=smem, size = 0x200, scoped, tag = 'scoped memory for n3_aggregation_2d.1']
  %s0 = inlined_call_operand.<no memory space> [shape: f32[1,1], index: 0, kind: input, shape index: {}]
  %s1 = inlined_call_operand.vmem [shape: s32[64,1], index: 1, kind: input, shape index: {}]
  %s2 = inlined_call_operand.vmem [shape: s32[64,1], index: 2, kind: input, shape index: {}]
  %s3 = inlined_call_operand.vmem [shape: s32[1,128], index: 3, kind: input, shape index: {}]
  %s4 = inlined_call_operand.vmem [shape: s32[1,128], index: 4, kind: input, shape index: {}]
  %s5 = inlined_call_operand.vmem [shape: f32[2,1,128], index: 5, kind: input, shape index: {}]
  %s6 = inlined_call_operand.vmem [shape: bf16[2,128,128], index: 6, kind: input, shape index: {}]
  %s7 = inlined_call_operand.vmem [shape: bf16[2,128,128], index: 7, kind: input, shape index: {}]
  %s8 = inlined_call_operand.vmem [shape: bf16[2,64,128], index: 8, kind: input, shape index: {}]
  %s9 = inlined_call_operand.vmem [shape: f32[2,64,512], index: 9, kind: output, shape index: {}]
  %s10 = sld [smem:[#allocation0]]
  $region69: #{n3_aggregation_2d.1} parent=0
    _
  %s12 = ssub.s32 1, %s10
  %s13 = scalar_select 0, %s12, %s10
  %14 = sst [smem:[#allocation2]] %s0
  loop: start=0, step=1, limit=4
  $region2: #{n3_aggregation_2d.1} parent=0 // loop_pre_header
    _
  $region3: #{n3_aggregation_2d.1} parent=0 // loop_header
    %s16 = sphi 0, %s20
    %p17 = scmp.ge.s32.totalorder %s16, 4
    %s23 = sphi 0, %s35
    %s24 = sphi 0, %s31
    %s25 = sphi 0, %s23
    %s26 = sphi 0, %s24
    %s27 = sphi 0, %s25
    %s28 = sphi 0, %s26
    %s36 = sphi 0, %s36
    %s38 = sphi 0, %s36
    %s39 = sphi 0, %s38
    %s53 = sphi 0, %s39
    %s59 = sphi 0, %s61
    %s62 = sphi 0, %s59
    %s63 = sphi 0, %s62
    %s79 = sphi 0, %s63
    %s85 = sphi 0, %s87
    %s88 = sphi 0, %s85
    %s89 = sphi 0, %s88
    %s105 = sphi 0, %s89
    %s109 = sphi 0, %s109
    %s111 = sphi 0, %s109
    %s112 = sphi 0, %s111
    %s126 = sphi 0, %s112
    %s130 = sphi 0, %s130
    %s132 = sphi 0, %s130
    %s133 = sphi 0, %s132
    %s147 = sphi 0, %s133
    %s153 = sphi 0, %s155
    %s156 = sphi 0, %s153
    %s157 = sphi 0, %s156
    %s173 = sphi 0, %s157
    %s179 = sphi 0, %s181
    %s182 = sphi 0, %s179
    %s183 = sphi 0, %s182
    %s199 = sphi 0, %s183
    %s205 = sphi 0, %s207
    %s208 = sphi 0, %s205
    %s209 = sphi 0, %s208
    %s225 = sphi 0, %s209
    %s233 = sphi 0, %s235
    %s236 = sphi 0, %s233
    %s237 = sphi 0, %s236
    %s253 = sphi 0, %s237
    %s261 = sphi 0, %s263
    %s264 = sphi 0, %s261
    %s265 = sphi 0, %s264
    %s281 = sphi 0, %s265
  $region4: #{n3_aggregation_2d.1} parent=0 // loop_header_branch
    %19 = sbr.rel (%p17) target = $region8
  $region5: #{n3_aggregation_2d.1} parent=0 // loop_body
    %s21 = ssub.s32 %s16, 1
    %s22 = ssub.s32 %s16, 2
    %s29 = sadd.s32 1, %s24
    %p30 = scmp.ge.s32.totalorder %s29, 1
    %s31 = scalar_select %p30, 0, %s29
    %s32 = sadd.s32 1, %s23
    %s33 = scalar_select %p30, %s32, %s23
    %p34 = scmp.ge.s32.totalorder %s33, 2
    %s35 = scalar_select %p34, 0, %s33
    %s37 = sadd.s32 %s36, 1
    %p40 = scmp.eq.s32.totalorder %s16, 1
    %p41 = scmp.ne.s32.totalorder %s36, %s38
    %p42 = scmp.eq.s32.totalorder %s16, 0
    %p43 = por %p41, %p42
    %p44 = scmp.ne.s32.totalorder %s36, %s38
    %p45 = scmp.eq.s32.totalorder %s21, 1
    %p46 = por %p44, %p45
    %p47 = scmp.ne.s32.totalorder %s38, %s39
    %p48 = scmp.eq.s32.totalorder %s21, 0
    %p49 = por %p47, %p48
    %p50 = scmp.ne.s32.totalorder %s38, %s39
    %p51 = scmp.eq.s32.totalorder %s22, 1
    %p52 = por %p50, %p51
    %p54 = scmp.ne.s32.totalorder %s39, %s53
    %p55 = scmp.eq.s32.totalorder %s22, 0
    %p56 = por %p54, %p55
    %s57 = ssub.s32 %s24, %s31
    %p58 = scmp.eq.s32.totalorder %s57, 0
    %s60 = sadd.s32 %s59, 1
    %s61 = scalar_select %p58, %s59, %s60
    %p64 = pneg %p58
    %p65 = scmp.eq.s32.totalorder %s16, 1
    %p66 = por %p64, %p65
    %p67 = scmp.ne.s32.totalorder %s59, %s62
    %p68 = scmp.eq.s32.totalorder %s16, 0
    %p69 = por %p67, %p68
    %p70 = scmp.ne.s32.totalorder %s59, %s62
    %p71 = scmp.eq.s32.totalorder %s21, 1
    %p72 = por %p70, %p71
    %p73 = scmp.ne.s32.totalorder %s62, %s63
    %p74 = scmp.eq.s32.totalorder %s21, 0
    %p75 = por %p73, %p74
    %p76 = scmp.ne.s32.totalorder %s62, %s63
    %p77 = scmp.eq.s32.totalorder %s22, 1
    %p78 = por %p76, %p77
    %p80 = scmp.ne.s32.totalorder %s63, %s79
    %p81 = scmp.eq.s32.totalorder %s22, 0
    %p82 = por %p80, %p81
    %s83 = ssub.s32 %s24, %s31
    %p84 = scmp.eq.s32.totalorder %s83, 0
    %s86 = sadd.s32 %s85, 1
    %s87 = scalar_select %p84, %s85, %s86
    %p90 = pneg %p84
    %p91 = scmp.eq.s32.totalorder %s16, 1
    %p92 = por %p90, %p91
    %p93 = scmp.ne.s32.totalorder %s85, %s88
    %p94 = scmp.eq.s32.totalorder %s16, 0
    %p95 = por %p93, %p94
    %p96 = scmp.ne.s32.totalorder %s85, %s88
    %p97 = scmp.eq.s32.totalorder %s21, 1
    %p98 = por %p96, %p97
    %p99 = scmp.ne.s32.totalorder %s88, %s89
    %p100 = scmp.eq.s32.totalorder %s21, 0
    %p101 = por %p99, %p100
    %p102 = scmp.ne.s32.totalorder %s88, %s89
    %p103 = scmp.eq.s32.totalorder %s22, 1
    %p104 = por %p102, %p103
    %p106 = scmp.ne.s32.totalorder %s89, %s105
    %p107 = scmp.eq.s32.totalorder %s22, 0
    %p108 = por %p106, %p107
    %s110 = sadd.s32 %s109, 1
    %p113 = scmp.eq.s32.totalorder %s16, 1
    %p114 = scmp.ne.s32.totalorder %s109, %s111
    %p115 = scmp.eq.s32.totalorder %s16, 0
    %p116 = por %p114, %p115
    %p117 = scmp.ne.s32.totalorder %s109, %s111
    %p118 = scmp.eq.s32.totalorder %s21, 1
    %p119 = por %p117, %p118
    %p120 = scmp.ne.s32.totalorder %s111, %s112
    %p121 = scmp.eq.s32.totalorder %s21, 0
    %p122 = por %p120, %p121
    %p123 = scmp.ne.s32.totalorder %s111, %s112
    %p124 = scmp.eq.s32.totalorder %s22, 1
    %p125 = por %p123, %p124
    %p127 = scmp.ne.s32.totalorder %s112, %s126
    %p128 = scmp.eq.s32.totalorder %s22, 0
    %p129 = por %p127, %p128
    %s131 = sadd.s32 %s130, 1
    %p134 = scmp.eq.s32.totalorder %s16, 1
    %p135 = scmp.ne.s32.totalorder %s130, %s132
    %p136 = scmp.eq.s32.totalorder %s16, 0
    %p137 = por %p135, %p136
    %p138 = scmp.ne.s32.totalorder %s130, %s132
    %p139 = scmp.eq.s32.totalorder %s21, 1
    %p140 = por %p138, %p139
    %p141 = scmp.ne.s32.totalorder %s132, %s133
    %p142 = scmp.eq.s32.totalorder %s21, 0
    %p143 = por %p141, %p142
    %p144 = scmp.ne.s32.totalorder %s132, %s133
    %p145 = scmp.eq.s32.totalorder %s22, 1
    %p146 = por %p144, %p145
    %p148 = scmp.ne.s32.totalorder %s133, %s147
    %p149 = scmp.eq.s32.totalorder %s22, 0
    %p150 = por %p148, %p149
    %s151 = ssub.s32 %s23, %s35
    %p152 = scmp.eq.s32.totalorder %s151, 0
    %s154 = sadd.s32 %s153, 1
    %s155 = scalar_select %p152, %s153, %s154
    %p158 = pneg %p152
    %p159 = scmp.eq.s32.totalorder %s16, 1
    %p160 = por %p158, %p159
    %p161 = scmp.ne.s32.totalorder %s153, %s156
    %p162 = scmp.eq.s32.totalorder %s16, 0
    %p163 = por %p161, %p162
    %p164 = scmp.ne.s32.totalorder %s153, %s156
    %p165 = scmp.eq.s32.totalorder %s21, 1
    %p166 = por %p164, %p165
    %p167 = scmp.ne.s32.totalorder %s156, %s157
    %p168 = scmp.eq.s32.totalorder %s21, 0
    %p169 = por %p167, %p168
    %p170 = scmp.ne.s32.totalorder %s156, %s157
    %p171 = scmp.eq.s32.totalorder %s22, 1
    %p172 = por %p170, %p171
    %p174 = scmp.ne.s32.totalorder %s157, %s173
    %p175 = scmp.eq.s32.totalorder %s22, 0
    %p176 = por %p174, %p175
    %s177 = ssub.s32 %s23, %s35
    %p178 = scmp.eq.s32.totalorder %s177, 0
    %s180 = sadd.s32 %s179, 1
    %s181 = scalar_select %p178, %s179, %s180
    %p184 = pneg %p178
    %p185 = scmp.eq.s32.totalorder %s16, 1
    %p186 = por %p184, %p185
    %p187 = scmp.ne.s32.totalorder %s179, %s182
    %p188 = scmp.eq.s32.totalorder %s16, 0
    %p189 = por %p187, %p188
    %p190 = scmp.ne.s32.totalorder %s179, %s182
    %p191 = scmp.eq.s32.totalorder %s21, 1
    %p192 = por %p190, %p191
    %p193 = scmp.ne.s32.totalorder %s182, %s183
    %p194 = scmp.eq.s32.totalorder %s21, 0
    %p195 = por %p193, %p194
    %p196 = scmp.ne.s32.totalorder %s182, %s183
    %p197 = scmp.eq.s32.totalorder %s22, 1
    %p198 = por %p196, %p197
    %p200 = scmp.ne.s32.totalorder %s183, %s199
    %p201 = scmp.eq.s32.totalorder %s22, 0
    %p202 = por %p200, %p201
    %s203 = ssub.s32 %s23, %s35
    %p204 = scmp.eq.s32.totalorder %s203, 0
    %s206 = sadd.s32 %s205, 1
    %s207 = scalar_select %p204, %s205, %s206
    %p210 = pneg %p204
    %p211 = scmp.eq.s32.totalorder %s16, 1
    %p212 = por %p210, %p211
    %p213 = scmp.ne.s32.totalorder %s205, %s208
    %p214 = scmp.eq.s32.totalorder %s16, 0
    %p215 = por %p213, %p214
    %p216 = scmp.ne.s32.totalorder %s205, %s208
    %p217 = scmp.eq.s32.totalorder %s21, 1
    %p218 = por %p216, %p217
    %p219 = scmp.ne.s32.totalorder %s208, %s209
    %p220 = scmp.eq.s32.totalorder %s21, 0
    %p221 = por %p219, %p220
    %p222 = scmp.ne.s32.totalorder %s208, %s209
    %p223 = scmp.eq.s32.totalorder %s22, 1
    %p224 = por %p222, %p223
    %p226 = scmp.ne.s32.totalorder %s209, %s225
    %p227 = scmp.eq.s32.totalorder %s22, 0
    %p228 = por %p226, %p227
    %s229 = ssub.s32 %s23, %s35
    %s230 = ssub.s32 %s24, %s31
    %s231 = sor.u32 %s229, %s230
    %p232 = scmp.eq.s32.totalorder %s231, 0
    %s234 = sadd.s32 %s233, 1
    %s235 = scalar_select %p232, %s233, %s234
    %p238 = pneg %p232
    %p239 = scmp.eq.s32.totalorder %s16, 1
    %p240 = por %p238, %p239
    %p241 = scmp.ne.s32.totalorder %s233, %s236
    %p242 = scmp.eq.s32.totalorder %s16, 0
    %p243 = por %p241, %p242
    %p244 = scmp.ne.s32.totalorder %s233, %s236
    %p245 = scmp.eq.s32.totalorder %s21, 1
    %p246 = por %p244, %p245
    %p247 = scmp.ne.s32.totalorder %s236, %s237
    %p248 = scmp.eq.s32.totalorder %s21, 0
    %p249 = por %p247, %p248
    %p250 = scmp.ne.s32.totalorder %s236, %s237
    %p251 = scmp.eq.s32.totalorder %s22, 1
    %p252 = por %p250, %p251
    %p254 = scmp.ne.s32.totalorder %s237, %s253
    %p255 = scmp.eq.s32.totalorder %s22, 0
    %p256 = por %p254, %p255
    %s257 = ssub.s32 %s23, %s35
    %s258 = ssub.s32 %s24, %s31
    %s259 = sor.u32 %s257, %s258
    %p260 = scmp.eq.s32.totalorder %s259, 0
    %s262 = sadd.s32 %s261, 1
    %s263 = scalar_select %p260, %s261, %s262
    %p266 = pneg %p260
    %p267 = scmp.eq.s32.totalorder %s16, 1
    %p268 = por %p266, %p267
    %p269 = scmp.ne.s32.totalorder %s261, %s264
    %p270 = scmp.eq.s32.totalorder %s16, 0
    %p271 = por %p269, %p270
    %p272 = scmp.ne.s32.totalorder %s261, %s264
    %p273 = scmp.eq.s32.totalorder %s21, 1
    %p274 = por %p272, %p273
    %p275 = scmp.ne.s32.totalorder %s264, %s265
    %p276 = scmp.eq.s32.totalorder %s21, 0
    %p277 = por %p275, %p276
    %p278 = scmp.ne.s32.totalorder %s264, %s265
    %p279 = scmp.eq.s32.totalorder %s22, 1
    %p280 = por %p278, %p279
    %p282 = scmp.ne.s32.totalorder %s265, %s281
    %p283 = scmp.eq.s32.totalorder %s22, 0
    %p284 = por %p282, %p283
    %p285 = scmp.le.s32.totalorder 1, %s16
    %p286 = scmp.lt.s32.totalorder %s16, 3
    %p287 = pnand %p285, %p286
    %p288 = pneg %p287
    // Predicated region
    $region9: #{n3_aggregation_2d.1} parent=5 // pred_check
      _
    $region10: #{n3_aggregation_2d.1} parent=5 // pred_check_branch
      %290 = sbr.rel (%p287) target = $region12
    $region11: #{n3_aggregation_2d.1} parent=5 // pred_region
      %s291 = ssub.s32 %s16, 1
      // Predicated region
      $region13: #{n3_aggregation_2d.1} parent=11 // pred_check
        %p292 = pneg %p49
      $region14: #{n3_aggregation_2d.1} parent=11 // pred_check_branch
        %294 = sbr.rel (%p292) target = $region16
      $region15: #{n3_aggregation_2d.1} parent=11 // pred_region
        _
      $region16: #{n3_aggregation_2d.1} parent=11 // pred_fallthru
        _
      // Predicated region
      $region17: #{n3_aggregation_2d.1} parent=11 // pred_check
        %p295 = pneg %p75
      $region18: #{n3_aggregation_2d.1} parent=11 // pred_check_branch
        %297 = sbr.rel (%p295) target = $region20
      $region19: #{n3_aggregation_2d.1} parent=11 // pred_region
        %s298 = smul.u32 8, %s26
        %p299 = scmp.lt.s32.totalorder %s298, 7
        %s300 = scalar_select %p299, %s298, 7
        %s301 = smul.addr %s300, 8
        %s302 = scalar_lea.vmem %s1, %s301
        %s303 = smul.u32 8, %s26
      $region20: #{n3_aggregation_2d.1} parent=11 // pred_fallthru
        _
      // Predicated region
      $region21: #{n3_aggregation_2d.1} parent=11 // pred_check
        %p304 = pneg %p101
      $region22: #{n3_aggregation_2d.1} parent=11 // pred_check_branch
        %306 = sbr.rel (%p304) target = $region24
      $region23: #{n3_aggregation_2d.1} parent=11 // pred_region
        %s307 = smul.u32 8, %s26
        %p308 = scmp.lt.s32.totalorder %s307, 7
        %s309 = scalar_select %p308, %s307, 7
        %s310 = smul.addr %s309, 8
        %s311 = scalar_lea.vmem %s2, %s310
        %s312 = smul.u32 8, %s26
      $region24: #{n3_aggregation_2d.1} parent=11 // pred_fallthru
        _
      // Predicated region
      $region25: #{n3_aggregation_2d.1} parent=11 // pred_check
        %p313 = pneg %p122
      $region26: #{n3_aggregation_2d.1} parent=11 // pred_check_branch
        %315 = sbr.rel (%p313) target = $region28
      $region27: #{n3_aggregation_2d.1} parent=11 // pred_region
        _
      $region28: #{n3_aggregation_2d.1} parent=11 // pred_fallthru
        _
      // Predicated region
      $region29: #{n3_aggregation_2d.1} parent=11 // pred_check
        %p316 = pneg %p143
      $region30: #{n3_aggregation_2d.1} parent=11 // pred_check_branch
        %318 = sbr.rel (%p316) target = $region32
      $region31: #{n3_aggregation_2d.1} parent=11 // pred_region
        _
      $region32: #{n3_aggregation_2d.1} parent=11 // pred_fallthru
        _
    $region12: #{n3_aggregation_2d.1} parent=5 // pred_fallthru
      _
    %p319 = scmp.lt.s32.totalorder %s16, 2
    // Predicated region
    $region33: #{n3_aggregation_2d.1} parent=5 // pred_check
      %p320 = pneg %p319
    $region34: #{n3_aggregation_2d.1} parent=5 // pred_check_branch
      %322 = sbr.rel (%p320) target = $region36
    $region35: #{n3_aggregation_2d.1} parent=5 // pred_region
      // Predicated region
      $region37: #{n3_aggregation_2d.1} parent=35 // pred_check
        %p323 = pneg %p163
      $region38: #{n3_aggregation_2d.1} parent=35 // pred_check_branch
        %325 = sbr.rel (%p323) target = $region40
      $region39: #{n3_aggregation_2d.1} parent=35 // pred_region
        %p326 = scmp.lt.s32.totalorder %s23, 1
        %s327 = scalar_select %p326, %s23, 1
        %s328 = scalar_lea.vmem %s5, %s327
      $region40: #{n3_aggregation_2d.1} parent=35 // pred_fallthru
        _
      // Predicated region
      $region41: #{n3_aggregation_2d.1} parent=35 // pred_check
        %p329 = pneg %p189
      $region42: #{n3_aggregation_2d.1} parent=35 // pred_check_branch
        %331 = sbr.rel (%p329) target = $region44
      $region43: #{n3_aggregation_2d.1} parent=35 // pred_region
        %p332 = scmp.lt.s32.totalorder %s23, 1
        %s333 = scalar_select %p332, %s23, 1
        %s334 = smul.addr %s333, 16
        %s335 = smul.addr %s334, 4
        %s336 = scalar_lea.vmem %s6, %s335
      $region44: #{n3_aggregation_2d.1} parent=35 // pred_fallthru
        _
      // Predicated region
      $region45: #{n3_aggregation_2d.1} parent=35 // pred_check
        %p337 = pneg %p215
      $region46: #{n3_aggregation_2d.1} parent=35 // pred_check_branch
        %339 = sbr.rel (%p337) target = $region48
      $region47: #{n3_aggregation_2d.1} parent=35 // pred_region
        %p340 = scmp.lt.s32.totalorder %s23, 1
        %s341 = scalar_select %p340, %s23, 1
        %s342 = smul.addr %s341, 16
        %s343 = smul.addr %s342, 4
        %s344 = scalar_lea.vmem %s7, %s343
      $region48: #{n3_aggregation_2d.1} parent=35 // pred_fallthru
        _
      // Predicated region
      $region49: #{n3_aggregation_2d.1} parent=35 // pred_check
        %p345 = pneg %p243
      $region50: #{n3_aggregation_2d.1} parent=35 // pred_check_branch
        %347 = sbr.rel (%p345) target = $region52
      $region51: #{n3_aggregation_2d.1} parent=35 // pred_region
        %s348 = smul.u32 8, %s24
        %p349 = scmp.lt.s32.totalorder %s23, 1
        %s350 = scalar_select %p349, %s23, 1
        %p351 = scmp.lt.s32.totalorder %s348, 7
        %s352 = scalar_select %p351, %s348, 7
        %s353 = smul.addr %s350, 8
        %s354 = sadd.s32 %s352, %s353
        %s355 = smul.addr %s354, 4
        %s356 = scalar_lea.vmem %s8, %s355
        %s357 = smul.u32 8, %s24
      $region52: #{n3_aggregation_2d.1} parent=35 // pred_fallthru
        _
    $region36: #{n3_aggregation_2d.1} parent=5 // pred_fallthru
      _
    %p358 = scmp.le.s32.totalorder 1, %s16
    %p359 = scmp.lt.s32.totalorder %s16, 3
    %p360 = pnand %p358, %p359
    %p361 = pneg %p360
    // Predicated region
    $region53: #{n3_aggregation_2d.1} parent=5 // pred_check
      _
    $region54: #{n3_aggregation_2d.1} parent=5 // pred_check_branch
      %363 = sbr.rel (%p360) target = $region56
    $region55: #{n3_aggregation_2d.1} parent=5 // pred_region
      %s364 = ssub.s32 %s16, 1
      %p365 = pneg %p49
      %p366 = pneg %p46
      %s367 = smul.u32 8, %s26
      %p368 = scmp.lt.s32.totalorder %s367, 7
      %s369 = scalar_select %p368, %s367, 7
      %s370 = smul.addr %s369, 8
      %s371 = scalar_lea.vmem %s1, %s370
      %p372 = pneg %p75
      %p373 = pneg %p72
      %s374 = smul.u32 8, %s26
      %p375 = scmp.lt.s32.totalorder %s374, 7
      %s376 = scalar_select %p375, %s374, 7
      %s377 = smul.addr %s376, 8
      %s378 = scalar_lea.vmem %s2, %s377
      %p379 = pneg %p101
      %p380 = pneg %p98
      %p381 = pneg %p122
      %p382 = pneg %p119
      %p383 = pneg %p143
      %p384 = pneg %p140
      %p385 = scmp.lt.s32.totalorder %s25, 1
      %s386 = scalar_select %p385, %s25, 1
      %s387 = scalar_lea.vmem %s5, %s386
      %p388 = pneg %p169
      %p389 = pneg %p166
      %p390 = scmp.lt.s32.totalorder %s25, 1
      %s391 = scalar_select %p390, %s25, 1
      %s392 = smul.addr %s391, 16
      %s393 = smul.addr %s392, 4
      %s394 = scalar_lea.vmem %s6, %s393
      %p395 = pneg %p195
      %p396 = pneg %p192
      %p397 = scmp.lt.s32.totalorder %s25, 1
      %s398 = scalar_select %p397, %s25, 1
      %s399 = smul.addr %s398, 16
      %s400 = smul.addr %s399, 4
      %s401 = scalar_lea.vmem %s7, %s400
      %p402 = pneg %p221
      %p403 = pneg %p218
      %s404 = smul.u32 8, %s26
      %p405 = scmp.lt.s32.totalorder %s25, 1
      %s406 = scalar_select %p405, %s25, 1
      %p407 = scmp.lt.s32.totalorder %s404, 7
      %s408 = scalar_select %p407, %s404, 7
      %s409 = smul.addr %s406, 8
      %s410 = sadd.s32 %s408, %s409
      %s411 = smul.addr %s410, 4
      %s412 = scalar_lea.vmem %s8, %s411
      %p413 = pneg %p249
      %p414 = pneg %p246
      %p415 = pneg %p277
      %p416 = pneg %p274
      %s417 = smul.u32 8, %s26
      %p418 = scmp.lt.s32.totalorder %s25, 1
      %s419 = scalar_select %p418, %s25, 1
      %p420 = scmp.lt.s32.totalorder %s417, 7
      %s421 = scalar_select %p420, %s417, 7
      %s422 = smul.addr %s421, 4
      %s423 = smul.addr %s419, 32
      %s424 = sadd.s32 %s422, %s423
      %s425 = smul.addr %s424, 8
      %s426 = scalar_lea.vmem %s9, %s425
      %s427 = smul.u32 8, %s26
      %p428 = scmp.lt.s32.totalorder %s427, 7
      %s429 = scalar_select %p428, %s427, 7
      %s430 = smul.addr %s429, 8
      %s431 = scalar_lea.vmem %s1, %s430
      %s432 = smul.u32 8, %s26
      %s433 = smul.u32 8, %s26
      %p434 = scmp.lt.s32.totalorder %s433, 7
      %s435 = scalar_select %p434, %s433, 7
      %s436 = smul.addr %s435, 8
      %s437 = scalar_lea.vmem %s2, %s436
      %s438 = smul.u32 8, %s26
      %p439 = scmp.lt.s32.totalorder %s25, 1
      %s440 = scalar_select %p439, %s25, 1
      %s441 = scalar_lea.vmem %s5, %s440
      %p442 = scmp.lt.s32.totalorder %s25, 1
      %s443 = scalar_select %p442, %s25, 1
      %s444 = smul.addr %s443, 16
      %s445 = smul.addr %s444, 4
      %s446 = scalar_lea.vmem %s6, %s445
      %p447 = scmp.lt.s32.totalorder %s25, 1
      %s448 = scalar_select %p447, %s25, 1
      %s449 = smul.addr %s448, 16
      %s450 = smul.addr %s449, 4
      %s451 = scalar_lea.vmem %s7, %s450
      %s452 = smul.u32 8, %s26
      %p453 = scmp.lt.s32.totalorder %s25, 1
      %s454 = scalar_select %p453, %s25, 1
      %p455 = scmp.lt.s32.totalorder %s452, 7
      %s456 = scalar_select %p455, %s452, 7
      %s457 = smul.addr %s454, 8
      %s458 = sadd.s32 %s456, %s457
      %s459 = smul.addr %s458, 4
      %s460 = scalar_lea.vmem %s8, %s459
      %s461 = smul.u32 8, %s26
      %s462 = smul.u32 8, %s26
      %p463 = scmp.lt.s32.totalorder %s25, 1
      %s464 = scalar_select %p463, %s25, 1
      %p465 = scmp.lt.s32.totalorder %s462, 7
      %s466 = scalar_select %p465, %s462, 7
      %s467 = smul.addr %s466, 4
      %s468 = smul.addr %s464, 32
      %s469 = sadd.s32 %s467, %s468
      %s470 = smul.addr %s469, 8
      %s471 = scalar_lea.vmem %s9, %s470
      %s472 = smul.u32 8, %s26
      %v474 = vld [vmem:[%s446] sm:$0xf]
      %v475 = vld [vmem:[%s446 + $0x4] sm:$0xf]
      %v476 = vld [vmem:[%s446 + $0x8] sm:$0xf]
      %v477 = vld [vmem:[%s446 + $0xc] sm:$0xf]
      %v478 = vld [vmem:[%s446 + $0x10] sm:$0xf]
      %v479 = vld [vmem:[%s446 + $0x14] sm:$0xf]
      %v480 = vld [vmem:[%s446 + $0x18] sm:$0xf]
      %v481 = vld [vmem:[%s446 + $0x1c] sm:$0xf]
      %v482 = vld [vmem:[%s446 + $0x20] sm:$0xf]
      %v483 = vld [vmem:[%s446 + $0x24] sm:$0xf]
      %v484 = vld [vmem:[%s446 + $0x28] sm:$0xf]
      %v485 = vld [vmem:[%s446 + $0x2c] sm:$0xf]
      %v486 = vld [vmem:[%s446 + $0x30] sm:$0xf]
      %v487 = vld [vmem:[%s446 + $0x34] sm:$0xf]
      %v488 = vld [vmem:[%s446 + $0x38] sm:$0xf]
      %v489 = vld [vmem:[%s446 + $0x3c] sm:$0xf]
      %v490 = vld [vmem:[%s451] sm:$0xf]
      %v491 = vld [vmem:[%s451 + $0x4] sm:$0xf]
      %v492 = vld [vmem:[%s451 + $0x8] sm:$0xf]
      %v493 = vld [vmem:[%s451 + $0xc] sm:$0xf]
      %v494 = vld [vmem:[%s451 + $0x10] sm:$0xf]
      %v495 = vld [vmem:[%s451 + $0x14] sm:$0xf]
      %v496 = vld [vmem:[%s451 + $0x18] sm:$0xf]
      %v497 = vld [vmem:[%s451 + $0x1c] sm:$0xf]
      %v498 = vld [vmem:[%s451 + $0x20] sm:$0xf]
      %v499 = vld [vmem:[%s451 + $0x24] sm:$0xf]
      %v500 = vld [vmem:[%s451 + $0x28] sm:$0xf]
      %v501 = vld [vmem:[%s451 + $0x2c] sm:$0xf]
      %v502 = vld [vmem:[%s451 + $0x30] sm:$0xf]
      %v503 = vld [vmem:[%s451 + $0x34] sm:$0xf]
      %v504 = vld [vmem:[%s451 + $0x38] sm:$0xf]
      %v505 = vld [vmem:[%s451 + $0x3c] sm:$0xf]
      %v506 = vld [vmem:[%s460] sm:$0xf]
      %v507 = vld [vmem:[%s460 + $0x4] sm:$0xf]
      %v508 = vld [vmem:[%s460 + $0x8] sm:$0xf]
      %v509 = vld [vmem:[%s460 + $0xc] sm:$0xf]
      %v510 = vld [vmem:[%s460 + $0x10] sm:$0xf]
      %v511 = vld [vmem:[%s460 + $0x14] sm:$0xf]
      %v512 = vld [vmem:[%s460 + $0x18] sm:$0xf]
      %v513 = vld [vmem:[%s460 + $0x1c] sm:$0xf]
      %v514 = vld [vmem:[%s431] sm:$0xff]
      %v515 = vld [vmem:[%s431 + $0x8] sm:$0xff]
      %v516 = vld [vmem:[%s431 + $0x10] sm:$0xff]
      %v517 = vld [vmem:[%s431 + $0x18] sm:$0xff]
      %v518 = vld [vmem:[%s431 + $0x20] sm:$0xff]
      %v519 = vld [vmem:[%s431 + $0x28] sm:$0xff]
      %v520 = vld [vmem:[%s431 + $0x30] sm:$0xff]
      %v521 = vld [vmem:[%s431 + $0x38] sm:$0xff]
      %v522 = vld [vmem:[%s437] sm:$0xff]
      %v523 = vld [vmem:[%s437 + $0x8] sm:$0xff]
      %v524 = vld [vmem:[%s437 + $0x10] sm:$0xff]
      %v525 = vld [vmem:[%s437 + $0x18] sm:$0xff]
      %v526 = vld [vmem:[%s437 + $0x20] sm:$0xff]
      %v527 = vld [vmem:[%s437 + $0x28] sm:$0xff]
      %v528 = vld [vmem:[%s437 + $0x30] sm:$0xff]
      %v529 = vld [vmem:[%s437 + $0x38] sm:$0xff]
      %v530 = vld [vmem:[%s3] sm:$0x1]
      %v531 = vld [vmem:[%s4] sm:$0x1]
      %v532 = vld [vmem:[%s441] sm:$0x1]
      %v541 = vunpack.c.l.b16 %v506
      %v542 = vunpack.c.l.b16 %v507
      %v543 = vunpack.c.l.b16 %v508
      %v544 = vunpack.c.l.b16 %v509
      %v545 = vunpack.c.l.b16 %v510
      %v546 = vunpack.c.l.b16 %v511
      %v547 = vunpack.c.l.b16 %v512
      %v548 = vunpack.c.l.b16 %v513
      %v549 = vpack.c.b16 %v542, %v541
      %v550 = vpack.c.b16 %v544, %v543
      %v551 = vpack.c.b16 %v546, %v545
      %v552 = vpack.c.b16 %v548, %v547
      %v573 = vunpack.c.l.b16 %v490
      %v574 = vunpack.c.l.b16 %v491
      %v575 = vunpack.c.l.b16 %v492
      %v576 = vunpack.c.l.b16 %v493
      %v577 = vunpack.c.l.b16 %v494
      %v578 = vunpack.c.l.b16 %v495
      %v579 = vunpack.c.l.b16 %v496
      %v580 = vunpack.c.l.b16 %v497
      %v581 = vunpack.c.l.b16 %v498
      %v582 = vunpack.c.l.b16 %v499
      %v583 = vunpack.c.l.b16 %v500
      %v584 = vunpack.c.l.b16 %v501
      %v585 = vunpack.c.l.b16 %v502
      %v586 = vunpack.c.l.b16 %v503
      %v587 = vunpack.c.l.b16 %v504
      %v588 = vunpack.c.l.b16 %v505
      %v589 = vpack.c.b16 %v574, %v573
      %v590 = vpack.c.b16 %v576, %v575
      %v591 = vpack.c.b16 %v578, %v577
      %v592 = vpack.c.b16 %v580, %v579
      %v593 = vpack.c.b16 %v582, %v581
      %v594 = vpack.c.b16 %v584, %v583
      %v595 = vpack.c.b16 %v586, %v585
      %v596 = vpack.c.b16 %v588, %v587
      %605 = vmatprep.subr.bf16.mxu0 0
      %606 = vmatpush1.bf16.xpose.msra.mxu0 %v589
      %607 = vmatprep.subr.bf16.mxu0 0
      %608 = vmatpush1.bf16.xpose.msra.mxu0 %v590
      %609 = vmatprep.subr.bf16.mxu0 0
      %610 = vmatpush1.bf16.xpose.msra.mxu0 %v591
      %611 = vmatprep.subr.bf16.mxu0 0
      %612 = vmatpush1.bf16.xpose.msra.mxu0 %v592
      %613 = vmatprep.subr.bf16.mxu0 0
      %614 = vmatpush1.bf16.xpose.msra.mxu0 %v593
      %615 = vmatprep.subr.bf16.mxu0 0
      %616 = vmatpush1.bf16.xpose.msra.mxu0 %v594
      %617 = vmatprep.subr.bf16.mxu0 0
      %618 = vmatpush1.bf16.xpose.msra.mxu0 %v595
      %619 = vmatprep.subr.bf16.mxu0 0
      %620 = vmatpush1.bf16.xpose.msra.mxu0 %v596
      %621 = vmatprep.subr.bf16.mxu0 0
      %622 = vmatpush1.bf16.xpose.msra.mxu0 0
      %623 = vmatprep.subr.bf16.mxu0 0
      %624 = vmatpush1.bf16.xpose.msra.mxu0 0
      %625 = vmatprep.subr.bf16.mxu0 0
      %626 = vmatpush1.bf16.xpose.msra.mxu0 0
      %627 = vmatprep.subr.bf16.mxu0 0
      %628 = vmatpush1.bf16.xpose.msra.mxu0 0
      %629 = vmatprep.subr.bf16.mxu0 0
      %630 = vmatpush1.bf16.xpose.msra.mxu0 0
      %631 = vmatprep.subr.bf16.mxu0 0
      %632 = vmatpush1.bf16.xpose.msra.mxu0 0
      %633 = vmatprep.subr.bf16.mxu0 0
      %634 = vmatpush1.bf16.xpose.msra.mxu0 0
      %635 = vmatprep.subr.bf16.mxu0 0
      %636 = vmatpush1.bf16.xpose.msra.mxu0 0
      %637 = vmatprep.mubr.bf16.mxu0 0
      %638 = vmatmul.mubr.bf16.gmra.mrb[0].mxu0 %v549
      %v639 = vpop.f32.mrb[0].mxu0
      %v640 = vadd.f32 0.0, %v639
      %v641 = vpop.f32.mrb[0].mxu0
      %v642 = vpop.f32.mrb[0].mxu0
      %v643 = vadd.f32 0.0, %v642
      %v644 = vpop.f32.mrb[0].mxu0
      %645 = vmatprep.mubr.bf16.mxu0 0
      %646 = vmatmul.mubr.bf16.gmra.mrb[0].mxu0 %v550
      %v647 = vpop.f32.mrb[0].mxu0
      %v648 = vadd.f32 0.0, %v647
      %v649 = vpop.f32.mrb[0].mxu0
      %v650 = vpop.f32.mrb[0].mxu0
      %v651 = vadd.f32 0.0, %v650
      %v652 = vpop.f32.mrb[0].mxu0
      %653 = vmatprep.mubr.bf16.mxu0 0
      %654 = vmatmul.mubr.bf16.gmra.mrb[0].mxu0 %v551
      %v655 = vpop.f32.mrb[0].mxu0
      %v656 = vadd.f32 0.0, %v655
      %v657 = vpop.f32.mrb[0].mxu0
      %v658 = vpop.f32.mrb[0].mxu0
      %v659 = vadd.f32 0.0, %v658
      %v660 = vpop.f32.mrb[0].mxu0
      %661 = vmatprep.mubr.bf16.mxu0 0
      %662 = vmatmul.mubr.bf16.gmra.mrb[0].mxu0 %v552
      %v663 = vpop.f32.mrb[0].mxu0
      %v664 = vadd.f32 0.0, %v663
      %v665 = vpop.f32.mrb[0].mxu0
      %v666 = vpop.f32.mrb[0].mxu0
      %v667 = vadd.f32 0.0, %v666
      %v668 = vpop.f32.mrb[0].mxu0
      %669 = vdwg.mxu0
      %v670 = vunpack.c.l.bf16 %v506
      %v671 = vunpack.c.l.bf16 %v507
      %v672 = vunpack.c.l.bf16 %v508
      %v673 = vunpack.c.l.bf16 %v509
      %v674 = vunpack.c.l.bf16 %v510
      %v675 = vunpack.c.l.bf16 %v511
      %v676 = vunpack.c.l.bf16 %v512
      %v677 = vunpack.c.l.bf16 %v513
      %v678 = vmul.f32 %v670, %v670
      %v679 = vmul.f32 %v671, %v671
      %v680 = vmul.f32 %v672, %v672
      %v681 = vmul.f32 %v673, %v673
      %v682 = vmul.f32 %v674, %v674
      %v683 = vmul.f32 %v675, %v675
      %v684 = vmul.f32 %v676, %v676
      %v685 = vmul.f32 %v677, %v677
      %686 = vadd.xlane.f32.xlu0 %v678
      %v687 = vpop.xlane.xlu0 %686
      %688 = vadd.xlane.f32.xlu0 %v679
      %v689 = vpop.xlane.xlu0 %688
      %690 = vadd.xlane.f32.xlu0 %v680
      %v691 = vpop.xlane.xlu0 %690
      %692 = vadd.xlane.f32.xlu0 %v681
      %v693 = vpop.xlane.xlu0 %692
      %694 = vadd.xlane.f32.xlu0 %v682
      %v695 = vpop.xlane.xlu0 %694
      %696 = vadd.xlane.f32.xlu0 %v683
      %v697 = vpop.xlane.xlu0 %696
      %698 = vadd.xlane.f32.xlu0 %v684
      %v699 = vpop.xlane.xlu0 %698
      %700 = vadd.xlane.f32.xlu0 %v685
      %v701 = vpop.xlane.xlu0 %700
      %s702 = sld [smem:[#allocation2]]
      %s703 = ssub.f32 0.0, %s702
      %v704 = vstv %s703
      %v705 = vmul.f32 %v704, 1.442695
      %v706 = vpow.pop %v705
      %s707 = vtos %v706
      %v708 = vmul.f32 %v640, 2.0
      %v709 = vmul.f32 %v643, 2.0
      %v710 = vmul.f32 %v648, 2.0
      %v711 = vmul.f32 %v651, 2.0
      %v712 = vmul.f32 %v656, 2.0
      %v713 = vmul.f32 %v659, 2.0
      %v714 = vmul.f32 %v664, 2.0
      %v715 = vmul.f32 %v667, 2.0
      %v717 = vlaneseq
      %v718 = vshrl.u32 %v717, 7
      %v719 = vsub.s32 0, %v718
      %v720 = vrot.slane %v532, %v719
      %v722 = vsub.f32 %v708, %v720
      %v723 = vsub.f32 %v709, %v720
      %v724 = vsub.f32 %v710, %v720
      %v725 = vsub.f32 %v711, %v720
      %v726 = vsub.f32 %v712, %v720
      %v727 = vsub.f32 %v713, %v720
      %v728 = vsub.f32 %v714, %v720
      %v729 = vsub.f32 %v715, %v720
      %v730 = vsub.f32 %v722, %v687
      %v731 = vsub.f32 %v723, %v689
      %v732 = vsub.f32 %v724, %v691
      %v733 = vsub.f32 %v725, %v693
      %v734 = vsub.f32 %v726, %v695
      %v735 = vsub.f32 %v727, %v697
      %v736 = vsub.f32 %v728, %v699
      %v737 = vsub.f32 %v729, %v701
      %v738 = vstv %s707
      %v739 = vmul.f32 %v730, %v738
      %v740 = vmul.f32 %v731, %v738
      %v741 = vmul.f32 %v732, %v738
      %v742 = vmul.f32 %v733, %v738
      %v743 = vmul.f32 %v734, %v738
      %v744 = vmul.f32 %v735, %v738
      %v745 = vmul.f32 %v736, %v738
      %v746 = vmul.f32 %v737, %v738
      %v747 = vlaneseq
      %v748 = vshrl.u32 %v747, 7
      %v749 = vsub.s32 0, %v748
      %v750 = vrot.slane %v530, %v749
      %751 = vset.pattern.permute.xlu0 0
      %752 = vperm.xlu0 %751, %v514
      %v753 = vpop.permute.xlu0 %752
      %754 = vset.pattern.permute.xlu0 0
      %755 = vperm.xlu0 %754, %v515
      %v756 = vpop.permute.xlu0 %755
      %757 = vset.pattern.permute.xlu0 0
      %758 = vperm.xlu0 %757, %v516
      %v759 = vpop.permute.xlu0 %758
      %760 = vset.pattern.permute.xlu0 0
      %761 = vperm.xlu0 %760, %v517
      %v762 = vpop.permute.xlu0 %761
      %763 = vset.pattern.permute.xlu0 0
      %764 = vperm.xlu0 %763, %v518
      %v765 = vpop.permute.xlu0 %764
      %766 = vset.pattern.permute.xlu0 0
      %767 = vperm.xlu0 %766, %v519
      %v768 = vpop.permute.xlu0 %767
      %769 = vset.pattern.permute.xlu0 0
      %770 = vperm.xlu0 %769, %v520
      %v771 = vpop.permute.xlu0 %770
      %772 = vset.pattern.permute.xlu0 0
      %773 = vperm.xlu0 %772, %v521
      %v774 = vpop.permute.xlu0 %773
      %vm775 = vcmp.ge.s32.totalorder %v750, %v753
      %vm776 = vcmp.ge.s32.totalorder %v750, %v756
      %vm777 = vcmp.ge.s32.totalorder %v750, %v759
      %vm778 = vcmp.ge.s32.totalorder %v750, %v762
      %vm779 = vcmp.ge.s32.totalorder %v750, %v765
      %vm780 = vcmp.ge.s32.totalorder %v750, %v768
      %vm781 = vcmp.ge.s32.totalorder %v750, %v771
      %vm782 = vcmp.ge.s32.totalorder %v750, %v774
      %v783 = vadd.s32 %v514, 3
      %v784 = vadd.s32 %v515, 3
      %v785 = vadd.s32 %v516, 3
      %v786 = vadd.s32 %v517, 3
      %v787 = vadd.s32 %v518, 3
      %v788 = vadd.s32 %v519, 3
      %v789 = vadd.s32 %v520, 3
      %v790 = vadd.s32 %v521, 3
      %791 = vset.pattern.permute.xlu0 0
      %792 = vperm.xlu0 %791, %v783
      %v793 = vpop.permute.xlu0 %792
      %794 = vset.pattern.permute.xlu0 0
      %795 = vperm.xlu0 %794, %v784
      %v796 = vpop.permute.xlu0 %795
      %797 = vset.pattern.permute.xlu0 0
      %798 = vperm.xlu0 %797, %v785
      %v799 = vpop.permute.xlu0 %798
      %800 = vset.pattern.permute.xlu0 0
      %801 = vperm.xlu0 %800, %v786
      %v802 = vpop.permute.xlu0 %801
      %803 = vset.pattern.permute.xlu0 0
      %804 = vperm.xlu0 %803, %v787
      %v805 = vpop.permute.xlu0 %804
      %806 = vset.pattern.permute.xlu0 0
      %807 = vperm.xlu0 %806, %v788
      %v808 = vpop.permute.xlu0 %807
      %809 = vset.pattern.permute.xlu0 0
      %810 = vperm.xlu0 %809, %v789
      %v811 = vpop.permute.xlu0 %810
      %812 = vset.pattern.permute.xlu0 0
      %813 = vperm.xlu0 %812, %v790
      %v814 = vpop.permute.xlu0 %813
      %vm815 = vcmp.lt.s32.totalorder %v750, %v793
      %vm816 = vcmp.lt.s32.totalorder %v750, %v796
      %vm817 = vcmp.lt.s32.totalorder %v750, %v799
      %vm818 = vcmp.lt.s32.totalorder %v750, %v802
      %vm819 = vcmp.lt.s32.totalorder %v750, %v805
      %vm820 = vcmp.lt.s32.totalorder %v750, %v808
      %vm821 = vcmp.lt.s32.totalorder %v750, %v811
      %vm822 = vcmp.lt.s32.totalorder %v750, %v814
      %vm823 = vmand %vm775, %vm815
      %vm824 = vmand %vm776, %vm816
      %vm825 = vmand %vm777, %vm817
      %vm826 = vmand %vm778, %vm818
      %vm827 = vmand %vm779, %vm819
      %vm828 = vmand %vm780, %vm820
      %vm829 = vmand %vm781, %vm821
      %vm830 = vmand %vm782, %vm822
      %v831 = vlaneseq
      %v832 = vshrl.u32 %v831, 7
      %v833 = vsub.s32 0, %v832
      %v834 = vrot.slane %v531, %v833
      %835 = vset.pattern.permute.xlu0 0
      %836 = vperm.xlu0 %835, %v522
      %v837 = vpop.permute.xlu0 %836
      %838 = vset.pattern.permute.xlu0 0
      %839 = vperm.xlu0 %838, %v523
      %v840 = vpop.permute.xlu0 %839
      %841 = vset.pattern.permute.xlu0 0
      %842 = vperm.xlu0 %841, %v524
      %v843 = vpop.permute.xlu0 %842
      %844 = vset.pattern.permute.xlu0 0
      %845 = vperm.xlu0 %844, %v525
      %v846 = vpop.permute.xlu0 %845
      %847 = vset.pattern.permute.xlu0 0
      %848 = vperm.xlu0 %847, %v526
      %v849 = vpop.permute.xlu0 %848
      %850 = vset.pattern.permute.xlu0 0
      %851 = vperm.xlu0 %850, %v527
      %v852 = vpop.permute.xlu0 %851
      %853 = vset.pattern.permute.xlu0 0
      %854 = vperm.xlu0 %853, %v528
      %v855 = vpop.permute.xlu0 %854
      %856 = vset.pattern.permute.xlu0 0
      %857 = vperm.xlu0 %856, %v529
      %v858 = vpop.permute.xlu0 %857
      %vm859 = vcmp.ge.s32.totalorder %v834, %v837
      %vm860 = vcmp.ge.s32.totalorder %v834, %v840
      %vm861 = vcmp.ge.s32.totalorder %v834, %v843
      %vm862 = vcmp.ge.s32.totalorder %v834, %v846
      %vm863 = vcmp.ge.s32.totalorder %v834, %v849
      %vm864 = vcmp.ge.s32.totalorder %v834, %v852
      %vm865 = vcmp.ge.s32.totalorder %v834, %v855
      %vm866 = vcmp.ge.s32.totalorder %v834, %v858
      %v867 = vadd.s32 %v522, 3
      %v868 = vadd.s32 %v523, 3
      %v869 = vadd.s32 %v524, 3
      %v870 = vadd.s32 %v525, 3
      %v871 = vadd.s32 %v526, 3
      %v872 = vadd.s32 %v527, 3
      %v873 = vadd.s32 %v528, 3
      %v874 = vadd.s32 %v529, 3
      %875 = vset.pattern.permute.xlu0 0
      %876 = vperm.xlu0 %875, %v867
      %v877 = vpop.permute.xlu0 %876
      %878 = vset.pattern.permute.xlu0 0
      %879 = vperm.xlu0 %878, %v868
      %v880 = vpop.permute.xlu0 %879
      %881 = vset.pattern.permute.xlu0 0
      %882 = vperm.xlu0 %881, %v869
      %v883 = vpop.permute.xlu0 %882
      %884 = vset.pattern.permute.xlu0 0
      %885 = vperm.xlu0 %884, %v870
      %v886 = vpop.permute.xlu0 %885
      %887 = vset.pattern.permute.xlu0 0
      %888 = vperm.xlu0 %887, %v871
      %v889 = vpop.permute.xlu0 %888
      %890 = vset.pattern.permute.xlu0 0
      %891 = vperm.xlu0 %890, %v872
      %v892 = vpop.permute.xlu0 %891
      %893 = vset.pattern.permute.xlu0 0
      %894 = vperm.xlu0 %893, %v873
      %v895 = vpop.permute.xlu0 %894
      %896 = vset.pattern.permute.xlu0 0
      %897 = vperm.xlu0 %896, %v874
      %v898 = vpop.permute.xlu0 %897
      %vm899 = vcmp.lt.s32.totalorder %v834, %v877
      %vm900 = vcmp.lt.s32.totalorder %v834, %v880
      %vm901 = vcmp.lt.s32.totalorder %v834, %v883
      %vm902 = vcmp.lt.s32.totalorder %v834, %v886
      %vm903 = vcmp.lt.s32.totalorder %v834, %v889
      %vm904 = vcmp.lt.s32.totalorder %v834, %v892
      %vm905 = vcmp.lt.s32.totalorder %v834, %v895
      %vm906 = vcmp.lt.s32.totalorder %v834, %v898
      %vm907 = vmand %vm859, %vm899
      %vm908 = vmand %vm860, %vm900
      %vm909 = vmand %vm861, %vm901
      %vm910 = vmand %vm862, %vm902
      %vm911 = vmand %vm863, %vm903
      %vm912 = vmand %vm864, %vm904
      %vm913 = vmand %vm865, %vm905
      %vm914 = vmand %vm866, %vm906
      %vm915 = vmand %vm823, %vm907
      %vm916 = vmand %vm824, %vm908
      %vm917 = vmand %vm825, %vm909
      %vm918 = vmand %vm826, %vm910
      %vm919 = vmand %vm827, %vm911
      %vm920 = vmand %vm828, %vm912
      %vm921 = vmand %vm829, %vm913
      %vm922 = vmand %vm830, %vm914
      %v923 = vsel %vm915, %v739, -inf
      %v924 = vsel %vm916, %v740, -inf
      %v925 = vsel %vm917, %v741, -inf
      %v926 = vsel %vm918, %v742, -inf
      %v927 = vsel %vm919, %v743, -inf
      %v928 = vsel %vm920, %v744, -inf
      %v929 = vsel %vm921, %v745, -inf
      %v930 = vsel %vm922, %v746, -inf
      %931 = vmax.xlane.f32.xlu0 %v923
      %v932 = vpop.xlane.xlu0 %931
      %933 = vmax.xlane.f32.xlu0 %v924
      %v934 = vpop.xlane.xlu0 %933
      %935 = vmax.xlane.f32.xlu0 %v925
      %v936 = vpop.xlane.xlu0 %935
      %937 = vmax.xlane.f32.xlu0 %v926
      %v938 = vpop.xlane.xlu0 %937
      %939 = vmax.xlane.f32.xlu0 %v927
      %v940 = vpop.xlane.xlu0 %939
      %941 = vmax.xlane.f32.xlu0 %v928
      %v942 = vpop.xlane.xlu0 %941
      %943 = vmax.xlane.f32.xlu0 %v929
      %v944 = vpop.xlane.xlu0 %943
      %945 = vmax.xlane.f32.xlu0 %v930
      %v946 = vpop.xlane.xlu0 %945
      %v947 = vsub.f32 %v923, %v932
      %v948 = vsub.f32 %v924, %v934
      %v949 = vsub.f32 %v925, %v936
      %v950 = vsub.f32 %v926, %v938
      %v951 = vsub.f32 %v927, %v940
      %v952 = vsub.f32 %v928, %v942
      %v953 = vsub.f32 %v929, %v944
      %v954 = vsub.f32 %v930, %v946
      %v955 = vmul.f32 %v947, 1.442695
      %v956 = vpow.pop %v955
      %v957 = vmul.f32 %v948, 1.442695
      %v958 = vpow.pop %v957
      %v959 = vmul.f32 %v949, 1.442695
      %v960 = vpow.pop %v959
      %v961 = vmul.f32 %v950, 1.442695
      %v962 = vpow.pop %v961
      %v963 = vmul.f32 %v951, 1.442695
      %v964 = vpow.pop %v963
      %v965 = vmul.f32 %v952, 1.442695
      %v966 = vpow.pop %v965
      %v967 = vmul.f32 %v953, 1.442695
      %v968 = vpow.pop %v967
      %v969 = vmul.f32 %v954, 1.442695
      %v970 = vpow.pop %v969
      %971 = vadd.xlane.f32.xlu0 %v956
      %v972 = vpop.xlane.xlu0 %971
      %973 = vadd.xlane.f32.xlu0 %v958
      %v974 = vpop.xlane.xlu0 %973
      %975 = vadd.xlane.f32.xlu0 %v960
      %v976 = vpop.xlane.xlu0 %975
      %977 = vadd.xlane.f32.xlu0 %v962
      %v978 = vpop.xlane.xlu0 %977
      %979 = vadd.xlane.f32.xlu0 %v964
      %v980 = vpop.xlane.xlu0 %979
      %981 = vadd.xlane.f32.xlu0 %v966
      %v982 = vpop.xlane.xlu0 %981
      %983 = vadd.xlane.f32.xlu0 %v968
      %v984 = vpop.xlane.xlu0 %983
      %985 = vadd.xlane.f32.xlu0 %v970
      %v986 = vpop.xlane.xlu0 %985
      %v987 = vrcp.pop %v972
      %v988 = vrcp.pop %v974
      %v989 = vrcp.pop %v976
      %v990 = vrcp.pop %v978
      %v991 = vrcp.pop %v980
      %v992 = vrcp.pop %v982
      %v993 = vrcp.pop %v984
      %v994 = vrcp.pop %v986
      %v995 = vmul.f32 %v956, %v987
      %v996 = vmul.f32 %v958, %v988
      %v997 = vmul.f32 %v960, %v989
      %v998 = vmul.f32 %v962, %v990
      %v999 = vmul.f32 %v964, %v991
      %v1000 = vmul.f32 %v966, %v992
      %v1001 = vmul.f32 %v968, %v993
      %v1002 = vmul.f32 %v970, %v994
      %v1003 = vpack.c.bf16 %v996, %v995
      %v1004 = vpack.c.bf16 %v998, %v997
      %v1005 = vpack.c.bf16 %v1000, %v999
      %v1006 = vpack.c.bf16 %v1002, %v1001
      %v1023 = vunpack.c.l.b16 %v474
      %v1024 = vunpack.c.l.b16 %v475
      %v1025 = vunpack.c.l.b16 %v476
      %v1026 = vunpack.c.l.b16 %v477
      %v1027 = vunpack.c.l.b16 %v478
      %v1028 = vunpack.c.l.b16 %v479
      %v1029 = vunpack.c.l.b16 %v480
      %v1030 = vunpack.c.l.b16 %v481
      %v1031 = vunpack.c.l.b16 %v482
      %v1032 = vunpack.c.l.b16 %v483
      %v1033 = vunpack.c.l.b16 %v484
      %v1034 = vunpack.c.l.b16 %v485
      %v1035 = vunpack.c.l.b16 %v486
      %v1036 = vunpack.c.l.b16 %v487
      %v1037 = vunpack.c.l.b16 %v488
      %v1038 = vunpack.c.l.b16 %v489
      %v1039 = vpack.c.b16 %v1024, %v1023
      %v1040 = vpack.c.b16 %v1026, %v1025
      %v1041 = vpack.c.b16 %v1028, %v1027
      %v1042 = vpack.c.b16 %v1030, %v1029
      %v1043 = vpack.c.b16 %v1032, %v1031
      %v1044 = vpack.c.b16 %v1034, %v1033
      %v1045 = vpack.c.b16 %v1036, %v1035
      %v1046 = vpack.c.b16 %v1038, %v1037
      %1055 = vmatprep.subr.bf16.mxu0 0
      %1056 = vmatpush1.bf16.msra.mxu0 %v1039
      %1057 = vmatprep.subr.bf16.mxu0 0
      %1058 = vmatpush1.bf16.msra.mxu0 %v1040
      %1059 = vmatprep.subr.bf16.mxu0 0
      %1060 = vmatpush1.bf16.msra.mxu0 %v1041
      %1061 = vmatprep.subr.bf16.mxu0 0
      %1062 = vmatpush1.bf16.msra.mxu0 %v1042
      %1063 = vmatprep.subr.bf16.mxu0 0
      %1064 = vmatpush1.bf16.msra.mxu0 %v1043
      %1065 = vmatprep.subr.bf16.mxu0 0
      %1066 = vmatpush1.bf16.msra.mxu0 %v1044
      %1067 = vmatprep.subr.bf16.mxu0 0
      %1068 = vmatpush1.bf16.msra.mxu0 %v1045
      %1069 = vmatprep.subr.bf16.mxu0 0
      %1070 = vmatpush1.bf16.msra.mxu0 %v1046
      %1071 = vmatprep.subr.bf16.mxu0 0
      %1072 = vmatpush1.bf16.msra.mxu0 0
      %1073 = vmatprep.subr.bf16.mxu0 0
      %1074 = vmatpush1.bf16.msra.mxu0 0
      %1075 = vmatprep.subr.bf16.mxu0 0
      %1076 = vmatpush1.bf16.msra.mxu0 0
      %1077 = vmatprep.subr.bf16.mxu0 0
      %1078 = vmatpush1.bf16.msra.mxu0 0
      %1079 = vmatprep.subr.bf16.mxu0 0
      %1080 = vmatpush1.bf16.msra.mxu0 0
      %1081 = vmatprep.subr.bf16.mxu0 0
      %1082 = vmatpush1.bf16.msra.mxu0 0
      %1083 = vmatprep.subr.bf16.mxu0 0
      %1084 = vmatpush1.bf16.msra.mxu0 0
      %1085 = vmatprep.subr.bf16.mxu0 0
      %1086 = vmatpush1.bf16.msra.mxu0 0
      %1087 = vmatprep.mubr.bf16.mxu0 0
      %1088 = vmatmul.mubr.bf16.gmra.mrb[0].mxu0 %v1003
      %v1089 = vpop.f32.mrb[0].mxu0
      %v1090 = vadd.f32 0.0, %v1089
      %v1091 = vpop.f32.mrb[0].mxu0
      %v1092 = vpop.f32.mrb[0].mxu0
      %v1093 = vadd.f32 0.0, %v1092
      %v1094 = vpop.f32.mrb[0].mxu0
      %1095 = vmatprep.mubr.bf16.mxu0 0
      %1096 = vmatmul.mubr.bf16.gmra.mrb[0].mxu0 %v1004
      %v1097 = vpop.f32.mrb[0].mxu0
      %v1098 = vadd.f32 0.0, %v1097
      %v1099 = vpop.f32.mrb[0].mxu0
      %v1100 = vpop.f32.mrb[0].mxu0
      %v1101 = vadd.f32 0.0, %v1100
      %v1102 = vpop.f32.mrb[0].mxu0
      %1103 = vmatprep.mubr.bf16.mxu0 0
      %1104 = vmatmul.mubr.bf16.gmra.mrb[0].mxu0 %v1005
      %v1105 = vpop.f32.mrb[0].mxu0
      %v1106 = vadd.f32 0.0, %v1105
      %v1107 = vpop.f32.mrb[0].mxu0
      %v1108 = vpop.f32.mrb[0].mxu0
      %v1109 = vadd.f32 0.0, %v1108
      %v1110 = vpop.f32.mrb[0].mxu0
      %1111 = vmatprep.mubr.bf16.mxu0 0
      %1112 = vmatmul.mubr.bf16.gmra.mrb[0].mxu0 %v1006
      %v1113 = vpop.f32.mrb[0].mxu0
      %v1114 = vadd.f32 0.0, %v1113
      %v1115 = vpop.f32.mrb[0].mxu0
      %v1116 = vpop.f32.mrb[0].mxu0
      %v1117 = vadd.f32 0.0, %v1116
      %v1118 = vpop.f32.mrb[0].mxu0
      %1119 = vdwg.mxu0
      %1120 = vst [vmem:[%s471] sm:$0xff] %v1090
      %1121 = vst [vmem:[%s471 + $0x20] sm:$0xff] %v1093
      %1122 = vst [vmem:[%s471 + $0x40] sm:$0xff] %v1098
      %1123 = vst [vmem:[%s471 + $0x60] sm:$0xff] %v1101
      %1124 = vst [vmem:[%s471 + $0x80] sm:$0xff] %v1106
      %1125 = vst [vmem:[%s471 + $0xa0] sm:$0xff] %v1109
      %1126 = vst [vmem:[%s471 + $0xc0] sm:$0xff] %v1114
      %1127 = vst [vmem:[%s471 + $0xe0] sm:$0xff] %v1117
      %v1128 = vlog2.pop %v972
      %v1129 = vmul.f32 %v1128, 0.6931472
      %v1130 = vlog2.pop %v974
      %v1131 = vmul.f32 %v1130, 0.6931472
      %v1132 = vlog2.pop %v976
      %v1133 = vmul.f32 %v1132, 0.6931472
      %v1134 = vlog2.pop %v978
      %v1135 = vmul.f32 %v1134, 0.6931472
      %v1136 = vlog2.pop %v980
      %v1137 = vmul.f32 %v1136, 0.6931472
      %v1138 = vlog2.pop %v982
      %v1139 = vmul.f32 %v1138, 0.6931472
      %v1140 = vlog2.pop %v984
      %v1141 = vmul.f32 %v1140, 0.6931472
      %v1142 = vlog2.pop %v986
      %v1143 = vmul.f32 %v1142, 0.6931472
      %v1144 = vsub.f32 %v947, %v1129
      %v1145 = vsub.f32 %v948, %v1131
      %v1146 = vsub.f32 %v949, %v1133
      %v1147 = vsub.f32 %v950, %v1135
      %v1148 = vsub.f32 %v951, %v1137
      %v1149 = vsub.f32 %v952, %v1139
      %v1150 = vsub.f32 %v953, %v1141
      %v1151 = vsub.f32 %v954, %v1143
      %v1152 = vsub.f32 0.0, %v1144
      %v1153 = vsub.f32 0.0, %v1145
      %v1154 = vsub.f32 0.0, %v1146
      %v1155 = vsub.f32 0.0, %v1147
      %v1156 = vsub.f32 0.0, %v1148
      %v1157 = vsub.f32 0.0, %v1149
      %v1158 = vsub.f32 0.0, %v1150
      %v1159 = vsub.f32 0.0, %v1151
      %v1160 = vmul.f32 %v1144, 0.5
      %v1161 = vmul.f32 %v1145, 0.5
      %v1162 = vmul.f32 %v1146, 0.5
      %v1163 = vmul.f32 %v1147, 0.5
      %v1164 = vmul.f32 %v1148, 0.5
      %v1165 = vmul.f32 %v1149, 0.5
      %v1166 = vmul.f32 %v1150, 0.5
      %v1167 = vmul.f32 %v1151, 0.5
      %v1168 = vmul.f32 %v1144, 0.33333334
      %v1169 = vmul.f32 %v1145, 0.33333334
      %v1170 = vmul.f32 %v1146, 0.33333334
      %v1171 = vmul.f32 %v1147, 0.33333334
      %v1172 = vmul.f32 %v1148, 0.33333334
      %v1173 = vmul.f32 %v1149, 0.33333334
      %v1174 = vmul.f32 %v1150, 0.33333334
      %v1175 = vmul.f32 %v1151, 0.33333334
      %v1176 = vadd.f32 %v1168, 1.0
      %v1177 = vadd.f32 %v1169, 1.0
      %v1178 = vadd.f32 %v1170, 1.0
      %v1179 = vadd.f32 %v1171, 1.0
      %v1180 = vadd.f32 %v1172, 1.0
      %v1181 = vadd.f32 %v1173, 1.0
      %v1182 = vadd.f32 %v1174, 1.0
      %v1183 = vadd.f32 %v1175, 1.0
      %v1184 = vmul.f32 %v1160, %v1176
      %v1185 = vmul.f32 %v1161, %v1177
      %v1186 = vmul.f32 %v1162, %v1178
      %v1187 = vmul.f32 %v1163, %v1179
      %v1188 = vmul.f32 %v1164, %v1180
      %v1189 = vmul.f32 %v1165, %v1181
      %v1190 = vmul.f32 %v1166, %v1182
      %v1191 = vmul.f32 %v1167, %v1183
      %v1192 = vadd.f32 %v1184, 1.0
      %v1193 = vadd.f32 %v1185, 1.0
      %v1194 = vadd.f32 %v1186, 1.0
      %v1195 = vadd.f32 %v1187, 1.0
      %v1196 = vadd.f32 %v1188, 1.0
      %v1197 = vadd.f32 %v1189, 1.0
      %v1198 = vadd.f32 %v1190, 1.0
      %v1199 = vadd.f32 %v1191, 1.0
      %v1200 = vmul.f32 %v1152, %v1192
      %v1201 = vmul.f32 %v1153, %v1193
      %v1202 = vmul.f32 %v1154, %v1194
      %v1203 = vmul.f32 %v1155, %v1195
      %v1204 = vmul.f32 %v1156, %v1196
      %v1205 = vmul.f32 %v1157, %v1197
      %v1206 = vmul.f32 %v1158, %v1198
      %v1207 = vmul.f32 %v1159, %v1199
      %vm1208 = vcmp.gt.f32.partialorder %v1144, -0.05
      %vm1209 = vcmp.gt.f32.partialorder %v1145, -0.05
      %vm1210 = vcmp.gt.f32.partialorder %v1146, -0.05
      %vm1211 = vcmp.gt.f32.partialorder %v1147, -0.05
      %vm1212 = vcmp.gt.f32.partialorder %v1148, -0.05
      %vm1213 = vcmp.gt.f32.partialorder %v1149, -0.05
      %vm1214 = vcmp.gt.f32.partialorder %v1150, -0.05
      %vm1215 = vcmp.gt.f32.partialorder %v1151, -0.05
      %v1216 = vsub.f32 1.0, %v995
      %v1217 = vsub.f32 1.0, %v996
      %v1218 = vsub.f32 1.0, %v997
      %v1219 = vsub.f32 1.0, %v998
      %v1220 = vsub.f32 1.0, %v999
      %v1221 = vsub.f32 1.0, %v1000
      %v1222 = vsub.f32 1.0, %v1001
      %v1223 = vsub.f32 1.0, %v1002
      %v1224 = vsel %vm1208, %v1200, %v1216
      %v1225 = vsel %vm1209, %v1201, %v1217
      %v1226 = vsel %vm1210, %v1202, %v1218
      %v1227 = vsel %vm1211, %v1203, %v1219
      %v1228 = vsel %vm1212, %v1204, %v1220
      %v1229 = vsel %vm1213, %v1205, %v1221
      %v1230 = vsel %vm1214, %v1206, %v1222
      %v1231 = vsel %vm1215, %v1207, %v1223
      %v1232 = vlog2.pop %v1224
      %v1233 = vmul.f32 %v1232, 0.6931472
      %v1234 = vlog2.pop %v1225
      %v1235 = vmul.f32 %v1234, 0.6931472
      %v1236 = vlog2.pop %v1226
      %v1237 = vmul.f32 %v1236, 0.6931472
      %v1238 = vlog2.pop %v1227
      %v1239 = vmul.f32 %v1238, 0.6931472
      %v1240 = vlog2.pop %v1228
      %v1241 = vmul.f32 %v1240, 0.6931472
      %v1242 = vlog2.pop %v1229
      %v1243 = vmul.f32 %v1242, 0.6931472
      %v1244 = vlog2.pop %v1230
      %v1245 = vmul.f32 %v1244, 0.6931472
      %v1246 = vlog2.pop %v1231
      %v1247 = vmul.f32 %v1246, 0.6931472
      %v1248 = vadd.f32 %v923, %v1233
      %v1249 = vadd.f32 %v924, %v1235
      %v1250 = vadd.f32 %v925, %v1237
      %v1251 = vadd.f32 %v926, %v1239
      %v1252 = vadd.f32 %v927, %v1241
      %v1253 = vadd.f32 %v928, %v1243
      %v1254 = vadd.f32 %v929, %v1245
      %v1255 = vadd.f32 %v930, %v1247
      %1256 = vmax.xlane.f32.xlu0 %v1248
      %v1257 = vpop.xlane.xlu0 %1256
      %1258 = vmax.xlane.f32.xlu0 %v1249
      %v1259 = vpop.xlane.xlu0 %1258
      %1260 = vmax.xlane.f32.xlu0 %v1250
      %v1261 = vpop.xlane.xlu0 %1260
      %1262 = vmax.xlane.f32.xlu0 %v1251
      %v1263 = vpop.xlane.xlu0 %1262
      %1264 = vmax.xlane.f32.xlu0 %v1252
      %v1265 = vpop.xlane.xlu0 %1264
      %1266 = vmax.xlane.f32.xlu0 %v1253
      %v1267 = vpop.xlane.xlu0 %1266
      %1268 = vmax.xlane.f32.xlu0 %v1254
      %v1269 = vpop.xlane.xlu0 %1268
      %1270 = vmax.xlane.f32.xlu0 %v1255
      %v1271 = vpop.xlane.xlu0 %1270
      %v1272 = vsub.f32 %v1248, %v1257
      %v1273 = vsub.f32 %v1249, %v1259
      %v1274 = vsub.f32 %v1250, %v1261
      %v1275 = vsub.f32 %v1251, %v1263
      %v1276 = vsub.f32 %v1252, %v1265
      %v1277 = vsub.f32 %v1253, %v1267
      %v1278 = vsub.f32 %v1254, %v1269
      %v1279 = vsub.f32 %v1255, %v1271
      %v1280 = vmul.f32 %v1272, 1.442695
      %v1281 = vpow.pop %v1280
      %v1282 = vmul.f32 %v1273, 1.442695
      %v1283 = vpow.pop %v1282
      %v1284 = vmul.f32 %v1274, 1.442695
      %v1285 = vpow.pop %v1284
      %v1286 = vmul.f32 %v1275, 1.442695
      %v1287 = vpow.pop %v1286
      %v1288 = vmul.f32 %v1276, 1.442695
      %v1289 = vpow.pop %v1288
      %v1290 = vmul.f32 %v1277, 1.442695
      %v1291 = vpow.pop %v1290
      %v1292 = vmul.f32 %v1278, 1.442695
      %v1293 = vpow.pop %v1292
      %v1294 = vmul.f32 %v1279, 1.442695
      %v1295 = vpow.pop %v1294
      %1296 = vadd.xlane.f32.xlu0 %v1281
      %v1297 = vpop.xlane.xlu0 %1296
      %1298 = vadd.xlane.f32.xlu0 %v1283
      %v1299 = vpop.xlane.xlu0 %1298
      %1300 = vadd.xlane.f32.xlu0 %v1285
      %v1301 = vpop.xlane.xlu0 %1300
      %1302 = vadd.xlane.f32.xlu0 %v1287
      %v1303 = vpop.xlane.xlu0 %1302
      %1304 = vadd.xlane.f32.xlu0 %v1289
      %v1305 = vpop.xlane.xlu0 %1304
      %1306 = vadd.xlane.f32.xlu0 %v1291
      %v1307 = vpop.xlane.xlu0 %1306
      %1308 = vadd.xlane.f32.xlu0 %v1293
      %v1309 = vpop.xlane.xlu0 %1308
      %1310 = vadd.xlane.f32.xlu0 %v1295
      %v1311 = vpop.xlane.xlu0 %1310
      %v1312 = vrcp.pop %v1297
      %v1313 = vrcp.pop %v1299
      %v1314 = vrcp.pop %v1301
      %v1315 = vrcp.pop %v1303
      %v1316 = vrcp.pop %v1305
      %v1317 = vrcp.pop %v1307
      %v1318 = vrcp.pop %v1309
      %v1319 = vrcp.pop %v1311
      %v1320 = vmul.f32 %v1281, %v1312
      %v1321 = vmul.f32 %v1283, %v1313
      %v1322 = vmul.f32 %v1285, %v1314
      %v1323 = vmul.f32 %v1287, %v1315
      %v1324 = vmul.f32 %v1289, %v1316
      %v1325 = vmul.f32 %v1291, %v1317
      %v1326 = vmul.f32 %v1293, %v1318
      %v1327 = vmul.f32 %v1295, %v1319
      %v1328 = vpack.c.bf16 %v1321, %v1320
      %v1329 = vpack.c.bf16 %v1323, %v1322
      %v1330 = vpack.c.bf16 %v1325, %v1324
      %v1331 = vpack.c.bf16 %v1327, %v1326
      %1332 = vmatprep.subr.bf16.mxu0 0
      %1333 = vmatpush1.bf16.msra.mxu0 %v1039
      %1334 = vmatprep.subr.bf16.mxu0 0
      %1335 = vmatpush1.bf16.msra.mxu0 %v1040
      %1336 = vmatprep.subr.bf16.mxu0 0
      %1337 = vmatpush1.bf16.msra.mxu0 %v1041
      %1338 = vmatprep.subr.bf16.mxu0 0
      %1339 = vmatpush1.bf16.msra.mxu0 %v1042
      %1340 = vmatprep.subr.bf16.mxu0 0
      %1341 = vmatpush1.bf16.msra.mxu0 %v1043
      %1342 = vmatprep.subr.bf16.mxu0 0
      %1343 = vmatpush1.bf16.msra.mxu0 %v1044
      %1344 = vmatprep.subr.bf16.mxu0 0
      %1345 = vmatpush1.bf16.msra.mxu0 %v1045
      %1346 = vmatprep.subr.bf16.mxu0 0
      %1347 = vmatpush1.bf16.msra.mxu0 %v1046
      %1348 = vmatprep.subr.bf16.mxu0 0
      %1349 = vmatpush1.bf16.msra.mxu0 0
      %1350 = vmatprep.subr.bf16.mxu0 0
      %1351 = vmatpush1.bf16.msra.mxu0 0
      %1352 = vmatprep.subr.bf16.mxu0 0
      %1353 = vmatpush1.bf16.msra.mxu0 0
      %1354 = vmatprep.subr.bf16.mxu0 0
      %1355 = vmatpush1.bf16.msra.mxu0 0
      %1356 = vmatprep.subr.bf16.mxu0 0
      %1357 = vmatpush1.bf16.msra.mxu0 0
      %1358 = vmatprep.subr.bf16.mxu0 0
      %1359 = vmatpush1.bf16.msra.mxu0 0
      %1360 = vmatprep.subr.bf16.mxu0 0
      %1361 = vmatpush1.bf16.msra.mxu0 0
      %1362 = vmatprep.subr.bf16.mxu0 0
      %1363 = vmatpush1.bf16.msra.mxu0 0
      %1364 = vmatprep.mubr.bf16.mxu0 0
      %1365 = vmatmul.mubr.bf16.gmra.mrb[0].mxu0 %v1328
      %v1366 = vpop.f32.mrb[0].mxu0
      %v1367 = vadd.f32 0.0, %v1366
      %v1368 = vpop.f32.mrb[0].mxu0
      %v1369 = vpop.f32.mrb[0].mxu0
      %v1370 = vadd.f32 0.0, %v1369
      %v1371 = vpop.f32.mrb[0].mxu0
      %1372 = vmatprep.mubr.bf16.mxu0 0
      %1373 = vmatmul.mubr.bf16.gmra.mrb[0].mxu0 %v1329
      %v1374 = vpop.f32.mrb[0].mxu0
      %v1375 = vadd.f32 0.0, %v1374
      %v1376 = vpop.f32.mrb[0].mxu0
      %v1377 = vpop.f32.mrb[0].mxu0
      %v1378 = vadd.f32 0.0, %v1377
      %v1379 = vpop.f32.mrb[0].mxu0
      %1380 = vmatprep.mubr.bf16.mxu0 0
      %1381 = vmatmul.mubr.bf16.gmra.mrb[0].mxu0 %v1330
      %v1382 = vpop.f32.mrb[0].mxu0
      %v1383 = vadd.f32 0.0, %v1382
      %v1384 = vpop.f32.mrb[0].mxu0
      %v1385 = vpop.f32.mrb[0].mxu0
      %v1386 = vadd.f32 0.0, %v1385
      %v1387 = vpop.f32.mrb[0].mxu0
      %1388 = vmatprep.mubr.bf16.mxu0 0
      %1389 = vmatmul.mubr.bf16.gmra.mrb[0].mxu0 %v1331
      %v1390 = vpop.f32.mrb[0].mxu0
      %v1391 = vadd.f32 0.0, %v1390
      %v1392 = vpop.f32.mrb[0].mxu0
      %v1393 = vpop.f32.mrb[0].mxu0
      %v1394 = vadd.f32 0.0, %v1393
      %v1395 = vpop.f32.mrb[0].mxu0
      %1396 = vdwg.mxu0
      %1397 = vst [vmem:[%s471 + $0x8] sm:$0xff] %v1367
      %1398 = vst [vmem:[%s471 + $0x28] sm:$0xff] %v1370
      %1399 = vst [vmem:[%s471 + $0x48] sm:$0xff] %v1375
      %1400 = vst [vmem:[%s471 + $0x68] sm:$0xff] %v1378
      %1401 = vst [vmem:[%s471 + $0x88] sm:$0xff] %v1383
      %1402 = vst [vmem:[%s471 + $0xa8] sm:$0xff] %v1386
      %1403 = vst [vmem:[%s471 + $0xc8] sm:$0xff] %v1391
      %1404 = vst [vmem:[%s471 + $0xe8] sm:$0xff] %v1394
      %v1405 = vlog2.pop %v1297
      %v1406 = vmul.f32 %v1405, 0.6931472
      %v1407 = vlog2.pop %v1299
      %v1408 = vmul.f32 %v1407, 0.6931472
      %v1409 = vlog2.pop %v1301
      %v1410 = vmul.f32 %v1409, 0.6931472
      %v1411 = vlog2.pop %v1303
      %v1412 = vmul.f32 %v1411, 0.6931472
      %v1413 = vlog2.pop %v1305
      %v1414 = vmul.f32 %v1413, 0.6931472
      %v1415 = vlog2.pop %v1307
      %v1416 = vmul.f32 %v1415, 0.6931472
      %v1417 = vlog2.pop %v1309
      %v1418 = vmul.f32 %v1417, 0.6931472
      %v1419 = vlog2.pop %v1311
      %v1420 = vmul.f32 %v1419, 0.6931472
      %v1421 = vsub.f32 %v1272, %v1406
      %v1422 = vsub.f32 %v1273, %v1408
      %v1423 = vsub.f32 %v1274, %v1410
      %v1424 = vsub.f32 %v1275, %v1412
      %v1425 = vsub.f32 %v1276, %v1414
      %v1426 = vsub.f32 %v1277, %v1416
      %v1427 = vsub.f32 %v1278, %v1418
      %v1428 = vsub.f32 %v1279, %v1420
      %v1429 = vsub.f32 0.0, %v1421
      %v1430 = vsub.f32 0.0, %v1422
      %v1431 = vsub.f32 0.0, %v1423
      %v1432 = vsub.f32 0.0, %v1424
      %v1433 = vsub.f32 0.0, %v1425
      %v1434 = vsub.f32 0.0, %v1426
      %v1435 = vsub.f32 0.0, %v1427
      %v1436 = vsub.f32 0.0, %v1428
      %v1437 = vmul.f32 %v1421, 0.5
      %v1438 = vmul.f32 %v1422, 0.5
      %v1439 = vmul.f32 %v1423, 0.5
      %v1440 = vmul.f32 %v1424, 0.5
      %v1441 = vmul.f32 %v1425, 0.5
      %v1442 = vmul.f32 %v1426, 0.5
      %v1443 = vmul.f32 %v1427, 0.5
      %v1444 = vmul.f32 %v1428, 0.5
      %v1445 = vmul.f32 %v1421, 0.33333334
      %v1446 = vmul.f32 %v1422, 0.33333334
      %v1447 = vmul.f32 %v1423, 0.33333334
      %v1448 = vmul.f32 %v1424, 0.33333334
      %v1449 = vmul.f32 %v1425, 0.33333334
      %v1450 = vmul.f32 %v1426, 0.33333334
      %v1451 = vmul.f32 %v1427, 0.33333334
      %v1452 = vmul.f32 %v1428, 0.33333334
      %v1453 = vadd.f32 %v1445, 1.0
      %v1454 = vadd.f32 %v1446, 1.0
      %v1455 = vadd.f32 %v1447, 1.0
      %v1456 = vadd.f32 %v1448, 1.0
      %v1457 = vadd.f32 %v1449, 1.0
      %v1458 = vadd.f32 %v1450, 1.0
      %v1459 = vadd.f32 %v1451, 1.0
      %v1460 = vadd.f32 %v1452, 1.0
      %v1461 = vmul.f32 %v1437, %v1453
      %v1462 = vmul.f32 %v1438, %v1454
      %v1463 = vmul.f32 %v1439, %v1455
      %v1464 = vmul.f32 %v1440, %v1456
      %v1465 = vmul.f32 %v1441, %v1457
      %v1466 = vmul.f32 %v1442, %v1458
      %v1467 = vmul.f32 %v1443, %v1459
      %v1468 = vmul.f32 %v1444, %v1460
      %v1469 = vadd.f32 %v1461, 1.0
      %v1470 = vadd.f32 %v1462, 1.0
      %v1471 = vadd.f32 %v1463, 1.0
      %v1472 = vadd.f32 %v1464, 1.0
      %v1473 = vadd.f32 %v1465, 1.0
      %v1474 = vadd.f32 %v1466, 1.0
      %v1475 = vadd.f32 %v1467, 1.0
      %v1476 = vadd.f32 %v1468, 1.0
      %v1477 = vmul.f32 %v1429, %v1469
      %v1478 = vmul.f32 %v1430, %v1470
      %v1479 = vmul.f32 %v1431, %v1471
      %v1480 = vmul.f32 %v1432, %v1472
      %v1481 = vmul.f32 %v1433, %v1473
      %v1482 = vmul.f32 %v1434, %v1474
      %v1483 = vmul.f32 %v1435, %v1475
      %v1484 = vmul.f32 %v1436, %v1476
      %vm1485 = vcmp.gt.f32.partialorder %v1421, -0.05
      %vm1486 = vcmp.gt.f32.partialorder %v1422, -0.05
      %vm1487 = vcmp.gt.f32.partialorder %v1423, -0.05
      %vm1488 = vcmp.gt.f32.partialorder %v1424, -0.05
      %vm1489 = vcmp.gt.f32.partialorder %v1425, -0.05
      %vm1490 = vcmp.gt.f32.partialorder %v1426, -0.05
      %vm1491 = vcmp.gt.f32.partialorder %v1427, -0.05
      %vm1492 = vcmp.gt.f32.partialorder %v1428, -0.05
      %v1493 = vsub.f32 1.0, %v1320
      %v1494 = vsub.f32 1.0, %v1321
      %v1495 = vsub.f32 1.0, %v1322
      %v1496 = vsub.f32 1.0, %v1323
      %v1497 = vsub.f32 1.0, %v1324
      %v1498 = vsub.f32 1.0, %v1325
      %v1499 = vsub.f32 1.0, %v1326
      %v1500 = vsub.f32 1.0, %v1327
      %v1501 = vsel %vm1485, %v1477, %v1493
      %v1502 = vsel %vm1486, %v1478, %v1494
      %v1503 = vsel %vm1487, %v1479, %v1495
      %v1504 = vsel %vm1488, %v1480, %v1496
      %v1505 = vsel %vm1489, %v1481, %v1497
      %v1506 = vsel %vm1490, %v1482, %v1498
      %v1507 = vsel %vm1491, %v1483, %v1499
      %v1508 = vsel %vm1492, %v1484, %v1500
      %v1509 = vlog2.pop %v1501
      %v1510 = vmul.f32 %v1509, 0.6931472
      %v1511 = vlog2.pop %v1502
      %v1512 = vmul.f32 %v1511, 0.6931472
      %v1513 = vlog2.pop %v1503
      %v1514 = vmul.f32 %v1513, 0.6931472
      %v1515 = vlog2.pop %v1504
      %v1516 = vmul.f32 %v1515, 0.6931472
      %v1517 = vlog2.pop %v1505
      %v1518 = vmul.f32 %v1517, 0.6931472
      %v1519 = vlog2.pop %v1506
      %v1520 = vmul.f32 %v1519, 0.6931472
      %v1521 = vlog2.pop %v1507
      %v1522 = vmul.f32 %v1521, 0.6931472
      %v1523 = vlog2.pop %v1508
      %v1524 = vmul.f32 %v1523, 0.6931472
      %v1525 = vadd.f32 %v1248, %v1510
      %v1526 = vadd.f32 %v1249, %v1512
      %v1527 = vadd.f32 %v1250, %v1514
      %v1528 = vadd.f32 %v1251, %v1516
      %v1529 = vadd.f32 %v1252, %v1518
      %v1530 = vadd.f32 %v1253, %v1520
      %v1531 = vadd.f32 %v1254, %v1522
      %v1532 = vadd.f32 %v1255, %v1524
      %1533 = vmax.xlane.f32.xlu0 %v1525
      %v1534 = vpop.xlane.xlu0 %1533
      %1535 = vmax.xlane.f32.xlu0 %v1526
      %v1536 = vpop.xlane.xlu0 %1535
      %1537 = vmax.xlane.f32.xlu0 %v1527
      %v1538 = vpop.xlane.xlu0 %1537
      %1539 = vmax.xlane.f32.xlu0 %v1528
      %v1540 = vpop.xlane.xlu0 %1539
      %1541 = vmax.xlane.f32.xlu0 %v1529
      %v1542 = vpop.xlane.xlu0 %1541
      %1543 = vmax.xlane.f32.xlu0 %v1530
      %v1544 = vpop.xlane.xlu0 %1543
      %1545 = vmax.xlane.f32.xlu0 %v1531
      %v1546 = vpop.xlane.xlu0 %1545
      %1547 = vmax.xlane.f32.xlu0 %v1532
      %v1548 = vpop.xlane.xlu0 %1547
      %v1549 = vsub.f32 %v1525, %v1534
      %v1550 = vsub.f32 %v1526, %v1536
      %v1551 = vsub.f32 %v1527, %v1538
      %v1552 = vsub.f32 %v1528, %v1540
      %v1553 = vsub.f32 %v1529, %v1542
      %v1554 = vsub.f32 %v1530, %v1544
      %v1555 = vsub.f32 %v1531, %v1546
      %v1556 = vsub.f32 %v1532, %v1548
      %v1557 = vmul.f32 %v1549, 1.442695
      %v1558 = vpow.pop %v1557
      %v1559 = vmul.f32 %v1550, 1.442695
      %v1560 = vpow.pop %v1559
      %v1561 = vmul.f32 %v1551, 1.442695
      %v1562 = vpow.pop %v1561
      %v1563 = vmul.f32 %v1552, 1.442695
      %v1564 = vpow.pop %v1563
      %v1565 = vmul.f32 %v1553, 1.442695
      %v1566 = vpow.pop %v1565
      %v1567 = vmul.f32 %v1554, 1.442695
      %v1568 = vpow.pop %v1567
      %v1569 = vmul.f32 %v1555, 1.442695
      %v1570 = vpow.pop %v1569
      %v1571 = vmul.f32 %v1556, 1.442695
      %v1572 = vpow.pop %v1571
      %1573 = vadd.xlane.f32.xlu0 %v1558
      %v1574 = vpop.xlane.xlu0 %1573
      %1575 = vadd.xlane.f32.xlu0 %v1560
      %v1576 = vpop.xlane.xlu0 %1575
      %1577 = vadd.xlane.f32.xlu0 %v1562
      %v1578 = vpop.xlane.xlu0 %1577
      %1579 = vadd.xlane.f32.xlu0 %v1564
      %v1580 = vpop.xlane.xlu0 %1579
      %1581 = vadd.xlane.f32.xlu0 %v1566
      %v1582 = vpop.xlane.xlu0 %1581
      %1583 = vadd.xlane.f32.xlu0 %v1568
      %v1584 = vpop.xlane.xlu0 %1583
      %1585 = vadd.xlane.f32.xlu0 %v1570
      %v1586 = vpop.xlane.xlu0 %1585
      %1587 = vadd.xlane.f32.xlu0 %v1572
      %v1588 = vpop.xlane.xlu0 %1587
      %v1589 = vrcp.pop %v1574
      %v1590 = vrcp.pop %v1576
      %v1591 = vrcp.pop %v1578
      %v1592 = vrcp.pop %v1580
      %v1593 = vrcp.pop %v1582
      %v1594 = vrcp.pop %v1584
      %v1595 = vrcp.pop %v1586
      %v1596 = vrcp.pop %v1588
      %v1597 = vmul.f32 %v1558, %v1589
      %v1598 = vmul.f32 %v1560, %v1590
      %v1599 = vmul.f32 %v1562, %v1591
      %v1600 = vmul.f32 %v1564, %v1592
      %v1601 = vmul.f32 %v1566, %v1593
      %v1602 = vmul.f32 %v1568, %v1594
      %v1603 = vmul.f32 %v1570, %v1595
      %v1604 = vmul.f32 %v1572, %v1596
      %v1605 = vpack.c.bf16 %v1598, %v1597
      %v1606 = vpack.c.bf16 %v1600, %v1599
      %v1607 = vpack.c.bf16 %v1602, %v1601
      %v1608 = vpack.c.bf16 %v1604, %v1603
      %1609 = vmatprep.subr.bf16.mxu0 0
      %1610 = vmatpush1.bf16.msra.mxu0 %v1039
      %1611 = vmatprep.subr.bf16.mxu0 0
      %1612 = vmatpush1.bf16.msra.mxu0 %v1040
      %1613 = vmatprep.subr.bf16.mxu0 0
      %1614 = vmatpush1.bf16.msra.mxu0 %v1041
      %1615 = vmatprep.subr.bf16.mxu0 0
      %1616 = vmatpush1.bf16.msra.mxu0 %v1042
      %1617 = vmatprep.subr.bf16.mxu0 0
      %1618 = vmatpush1.bf16.msra.mxu0 %v1043
      %1619 = vmatprep.subr.bf16.mxu0 0
      %1620 = vmatpush1.bf16.msra.mxu0 %v1044
      %1621 = vmatprep.subr.bf16.mxu0 0
      %1622 = vmatpush1.bf16.msra.mxu0 %v1045
      %1623 = vmatprep.subr.bf16.mxu0 0
      %1624 = vmatpush1.bf16.msra.mxu0 %v1046
      %1625 = vmatprep.subr.bf16.mxu0 0
      %1626 = vmatpush1.bf16.msra.mxu0 0
      %1627 = vmatprep.subr.bf16.mxu0 0
      %1628 = vmatpush1.bf16.msra.mxu0 0
      %1629 = vmatprep.subr.bf16.mxu0 0
      %1630 = vmatpush1.bf16.msra.mxu0 0
      %1631 = vmatprep.subr.bf16.mxu0 0
      %1632 = vmatpush1.bf16.msra.mxu0 0
      %1633 = vmatprep.subr.bf16.mxu0 0
      %1634 = vmatpush1.bf16.msra.mxu0 0
      %1635 = vmatprep.subr.bf16.mxu0 0
      %1636 = vmatpush1.bf16.msra.mxu0 0
      %1637 = vmatprep.subr.bf16.mxu0 0
      %1638 = vmatpush1.bf16.msra.mxu0 0
      %1639 = vmatprep.subr.bf16.mxu0 0
      %1640 = vmatpush1.bf16.msra.mxu0 0
      %1641 = vmatprep.mubr.bf16.mxu0 0
      %1642 = vmatmul.mubr.bf16.gmra.mrb[0].mxu0 %v1605
      %v1643 = vpop.f32.mrb[0].mxu0
      %v1644 = vadd.f32 0.0, %v1643
      %v1645 = vpop.f32.mrb[0].mxu0
      %v1646 = vpop.f32.mrb[0].mxu0
      %v1647 = vadd.f32 0.0, %v1646
      %v1648 = vpop.f32.mrb[0].mxu0
      %1649 = vmatprep.mubr.bf16.mxu0 0
      %1650 = vmatmul.mubr.bf16.gmra.mrb[0].mxu0 %v1606
      %v1651 = vpop.f32.mrb[0].mxu0
      %v1652 = vadd.f32 0.0, %v1651
      %v1653 = vpop.f32.mrb[0].mxu0
      %v1654 = vpop.f32.mrb[0].mxu0
      %v1655 = vadd.f32 0.0, %v1654
      %v1656 = vpop.f32.mrb[0].mxu0
      %1657 = vmatprep.mubr.bf16.mxu0 0
      %1658 = vmatmul.mubr.bf16.gmra.mrb[0].mxu0 %v1607
      %v1659 = vpop.f32.mrb[0].mxu0
      %v1660 = vadd.f32 0.0, %v1659
      %v1661 = vpop.f32.mrb[0].mxu0
      %v1662 = vpop.f32.mrb[0].mxu0
      %v1663 = vadd.f32 0.0, %v1662
      %v1664 = vpop.f32.mrb[0].mxu0
      %1665 = vmatprep.mubr.bf16.mxu0 0
      %1666 = vmatmul.mubr.bf16.gmra.mrb[0].mxu0 %v1608
      %v1667 = vpop.f32.mrb[0].mxu0
      %v1668 = vadd.f32 0.0, %v1667
      %v1669 = vpop.f32.mrb[0].mxu0
      %v1670 = vpop.f32.mrb[0].mxu0
      %v1671 = vadd.f32 0.0, %v1670
      %v1672 = vpop.f32.mrb[0].mxu0
      %1673 = vdwg.mxu0
      %1674 = vst [vmem:[%s471 + $0x10] sm:$0xff] %v1644
      %1675 = vst [vmem:[%s471 + $0x30] sm:$0xff] %v1647
      %1676 = vst [vmem:[%s471 + $0x50] sm:$0xff] %v1652
      %1677 = vst [vmem:[%s471 + $0x70] sm:$0xff] %v1655
      %1678 = vst [vmem:[%s471 + $0x90] sm:$0xff] %v1660
      %1679 = vst [vmem:[%s471 + $0xb0] sm:$0xff] %v1663
      %1680 = vst [vmem:[%s471 + $0xd0] sm:$0xff] %v1668
      %1681 = vst [vmem:[%s471 + $0xf0] sm:$0xff] %v1671
      %v1682 = vlog2.pop %v1574
      %v1683 = vmul.f32 %v1682, 0.6931472
      %v1684 = vlog2.pop %v1576
      %v1685 = vmul.f32 %v1684, 0.6931472
      %v1686 = vlog2.pop %v1578
      %v1687 = vmul.f32 %v1686, 0.6931472
      %v1688 = vlog2.pop %v1580
      %v1689 = vmul.f32 %v1688, 0.6931472
      %v1690 = vlog2.pop %v1582
      %v1691 = vmul.f32 %v1690, 0.6931472
      %v1692 = vlog2.pop %v1584
      %v1693 = vmul.f32 %v1692, 0.6931472
      %v1694 = vlog2.pop %v1586
      %v1695 = vmul.f32 %v1694, 0.6931472
      %v1696 = vlog2.pop %v1588
      %v1697 = vmul.f32 %v1696, 0.6931472
      %v1698 = vsub.f32 %v1549, %v1683
      %v1699 = vsub.f32 %v1550, %v1685
      %v1700 = vsub.f32 %v1551, %v1687
      %v1701 = vsub.f32 %v1552, %v1689
      %v1702 = vsub.f32 %v1553, %v1691
      %v1703 = vsub.f32 %v1554, %v1693
      %v1704 = vsub.f32 %v1555, %v1695
      %v1705 = vsub.f32 %v1556, %v1697
      %v1706 = vsub.f32 0.0, %v1698
      %v1707 = vsub.f32 0.0, %v1699
      %v1708 = vsub.f32 0.0, %v1700
      %v1709 = vsub.f32 0.0, %v1701
      %v1710 = vsub.f32 0.0, %v1702
      %v1711 = vsub.f32 0.0, %v1703
      %v1712 = vsub.f32 0.0, %v1704
      %v1713 = vsub.f32 0.0, %v1705
      %v1714 = vmul.f32 %v1698, 0.5
      %v1715 = vmul.f32 %v1699, 0.5
      %v1716 = vmul.f32 %v1700, 0.5
      %v1717 = vmul.f32 %v1701, 0.5
      %v1718 = vmul.f32 %v1702, 0.5
      %v1719 = vmul.f32 %v1703, 0.5
      %v1720 = vmul.f32 %v1704, 0.5
      %v1721 = vmul.f32 %v1705, 0.5
      %v1722 = vmul.f32 %v1698, 0.33333334
      %v1723 = vmul.f32 %v1699, 0.33333334
      %v1724 = vmul.f32 %v1700, 0.33333334
      %v1725 = vmul.f32 %v1701, 0.33333334
      %v1726 = vmul.f32 %v1702, 0.33333334
      %v1727 = vmul.f32 %v1703, 0.33333334
      %v1728 = vmul.f32 %v1704, 0.33333334
      %v1729 = vmul.f32 %v1705, 0.33333334
      %v1730 = vadd.f32 %v1722, 1.0
      %v1731 = vadd.f32 %v1723, 1.0
      %v1732 = vadd.f32 %v1724, 1.0
      %v1733 = vadd.f32 %v1725, 1.0
      %v1734 = vadd.f32 %v1726, 1.0
      %v1735 = vadd.f32 %v1727, 1.0
      %v1736 = vadd.f32 %v1728, 1.0
      %v1737 = vadd.f32 %v1729, 1.0
      %v1738 = vmul.f32 %v1714, %v1730
      %v1739 = vmul.f32 %v1715, %v1731
      %v1740 = vmul.f32 %v1716, %v1732
      %v1741 = vmul.f32 %v1717, %v1733
      %v1742 = vmul.f32 %v1718, %v1734
      %v1743 = vmul.f32 %v1719, %v1735
      %v1744 = vmul.f32 %v1720, %v1736
      %v1745 = vmul.f32 %v1721, %v1737
      %v1746 = vadd.f32 %v1738, 1.0
      %v1747 = vadd.f32 %v1739, 1.0
      %v1748 = vadd.f32 %v1740, 1.0
      %v1749 = vadd.f32 %v1741, 1.0
      %v1750 = vadd.f32 %v1742, 1.0
      %v1751 = vadd.f32 %v1743, 1.0
      %v1752 = vadd.f32 %v1744, 1.0
      %v1753 = vadd.f32 %v1745, 1.0
      %v1754 = vmul.f32 %v1706, %v1746
      %v1755 = vmul.f32 %v1707, %v1747
      %v1756 = vmul.f32 %v1708, %v1748
      %v1757 = vmul.f32 %v1709, %v1749
      %v1758 = vmul.f32 %v1710, %v1750
      %v1759 = vmul.f32 %v1711, %v1751
      %v1760 = vmul.f32 %v1712, %v1752
      %v1761 = vmul.f32 %v1713, %v1753
      %vm1762 = vcmp.gt.f32.partialorder %v1698, -0.05
      %vm1763 = vcmp.gt.f32.partialorder %v1699, -0.05
      %vm1764 = vcmp.gt.f32.partialorder %v1700, -0.05
      %vm1765 = vcmp.gt.f32.partialorder %v1701, -0.05
      %vm1766 = vcmp.gt.f32.partialorder %v1702, -0.05
      %vm1767 = vcmp.gt.f32.partialorder %v1703, -0.05
      %vm1768 = vcmp.gt.f32.partialorder %v1704, -0.05
      %vm1769 = vcmp.gt.f32.partialorder %v1705, -0.05
      %v1770 = vsub.f32 1.0, %v1597
      %v1771 = vsub.f32 1.0, %v1598
      %v1772 = vsub.f32 1.0, %v1599
      %v1773 = vsub.f32 1.0, %v1600
      %v1774 = vsub.f32 1.0, %v1601
      %v1775 = vsub.f32 1.0, %v1602
      %v1776 = vsub.f32 1.0, %v1603
      %v1777 = vsub.f32 1.0, %v1604
      %v1778 = vsel %vm1762, %v1754, %v1770
      %v1779 = vsel %vm1763, %v1755, %v1771
      %v1780 = vsel %vm1764, %v1756, %v1772
      %v1781 = vsel %vm1765, %v1757, %v1773
      %v1782 = vsel %vm1766, %v1758, %v1774
      %v1783 = vsel %vm1767, %v1759, %v1775
      %v1784 = vsel %vm1768, %v1760, %v1776
      %v1785 = vsel %vm1769, %v1761, %v1777
      %v1786 = vlog2.pop %v1778
      %v1787 = vmul.f32 %v1786, 0.6931472
      %v1788 = vlog2.pop %v1779
      %v1789 = vmul.f32 %v1788, 0.6931472
      %v1790 = vlog2.pop %v1780
      %v1791 = vmul.f32 %v1790, 0.6931472
      %v1792 = vlog2.pop %v1781
      %v1793 = vmul.f32 %v1792, 0.6931472
      %v1794 = vlog2.pop %v1782
      %v1795 = vmul.f32 %v1794, 0.6931472
      %v1796 = vlog2.pop %v1783
      %v1797 = vmul.f32 %v1796, 0.6931472
      %v1798 = vlog2.pop %v1784
      %v1799 = vmul.f32 %v1798, 0.6931472
      %v1800 = vlog2.pop %v1785
      %v1801 = vmul.f32 %v1800, 0.6931472
      %v1802 = vadd.f32 %v1525, %v1787
      %v1803 = vadd.f32 %v1526, %v1789
      %v1804 = vadd.f32 %v1527, %v1791
      %v1805 = vadd.f32 %v1528, %v1793
      %v1806 = vadd.f32 %v1529, %v1795
      %v1807 = vadd.f32 %v1530, %v1797
      %v1808 = vadd.f32 %v1531, %v1799
      %v1809 = vadd.f32 %v1532, %v1801
      %1810 = vmax.xlane.f32.xlu0 %v1802
      %v1811 = vpop.xlane.xlu0 %1810
      %1812 = vmax.xlane.f32.xlu0 %v1803
      %v1813 = vpop.xlane.xlu0 %1812
      %1814 = vmax.xlane.f32.xlu0 %v1804
      %v1815 = vpop.xlane.xlu0 %1814
      %1816 = vmax.xlane.f32.xlu0 %v1805
      %v1817 = vpop.xlane.xlu0 %1816
      %1818 = vmax.xlane.f32.xlu0 %v1806
      %v1819 = vpop.xlane.xlu0 %1818
      %1820 = vmax.xlane.f32.xlu0 %v1807
      %v1821 = vpop.xlane.xlu0 %1820
      %1822 = vmax.xlane.f32.xlu0 %v1808
      %v1823 = vpop.xlane.xlu0 %1822
      %1824 = vmax.xlane.f32.xlu0 %v1809
      %v1825 = vpop.xlane.xlu0 %1824
      %v1826 = vsub.f32 %v1802, %v1811
      %v1827 = vsub.f32 %v1803, %v1813
      %v1828 = vsub.f32 %v1804, %v1815
      %v1829 = vsub.f32 %v1805, %v1817
      %v1830 = vsub.f32 %v1806, %v1819
      %v1831 = vsub.f32 %v1807, %v1821
      %v1832 = vsub.f32 %v1808, %v1823
      %v1833 = vsub.f32 %v1809, %v1825
      %v1834 = vmul.f32 %v1826, 1.442695
      %v1835 = vpow.pop %v1834
      %v1836 = vmul.f32 %v1827, 1.442695
      %v1837 = vpow.pop %v1836
      %v1838 = vmul.f32 %v1828, 1.442695
      %v1839 = vpow.pop %v1838
      %v1840 = vmul.f32 %v1829, 1.442695
      %v1841 = vpow.pop %v1840
      %v1842 = vmul.f32 %v1830, 1.442695
      %v1843 = vpow.pop %v1842
      %v1844 = vmul.f32 %v1831, 1.442695
      %v1845 = vpow.pop %v1844
      %v1846 = vmul.f32 %v1832, 1.442695
      %v1847 = vpow.pop %v1846
      %v1848 = vmul.f32 %v1833, 1.442695
      %v1849 = vpow.pop %v1848
      %1850 = vadd.xlane.f32.xlu0 %v1835
      %v1851 = vpop.xlane.xlu0 %1850
      %1852 = vadd.xlane.f32.xlu0 %v1837
      %v1853 = vpop.xlane.xlu0 %1852
      %1854 = vadd.xlane.f32.xlu0 %v1839
      %v1855 = vpop.xlane.xlu0 %1854
      %1856 = vadd.xlane.f32.xlu0 %v1841
      %v1857 = vpop.xlane.xlu0 %1856
      %1858 = vadd.xlane.f32.xlu0 %v1843
      %v1859 = vpop.xlane.xlu0 %1858
      %1860 = vadd.xlane.f32.xlu0 %v1845
      %v1861 = vpop.xlane.xlu0 %1860
      %1862 = vadd.xlane.f32.xlu0 %v1847
      %v1863 = vpop.xlane.xlu0 %1862
      %1864 = vadd.xlane.f32.xlu0 %v1849
      %v1865 = vpop.xlane.xlu0 %1864
      %v1866 = vrcp.pop %v1851
      %v1867 = vrcp.pop %v1853
      %v1868 = vrcp.pop %v1855
      %v1869 = vrcp.pop %v1857
      %v1870 = vrcp.pop %v1859
      %v1871 = vrcp.pop %v1861
      %v1872 = vrcp.pop %v1863
      %v1873 = vrcp.pop %v1865
      %v1874 = vmul.f32 %v1835, %v1866
      %v1875 = vmul.f32 %v1837, %v1867
      %v1876 = vmul.f32 %v1839, %v1868
      %v1877 = vmul.f32 %v1841, %v1869
      %v1878 = vmul.f32 %v1843, %v1870
      %v1879 = vmul.f32 %v1845, %v1871
      %v1880 = vmul.f32 %v1847, %v1872
      %v1881 = vmul.f32 %v1849, %v1873
      %v1882 = vpack.c.bf16 %v1875, %v1874
      %v1883 = vpack.c.bf16 %v1877, %v1876
      %v1884 = vpack.c.bf16 %v1879, %v1878
      %v1885 = vpack.c.bf16 %v1881, %v1880
      %1886 = vmatprep.subr.bf16.mxu0 0
      %1887 = vmatpush1.bf16.msra.mxu0 %v1039
      %1888 = vmatprep.subr.bf16.mxu0 0
      %1889 = vmatpush1.bf16.msra.mxu0 %v1040
      %1890 = vmatprep.subr.bf16.mxu0 0
      %1891 = vmatpush1.bf16.msra.mxu0 %v1041
      %1892 = vmatprep.subr.bf16.mxu0 0
      %1893 = vmatpush1.bf16.msra.mxu0 %v1042
      %1894 = vmatprep.subr.bf16.mxu0 0
      %1895 = vmatpush1.bf16.msra.mxu0 %v1043
      %1896 = vmatprep.subr.bf16.mxu0 0
      %1897 = vmatpush1.bf16.msra.mxu0 %v1044
      %1898 = vmatprep.subr.bf16.mxu0 0
      %1899 = vmatpush1.bf16.msra.mxu0 %v1045
      %1900 = vmatprep.subr.bf16.mxu0 0
      %1901 = vmatpush1.bf16.msra.mxu0 %v1046
      %1902 = vmatprep.subr.bf16.mxu0 0
      %1903 = vmatpush1.bf16.msra.mxu0 0
      %1904 = vmatprep.subr.bf16.mxu0 0
      %1905 = vmatpush1.bf16.msra.mxu0 0
      %1906 = vmatprep.subr.bf16.mxu0 0
      %1907 = vmatpush1.bf16.msra.mxu0 0
      %1908 = vmatprep.subr.bf16.mxu0 0
      %1909 = vmatpush1.bf16.msra.mxu0 0
      %1910 = vmatprep.subr.bf16.mxu0 0
      %1911 = vmatpush1.bf16.msra.mxu0 0
      %1912 = vmatprep.subr.bf16.mxu0 0
      %1913 = vmatpush1.bf16.msra.mxu0 0
      %1914 = vmatprep.subr.bf16.mxu0 0
      %1915 = vmatpush1.bf16.msra.mxu0 0
      %1916 = vmatprep.subr.bf16.mxu0 0
      %1917 = vmatpush1.bf16.msra.mxu0 0
      %1918 = vmatprep.mubr.bf16.mxu0 0
      %1919 = vmatmul.mubr.bf16.gmra.mrb[0].mxu0 %v1882
      %v1920 = vpop.f32.mrb[0].mxu0
      %v1921 = vadd.f32 0.0, %v1920
      %v1922 = vpop.f32.mrb[0].mxu0
      %v1923 = vpop.f32.mrb[0].mxu0
      %v1924 = vadd.f32 0.0, %v1923
      %v1925 = vpop.f32.mrb[0].mxu0
      %1926 = vmatprep.mubr.bf16.mxu0 0
      %1927 = vmatmul.mubr.bf16.gmra.mrb[0].mxu0 %v1883
      %v1928 = vpop.f32.mrb[0].mxu0
      %v1929 = vadd.f32 0.0, %v1928
      %v1930 = vpop.f32.mrb[0].mxu0
      %v1931 = vpop.f32.mrb[0].mxu0
      %v1932 = vadd.f32 0.0, %v1931
      %v1933 = vpop.f32.mrb[0].mxu0
      %1934 = vmatprep.mubr.bf16.mxu0 0
      %1935 = vmatmul.mubr.bf16.gmra.mrb[0].mxu0 %v1884
      %v1936 = vpop.f32.mrb[0].mxu0
      %v1937 = vadd.f32 0.0, %v1936
      %v1938 = vpop.f32.mrb[0].mxu0
      %v1939 = vpop.f32.mrb[0].mxu0
      %v1940 = vadd.f32 0.0, %v1939
      %v1941 = vpop.f32.mrb[0].mxu0
      %1942 = vmatprep.mubr.bf16.mxu0 0
      %1943 = vmatmul.mubr.bf16.gmra.mrb[0].mxu0 %v1885
      %v1944 = vpop.f32.mrb[0].mxu0
      %v1945 = vadd.f32 0.0, %v1944
      %v1946 = vpop.f32.mrb[0].mxu0
      %v1947 = vpop.f32.mrb[0].mxu0
      %v1948 = vadd.f32 0.0, %v1947
      %v1949 = vpop.f32.mrb[0].mxu0
      %1950 = vdwg.mxu0
      %1951 = vst [vmem:[%s471 + $0x18] sm:$0xff] %v1921
      %1952 = vst [vmem:[%s471 + $0x38] sm:$0xff] %v1924
      %1953 = vst [vmem:[%s471 + $0x58] sm:$0xff] %v1929
      %1954 = vst [vmem:[%s471 + $0x78] sm:$0xff] %v1932
      %1955 = vst [vmem:[%s471 + $0x98] sm:$0xff] %v1937
      %1956 = vst [vmem:[%s471 + $0xb8] sm:$0xff] %v1940
      %1957 = vst [vmem:[%s471 + $0xd8] sm:$0xff] %v1945
      %1958 = vst [vmem:[%s471 + $0xf8] sm:$0xff] %v1948
      %s1959 = smul.u32 8, %s26
      %p1960 = scmp.lt.s32.totalorder %s25, 1
      %s1961 = scalar_select %p1960, %s25, 1
      %p1962 = scmp.lt.s32.totalorder %s1959, 7
      %s1963 = scalar_select %p1962, %s1959, 7
      %s1964 = smul.addr %s1963, 4
      %s1965 = smul.addr %s1961, 32
      %s1966 = sadd.s32 %s1964, %s1965
      %s1967 = smul.addr %s1966, 8
      %s1968 = scalar_lea.vmem %s9, %s1967
      // Predicated region
      $region57: #{n3_aggregation_2d.1} parent=55 // pred_check
        %p1969 = pneg %p274
      $region58: #{n3_aggregation_2d.1} parent=55 // pred_check_branch
        %1971 = sbr.rel (%p1969) target = $region60
      $region59: #{n3_aggregation_2d.1} parent=55 // pred_region
        %s1972 = smul.u32 8, %s26
      $region60: #{n3_aggregation_2d.1} parent=55 // pred_fallthru
        _
    $region56: #{n3_aggregation_2d.1} parent=5 // pred_fallthru
      _
    %p1973 = scmp.le.s32.totalorder 2, %s16
    // Predicated region
    $region61: #{n3_aggregation_2d.1} parent=5 // pred_check
      %p1974 = pneg %p1973
    $region62: #{n3_aggregation_2d.1} parent=5 // pred_check_branch
      %1976 = sbr.rel (%p1974) target = $region64
    $region63: #{n3_aggregation_2d.1} parent=5 // pred_region
      %s1977 = ssub.s32 %s16, 2
      // Predicated region
      $region65: #{n3_aggregation_2d.1} parent=63 // pred_check
        %p1978 = pneg %p280
      $region66: #{n3_aggregation_2d.1} parent=63 // pred_check_branch
        %1980 = sbr.rel (%p1978) target = $region68
      $region67: #{n3_aggregation_2d.1} parent=63 // pred_region
        %s1981 = smul.u32 8, %s28
        %p1982 = scmp.lt.s32.totalorder %s27, 1
        %s1983 = scalar_select %p1982, %s27, 1
        %p1984 = scmp.lt.s32.totalorder %s1981, 7
        %s1985 = scalar_select %p1984, %s1981, 7
        %s1986 = smul.addr %s1985, 4
        %s1987 = smul.addr %s1983, 32
        %s1988 = sadd.s32 %s1986, %s1987
        %s1989 = smul.addr %s1988, 8
        %s1990 = scalar_lea.vmem %s9, %s1989
      $region68: #{n3_aggregation_2d.1} parent=63 // pred_fallthru
        _
    $region64: #{n3_aggregation_2d.1} parent=5 // pred_fallthru
      _
  $region6: #{n3_aggregation_2d.1} parent=0 // loop_footer
    %s20 = sadd.s32 1, %s16
  $region7: #{n3_aggregation_2d.1} parent=0 // loop_footer_branch
    %15 = sbr.rel target = $region3
  $region8: #{n3_aggregation_2d.1} parent=0 // loop_exit
    _

// kernel: sub.2
$region0: #{sub.2}
  #allocation0 [shape = 's32[1]{0}', space=sflag, size = 0x4, scoped, tag = 'scoped memory for sub.2']
  %s0 = inlined_call_operand.vmem [shape: f32[2,16,16,16], index: 0, kind: input, shape index: {}]
  %s1 = inlined_call_operand.vmem [shape: f32[2,16,16,16], index: 1, kind: input, shape index: {}]
  %s2 = inlined_call_operand.vmem [shape: f32[2,16,16,16], index: 2, kind: output, shape index: {}]
  %v3 = vld [vmem:[%s0] sm:$0x3]
  %v4 = vld [vmem:[%s1] sm:$0x3]
  %5 = xla_tuple %v3, %v4
  %6 = xla_tuple %5
  %v7 = vsub.f32 %v3, %v4
  %8 = xla_tuple %v7
  %9 = vst [vmem:[%s2] sm:$0x3] %v7
  %s10 = scalar_lea.vmem %s0, 32
  %v11 = vld [vmem:[%s10] sm:$0x3]
  %s12 = scalar_lea.vmem %s1, 32
  %v13 = vld [vmem:[%s12] sm:$0x3]
  %14 = xla_tuple %v11, %v13
  %15 = xla_tuple %14
  %v16 = vsub.f32 %v11, %v13
  %17 = xla_tuple %v16
  %s18 = scalar_lea.vmem %s2, 32
  %19 = vst [vmem:[%s18] sm:$0x3] %v16
  %s20 = scalar_lea.vmem %s0, 64
  %v21 = vld [vmem:[%s20] sm:$0x3]
  %s22 = scalar_lea.vmem %s1, 64
  %v23 = vld [vmem:[%s22] sm:$0x3]
  %24 = xla_tuple %v21, %v23
  %25 = xla_tuple %24
  %v26 = vsub.f32 %v21, %v23
  %27 = xla_tuple %v26
  %s28 = scalar_lea.vmem %s2, 64
  %29 = vst [vmem:[%s28] sm:$0x3] %v26
  %s30 = scalar_lea.vmem %s0, 96
  %v31 = vld [vmem:[%s30] sm:$0x3]
  %s32 = scalar_lea.vmem %s1, 96
  %v33 = vld [vmem:[%s32] sm:$0x3]
  %34 = xla_tuple %v31, %v33
  %35 = xla_tuple %34
  %v36 = vsub.f32 %v31, %v33
  %37 = xla_tuple %v36
  %s38 = scalar_lea.vmem %s2, 96
  %39 = vst [vmem:[%s38] sm:$0x3] %v36
  %s40 = scalar_lea.vmem %s0, 128
  %v41 = vld [vmem:[%s40] sm:$0x3]
  %s42 = scalar_lea.vmem %s1, 128
  %v43 = vld [vmem:[%s42] sm:$0x3]
  %44 = xla_tuple %v41, %v43
  %45 = xla_tuple %44
  %v46 = vsub.f32 %v41, %v43
  %47 = xla_tuple %v46
  %s48 = scalar_lea.vmem %s2, 128
  %49 = vst [vmem:[%s48] sm:$0x3] %v46
  %s50 = scalar_lea.vmem %s0, 160
  %v51 = vld [vmem:[%s50] sm:$0x3]
  %s52 = scalar_lea.vmem %s1, 160
  %v53 = vld [vmem:[%s52] sm:$0x3]
  %54 = xla_tuple %v51, %v53
  %55 = xla_tuple %54
  %v56 = vsub.f32 %v51, %v53
  %57 = xla_tuple %v56
  %s58 = scalar_lea.vmem %s2, 160
  %59 = vst [vmem:[%s58] sm:$0x3] %v56
  %s60 = scalar_lea.vmem %s0, 192
  %v61 = vld [vmem:[%s60] sm:$0x3]
  %s62 = scalar_lea.vmem %s1, 192
  %v63 = vld [vmem:[%s62] sm:$0x3]
  %64 = xla_tuple %v61, %v63
  %65 = xla_tuple %64
  %v66 = vsub.f32 %v61, %v63
  %67 = xla_tuple %v66
  %s68 = scalar_lea.vmem %s2, 192
  %69 = vst [vmem:[%s68] sm:$0x3] %v66
  %s70 = scalar_lea.vmem %s0, 224
  %v71 = vld [vmem:[%s70] sm:$0x3]
  %s72 = scalar_lea.vmem %s1, 224
  %v73 = vld [vmem:[%s72] sm:$0x3]
  %74 = xla_tuple %v71, %v73
  %75 = xla_tuple %74
  %v76 = vsub.f32 %v71, %v73
  %77 = xla_tuple %v76
  %s78 = scalar_lea.vmem %s2, 224
  %79 = vst [vmem:[%s78] sm:$0x3] %v76
  %s80 = scalar_lea.vmem %s0, 256
  %v81 = vld [vmem:[%s80] sm:$0x3]
  %s82 = scalar_lea.vmem %s1, 256
  %v83 = vld [vmem:[%s82] sm:$0x3]
  %84 = xla_tuple %v81, %v83
  %85 = xla_tuple %84
  %v86 = vsub.f32 %v81, %v83
  %87 = xla_tuple %v86
  %s88 = scalar_lea.vmem %s2, 256
  %89 = vst [vmem:[%s88] sm:$0x3] %v86
  %s90 = scalar_lea.vmem %s0, 288
  %v91 = vld [vmem:[%s90] sm:$0x3]
  %s92 = scalar_lea.vmem %s1, 288
  %v93 = vld [vmem:[%s92] sm:$0x3]
  %94 = xla_tuple %v91, %v93
  %95 = xla_tuple %94
  %v96 = vsub.f32 %v91, %v93
  %97 = xla_tuple %v96
  %s98 = scalar_lea.vmem %s2, 288
  %99 = vst [vmem:[%s98] sm:$0x3] %v96
  %s100 = scalar_lea.vmem %s0, 320
  %v101 = vld [vmem:[%s100] sm:$0x3]
  %s102 = scalar_lea.vmem %s1, 320
  %v103 = vld [vmem:[%s102] sm:$0x3]
  %104 = xla_tuple %v101, %v103
  %105 = xla_tuple %104
  %v106 = vsub.f32 %v101, %v103
  %107 = xla_tuple %v106
  %s108 = scalar_lea.vmem %s2, 320
  %109 = vst [vmem:[%s108] sm:$0x3] %v106
  %s110 = scalar_lea.vmem %s0, 352
  %v111 = vld [vmem:[%s110] sm:$0x3]
  %s112 = scalar_lea.vmem %s1, 352
  %v113 = vld [vmem:[%s112] sm:$0x3]
  %114 = xla_tuple %v111, %v113
  %115 = xla_tuple %114
  %v116 = vsub.f32 %v111, %v113
  %117 = xla_tuple %v116
  %s118 = scalar_lea.vmem %s2, 352
  %119 = vst [vmem:[%s118] sm:$0x3] %v116
  %s120 = scalar_lea.vmem %s0, 384
  %v121 = vld [vmem:[%s120] sm:$0x3]
  %s122 = scalar_lea.vmem %s1, 384
  %v123 = vld [vmem:[%s122] sm:$0x3]
  %124 = xla_tuple %v121, %v123
  %125 = xla_tuple %124
  %v126 = vsub.f32 %v121, %v123
  %127 = xla_tuple %v126
  %s128 = scalar_lea.vmem %s2, 384
  %129 = vst [vmem:[%s128] sm:$0x3] %v126
  %s130 = scalar_lea.vmem %s0, 416
  %v131 = vld [vmem:[%s130] sm:$0x3]
  %s132 = scalar_lea.vmem %s1, 416
  %v133 = vld [vmem:[%s132] sm:$0x3]
  %134 = xla_tuple %v131, %v133
  %135 = xla_tuple %134
  %v136 = vsub.f32 %v131, %v133
  %137 = xla_tuple %v136
  %s138 = scalar_lea.vmem %s2, 416
  %139 = vst [vmem:[%s138] sm:$0x3] %v136
  %s140 = scalar_lea.vmem %s0, 448
  %v141 = vld [vmem:[%s140] sm:$0x3]
  %s142 = scalar_lea.vmem %s1, 448
  %v143 = vld [vmem:[%s142] sm:$0x3]
  %144 = xla_tuple %v141, %v143
  %145 = xla_tuple %144
  %v146 = vsub.f32 %v141, %v143
  %147 = xla_tuple %v146
  %s148 = scalar_lea.vmem %s2, 448
  %149 = vst [vmem:[%s148] sm:$0x3] %v146
  %s150 = scalar_lea.vmem %s0, 480
  %v151 = vld [vmem:[%s150] sm:$0x3]
  %s152 = scalar_lea.vmem %s1, 480
  %v153 = vld [vmem:[%s152] sm:$0x3]
  %154 = xla_tuple %v151, %v153
  %155 = xla_tuple %154
  %v156 = vsub.f32 %v151, %v153
  %157 = xla_tuple %v156
  %s158 = scalar_lea.vmem %s2, 480
  %159 = vst [vmem:[%s158] sm:$0x3] %v156
  %s160 = scalar_lea.vmem %s0, 2
  %v161 = vld [vmem:[%s160] sm:$0x3]
  %s162 = scalar_lea.vmem %s1, 2
  %v163 = vld [vmem:[%s162] sm:$0x3]
  %164 = xla_tuple %v161, %v163
  %165 = xla_tuple %164
  %v166 = vsub.f32 %v161, %v163
  %167 = xla_tuple %v166
  %s168 = scalar_lea.vmem %s2, 2
  %169 = vst [vmem:[%s168] sm:$0x3] %v166
  %s170 = scalar_lea.vmem %s0, 34
  %v171 = vld [vmem:[%s170] sm:$0x3]
  %s172 = scalar_lea.vmem %s1, 34
  %v173 = vld [vmem:[%s172] sm:$0x3]
  %174 = xla_tuple %v171, %v173
  %175 = xla_tuple %174
  %v176 = vsub.f32 %v171, %v173
  %177 = xla_tuple %v176
  %s178 = scalar_lea.vmem %s2, 34
  %179 = vst [vmem:[%s178] sm:$0x3] %v176
  %s180 = scalar_lea.vmem %s0, 66
  %v181 = vld [vmem:[%s180] sm:$0x3]
  %s182 = scalar_lea.vmem %s1, 66
  %v183 = vld [vmem:[%s182] sm:$0x3]
  %184 = xla_tuple %v181, %v183
  %185 = xla_tuple %184
  %v186 = vsub.f32 %v181, %v183
  %187 = xla_tuple %v186
  %s188 = scalar_lea.vmem %s2, 66
  %189 = vst [vmem:[%s188] sm:$0x3] %v186
  %s190 = scalar_lea.vmem %s0, 98
  %v191 = vld [vmem:[%s190] sm:$0x3]
  %s192 = scalar_lea.vmem %s1, 98
  %v193 = vld [vmem:[%s192] sm:$0x3]
  %194 = xla_tuple %v191, %v193
  %195 = xla_tuple %194
  %v196 = vsub.f32 %v191, %v193
  %197 = xla_tuple %v196
  %s198 = scalar_lea.vmem %s2, 98
  %199 = vst [vmem:[%s198] sm:$0x3] %v196
  %s200 = scalar_lea.vmem %s0, 130
  %v201 = vld [vmem:[%s200] sm:$0x3]
  %s202 = scalar_lea.vmem %s1, 130
  %v203 = vld [vmem:[%s202] sm:$0x3]
  %204 = xla_tuple %v201, %v203
  %205 = xla_tuple %204
  %v206 = vsub.f32 %v201, %v203
  %207 = xla_tuple %v206
  %s208 = scalar_lea.vmem %s2, 130
  %209 = vst [vmem:[%s208] sm:$0x3] %v206
  %s210 = scalar_lea.vmem %s0, 162
  %v211 = vld [vmem:[%s210] sm:$0x3]
  %s212 = scalar_lea.vmem %s1, 162
  %v213 = vld [vmem:[%s212] sm:$0x3]
  %214 = xla_tuple %v211, %v213
  %215 = xla_tuple %214
  %v216 = vsub.f32 %v211, %v213
  %217 = xla_tuple %v216
  %s218 = scalar_lea.vmem %s2, 162
  %219 = vst [vmem:[%s218] sm:$0x3] %v216
  %s220 = scalar_lea.vmem %s0, 194
  %v221 = vld [vmem:[%s220] sm:$0x3]
  %s222 = scalar_lea.vmem %s1, 194
  %v223 = vld [vmem:[%s222] sm:$0x3]
  %224 = xla_tuple %v221, %v223
  %225 = xla_tuple %224
  %v226 = vsub.f32 %v221, %v223
  %227 = xla_tuple %v226
  %s228 = scalar_lea.vmem %s2, 194
  %229 = vst [vmem:[%s228] sm:$0x3] %v226
  %s230 = scalar_lea.vmem %s0, 226
  %v231 = vld [vmem:[%s230] sm:$0x3]
  %s232 = scalar_lea.vmem %s1, 226
  %v233 = vld [vmem:[%s232] sm:$0x3]
  %234 = xla_tuple %v231, %v233
  %235 = xla_tuple %234
  %v236 = vsub.f32 %v231, %v233
  %237 = xla_tuple %v236
  %s238 = scalar_lea.vmem %s2, 226
  %239 = vst [vmem:[%s238] sm:$0x3] %v236
  %s240 = scalar_lea.vmem %s0, 258
  %v241 = vld [vmem:[%s240] sm:$0x3]
  %s242 = scalar_lea.vmem %s1, 258
  %v243 = vld [vmem:[%s242] sm:$0x3]
  %244 = xla_tuple %v241, %v243
  %245 = xla_tuple %244
  %v246 = vsub.f32 %v241, %v243
  %247 = xla_tuple %v246
  %s248 = scalar_lea.vmem %s2, 258
  %249 = vst [vmem:[%s248] sm:$0x3] %v246
  %s250 = scalar_lea.vmem %s0, 290
  %v251 = vld [vmem:[%s250] sm:$0x3]
  %s252 = scalar_lea.vmem %s1, 290
  %v253 = vld [vmem:[%s252] sm:$0x3]
  %254 = xla_tuple %v251, %v253
  %255 = xla_tuple %254
  %v256 = vsub.f32 %v251, %v253
  %257 = xla_tuple %v256
  %s258 = scalar_lea.vmem %s2, 290
  %259 = vst [vmem:[%s258] sm:$0x3] %v256
  %s260 = scalar_lea.vmem %s0, 322
  %v261 = vld [vmem:[%s260] sm:$0x3]
  %s262 = scalar_lea.vmem %s1, 322
  %v263 = vld [vmem:[%s262] sm:$0x3]
  %264 = xla_tuple %v261, %v263
  %265 = xla_tuple %264
  %v266 = vsub.f32 %v261, %v263
  %267 = xla_tuple %v266
  %s268 = scalar_lea.vmem %s2, 322
  %269 = vst [vmem:[%s268] sm:$0x3] %v266
  %s270 = scalar_lea.vmem %s0, 354
  %v271 = vld [vmem:[%s270] sm:$0x3]
  %s272 = scalar_lea.vmem %s1, 354
  %v273 = vld [vmem:[%s272] sm:$0x3]
  %274 = xla_tuple %v271, %v273
  %275 = xla_tuple %274
  %v276 = vsub.f32 %v271, %v273
  %277 = xla_tuple %v276
  %s278 = scalar_lea.vmem %s2, 354
  %279 = vst [vmem:[%s278] sm:$0x3] %v276
  %s280 = scalar_lea.vmem %s0, 386
  %v281 = vld [vmem:[%s280] sm:$0x3]
  %s282 = scalar_lea.vmem %s1, 386
  %v283 = vld [vmem:[%s282] sm:$0x3]
  %284 = xla_tuple %v281, %v283
  %285 = xla_tuple %284
  %v286 = vsub.f32 %v281, %v283
  %287 = xla_tuple %v286
  %s288 = scalar_lea.vmem %s2, 386
  %289 = vst [vmem:[%s288] sm:$0x3] %v286
  %s290 = scalar_lea.vmem %s0, 418
  %v291 = vld [vmem:[%s290] sm:$0x3]
  %s292 = scalar_lea.vmem %s1, 418
  %v293 = vld [vmem:[%s292] sm:$0x3]
  %294 = xla_tuple %v291, %v293
  %295 = xla_tuple %294
  %v296 = vsub.f32 %v291, %v293
  %297 = xla_tuple %v296
  %s298 = scalar_lea.vmem %s2, 418
  %299 = vst [vmem:[%s298] sm:$0x3] %v296
  %s300 = scalar_lea.vmem %s0, 450
  %v301 = vld [vmem:[%s300] sm:$0x3]
  %s302 = scalar_lea.vmem %s1, 450
  %v303 = vld [vmem:[%s302] sm:$0x3]
  %304 = xla_tuple %v301, %v303
  %305 = xla_tuple %304
  %v306 = vsub.f32 %v301, %v303
  %307 = xla_tuple %v306
  %s308 = scalar_lea.vmem %s2, 450
  %309 = vst [vmem:[%s308] sm:$0x3] %v306
  %s310 = scalar_lea.vmem %s0, 482
  %v311 = vld [vmem:[%s310] sm:$0x3]
  %s312 = scalar_lea.vmem %s1, 482
  %v313 = vld [vmem:[%s312] sm:$0x3]
  %314 = xla_tuple %v311, %v313
  %315 = xla_tuple %314
  %v316 = vsub.f32 %v311, %v313
  %317 = xla_tuple %v316
  %s318 = scalar_lea.vmem %s2, 482
  %319 = vst [vmem:[%s318] sm:$0x3] %v316
  %s320 = scalar_lea.vmem %s0, 4
  %v321 = vld [vmem:[%s320] sm:$0x3]
  %s322 = scalar_lea.vmem %s1, 4
  %v323 = vld [vmem:[%s322] sm:$0x3]
  %324 = xla_tuple %v321, %v323
  %325 = xla_tuple %324
  %v326 = vsub.f32 %v321, %v323
  %327 = xla_tuple %v326
  %s328 = scalar_lea.vmem %s2, 4
  %329 = vst [vmem:[%s328] sm:$0x3] %v326
  %s330 = scalar_lea.vmem %s0, 36
  %v331 = vld [vmem:[%s330] sm:$0x3]
  %s332 = scalar_lea.vmem %s1, 36
  %v333 = vld [vmem:[%s332] sm:$0x3]
  %334 = xla_tuple %v331, %v333
  %335 = xla_tuple %334
  %v336 = vsub.f32 %v331, %v333
  %337 = xla_tuple %v336
  %s338 = scalar_lea.vmem %s2, 36
  %339 = vst [vmem:[%s338] sm:$0x3] %v336
  %s340 = scalar_lea.vmem %s0, 68
  %v341 = vld [vmem:[%s340] sm:$0x3]
  %s342 = scalar_lea.vmem %s1, 68
  %v343 = vld [vmem:[%s342] sm:$0x3]
  %344 = xla_tuple %v341, %v343
  %345 = xla_tuple %344
  %v346 = vsub.f32 %v341, %v343
  %347 = xla_tuple %v346
  %s348 = scalar_lea.vmem %s2, 68
  %349 = vst [vmem:[%s348] sm:$0x3] %v346
  %s350 = scalar_lea.vmem %s0, 100
  %v351 = vld [vmem:[%s350] sm:$0x3]
  %s352 = scalar_lea.vmem %s1, 100
  %v353 = vld [vmem:[%s352] sm:$0x3]
  %354 = xla_tuple %v351, %v353
  %355 = xla_tuple %354
  %v356 = vsub.f32 %v351, %v353
  %357 = xla_tuple %v356
  %s358 = scalar_lea.vmem %s2, 100
  %359 = vst [vmem:[%s358] sm:$0x3] %v356
  %s360 = scalar_lea.vmem %s0, 132
  %v361 = vld [vmem:[%s360] sm:$0x3]
  %s362 = scalar_lea.vmem %s1, 132
  %v363 = vld [vmem:[%s362] sm:$0x3]
  %364 = xla_tuple %v361, %v363
  %365 = xla_tuple %364
  %v366 = vsub.f32 %v361, %v363
  %367 = xla_tuple %v366
  %s368 = scalar_lea.vmem %s2, 132
  %369 = vst [vmem:[%s368] sm:$0x3] %v366
  %s370 = scalar_lea.vmem %s0, 164
  %v371 = vld [vmem:[%s370] sm:$0x3]
  %s372 = scalar_lea.vmem %s1, 164
  %v373 = vld [vmem:[%s372] sm:$0x3]
  %374 = xla_tuple %v371, %v373
  %375 = xla_tuple %374
  %v376 = vsub.f32 %v371, %v373
  %377 = xla_tuple %v376
  %s378 = scalar_lea.vmem %s2, 164
  %379 = vst [vmem:[%s378] sm:$0x3] %v376
  %s380 = scalar_lea.vmem %s0, 196
  %v381 = vld [vmem:[%s380] sm:$0x3]
  %s382 = scalar_lea.vmem %s1, 196
  %v383 = vld [vmem:[%s382] sm:$0x3]
  %384 = xla_tuple %v381, %v383
  %385 = xla_tuple %384
  %v386 = vsub.f32 %v381, %v383
  %387 = xla_tuple %v386
  %s388 = scalar_lea.vmem %s2, 196
  %389 = vst [vmem:[%s388] sm:$0x3] %v386
  %s390 = scalar_lea.vmem %s0, 228
  %v391 = vld [vmem:[%s390] sm:$0x3]
  %s392 = scalar_lea.vmem %s1, 228
  %v393 = vld [vmem:[%s392] sm:$0x3]
  %394 = xla_tuple %v391, %v393
  %395 = xla_tuple %394
  %v396 = vsub.f32 %v391, %v393
  %397 = xla_tuple %v396
  %s398 = scalar_lea.vmem %s2, 228
  %399 = vst [vmem:[%s398] sm:$0x3] %v396
  %s400 = scalar_lea.vmem %s0, 260
  %v401 = vld [vmem:[%s400] sm:$0x3]
  %s402 = scalar_lea.vmem %s1, 260
  %v403 = vld [vmem:[%s402] sm:$0x3]
  %404 = xla_tuple %v401, %v403
  %405 = xla_tuple %404
  %v406 = vsub.f32 %v401, %v403
  %407 = xla_tuple %v406
  %s408 = scalar_lea.vmem %s2, 260
  %409 = vst [vmem:[%s408] sm:$0x3] %v406
  %s410 = scalar_lea.vmem %s0, 292
  %v411 = vld [vmem:[%s410] sm:$0x3]
  %s412 = scalar_lea.vmem %s1, 292
  %v413 = vld [vmem:[%s412] sm:$0x3]
  %414 = xla_tuple %v411, %v413
  %415 = xla_tuple %414
  %v416 = vsub.f32 %v411, %v413
  %417 = xla_tuple %v416
  %s418 = scalar_lea.vmem %s2, 292
  %419 = vst [vmem:[%s418] sm:$0x3] %v416
  %s420 = scalar_lea.vmem %s0, 324
  %v421 = vld [vmem:[%s420] sm:$0x3]
  %s422 = scalar_lea.vmem %s1, 324
  %v423 = vld [vmem:[%s422] sm:$0x3]
  %424 = xla_tuple %v421, %v423
  %425 = xla_tuple %424
  %v426 = vsub.f32 %v421, %v423
  %427 = xla_tuple %v426
  %s428 = scalar_lea.vmem %s2, 324
  %429 = vst [vmem:[%s428] sm:$0x3] %v426
  %s430 = scalar_lea.vmem %s0, 356
  %v431 = vld [vmem:[%s430] sm:$0x3]
  %s432 = scalar_lea.vmem %s1, 356
  %v433 = vld [vmem:[%s432] sm:$0x3]
  %434 = xla_tuple %v431, %v433
  %435 = xla_tuple %434
  %v436 = vsub.f32 %v431, %v433
  %437 = xla_tuple %v436
  %s438 = scalar_lea.vmem %s2, 356
  %439 = vst [vmem:[%s438] sm:$0x3] %v436
  %s440 = scalar_lea.vmem %s0, 388
  %v441 = vld [vmem:[%s440] sm:$0x3]
  %s442 = scalar_lea.vmem %s1, 388
  %v443 = vld [vmem:[%s442] sm:$0x3]
  %444 = xla_tuple %v441, %v443
  %445 = xla_tuple %444
  %v446 = vsub.f32 %v441, %v443
  %447 = xla_tuple %v446
  %s448 = scalar_lea.vmem %s2, 388
  %449 = vst [vmem:[%s448] sm:$0x3] %v446
  %s450 = scalar_lea.vmem %s0, 420
  %v451 = vld [vmem:[%s450] sm:$0x3]
  %s452 = scalar_lea.vmem %s1, 420
  %v453 = vld [vmem:[%s452] sm:$0x3]
  %454 = xla_tuple %v451, %v453
  %455 = xla_tuple %454
  %v456 = vsub.f32 %v451, %v453
  %457 = xla_tuple %v456
  %s458 = scalar_lea.vmem %s2, 420
  %459 = vst [vmem:[%s458] sm:$0x3] %v456
  %s460 = scalar_lea.vmem %s0, 452
  %v461 = vld [vmem:[%s460] sm:$0x3]
  %s462 = scalar_lea.vmem %s1, 452
  %v463 = vld [vmem:[%s462] sm:$0x3]
  %464 = xla_tuple %v461, %v463
  %465 = xla_tuple %464
  %v466 = vsub.f32 %v461, %v463
  %467 = xla_tuple %v466
  %s468 = scalar_lea.vmem %s2, 452
  %469 = vst [vmem:[%s468] sm:$0x3] %v466
  %s470 = scalar_lea.vmem %s0, 484
  %v471 = vld [vmem:[%s470] sm:$0x3]
  %s472 = scalar_lea.vmem %s1, 484
  %v473 = vld [vmem:[%s472] sm:$0x3]
  %474 = xla_tuple %v471, %v473
  %475 = xla_tuple %474
  %v476 = vsub.f32 %v471, %v473
  %477 = xla_tuple %v476
  %s478 = scalar_lea.vmem %s2, 484
  %479 = vst [vmem:[%s478] sm:$0x3] %v476
  %s480 = scalar_lea.vmem %s0, 6
  %v481 = vld [vmem:[%s480] sm:$0x3]
  %s482 = scalar_lea.vmem %s1, 6
  %v483 = vld [vmem:[%s482] sm:$0x3]
  %484 = xla_tuple %v481, %v483
  %485 = xla_tuple %484
  %v486 = vsub.f32 %v481, %v483
  %487 = xla_tuple %v486
  %s488 = scalar_lea.vmem %s2, 6
  %489 = vst [vmem:[%s488] sm:$0x3] %v486
  %s490 = scalar_lea.vmem %s0, 38
  %v491 = vld [vmem:[%s490] sm:$0x3]
  %s492 = scalar_lea.vmem %s1, 38
  %v493 = vld [vmem:[%s492] sm:$0x3]
  %494 = xla_tuple %v491, %v493
  %495 = xla_tuple %494
  %v496 = vsub.f32 %v491, %v493
  %497 = xla_tuple %v496
  %s498 = scalar_lea.vmem %s2, 38
  %499 = vst [vmem:[%s498] sm:$0x3] %v496
  %s500 = scalar_lea.vmem %s0, 70
  %v501 = vld [vmem:[%s500] sm:$0x3]
  %s502 = scalar_lea.vmem %s1, 70
  %v503 = vld [vmem:[%s502] sm:$0x3]
  %504 = xla_tuple %v501, %v503
  %505 = xla_tuple %504
  %v506 = vsub.f32 %v501, %v503
  %507 = xla_tuple %v506
  %s508 = scalar_lea.vmem %s2, 70
  %509 = vst [vmem:[%s508] sm:$0x3] %v506
  %s510 = scalar_lea.vmem %s0, 102
  %v511 = vld [vmem:[%s510] sm:$0x3]
  %s512 = scalar_lea.vmem %s1, 102
  %v513 = vld [vmem:[%s512] sm:$0x3]
  %514 = xla_tuple %v511, %v513
  %515 = xla_tuple %514
  %v516 = vsub.f32 %v511, %v513
  %517 = xla_tuple %v516
  %s518 = scalar_lea.vmem %s2, 102
  %519 = vst [vmem:[%s518] sm:$0x3] %v516
  %s520 = scalar_lea.vmem %s0, 134
  %v521 = vld [vmem:[%s520] sm:$0x3]
  %s522 = scalar_lea.vmem %s1, 134
  %v523 = vld [vmem:[%s522] sm:$0x3]
  %524 = xla_tuple %v521, %v523
  %525 = xla_tuple %524
  %v526 = vsub.f32 %v521, %v523
  %527 = xla_tuple %v526
  %s528 = scalar_lea.vmem %s2, 134
  %529 = vst [vmem:[%s528] sm:$0x3] %v526
  %s530 = scalar_lea.vmem %s0, 166
  %v531 = vld [vmem:[%s530] sm:$0x3]
  %s532 = scalar_lea.vmem %s1, 166
  %v533 = vld [vmem:[%s532] sm:$0x3]
  %534 = xla_tuple %v531, %v533
  %535 = xla_tuple %534
  %v536 = vsub.f32 %v531, %v533
  %537 = xla_tuple %v536
  %s538 = scalar_lea.vmem %s2, 166
  %539 = vst [vmem:[%s538] sm:$0x3] %v536
  %s540 = scalar_lea.vmem %s0, 198
  %v541 = vld [vmem:[%s540] sm:$0x3]
  %s542 = scalar_lea.vmem %s1, 198
  %v543 = vld [vmem:[%s542] sm:$0x3]
  %544 = xla_tuple %v541, %v543
  %545 = xla_tuple %544
  %v546 = vsub.f32 %v541, %v543
  %547 = xla_tuple %v546
  %s548 = scalar_lea.vmem %s2, 198
  %549 = vst [vmem:[%s548] sm:$0x3] %v546
  %s550 = scalar_lea.vmem %s0, 230
  %v551 = vld [vmem:[%s550] sm:$0x3]
  %s552 = scalar_lea.vmem %s1, 230
  %v553 = vld [vmem:[%s552] sm:$0x3]
  %554 = xla_tuple %v551, %v553
  %555 = xla_tuple %554
  %v556 = vsub.f32 %v551, %v553
  %557 = xla_tuple %v556
  %s558 = scalar_lea.vmem %s2, 230
  %559 = vst [vmem:[%s558] sm:$0x3] %v556
  %s560 = scalar_lea.vmem %s0, 262
  %v561 = vld [vmem:[%s560] sm:$0x3]
  %s562 = scalar_lea.vmem %s1, 262
  %v563 = vld [vmem:[%s562] sm:$0x3]
  %564 = xla_tuple %v561, %v563
  %565 = xla_tuple %564
  %v566 = vsub.f32 %v561, %v563
  %567 = xla_tuple %v566
  %s568 = scalar_lea.vmem %s2, 262
  %569 = vst [vmem:[%s568] sm:$0x3] %v566
  %s570 = scalar_lea.vmem %s0, 294
  %v571 = vld [vmem:[%s570] sm:$0x3]
  %s572 = scalar_lea.vmem %s1, 294
  %v573 = vld [vmem:[%s572] sm:$0x3]
  %574 = xla_tuple %v571, %v573
  %575 = xla_tuple %574
  %v576 = vsub.f32 %v571, %v573
  %577 = xla_tuple %v576
  %s578 = scalar_lea.vmem %s2, 294
  %579 = vst [vmem:[%s578] sm:$0x3] %v576
  %s580 = scalar_lea.vmem %s0, 326
  %v581 = vld [vmem:[%s580] sm:$0x3]
  %s582 = scalar_lea.vmem %s1, 326
  %v583 = vld [vmem:[%s582] sm:$0x3]
  %584 = xla_tuple %v581, %v583
  %585 = xla_tuple %584
  %v586 = vsub.f32 %v581, %v583
  %587 = xla_tuple %v586
  %s588 = scalar_lea.vmem %s2, 326
  %589 = vst [vmem:[%s588] sm:$0x3] %v586
  %s590 = scalar_lea.vmem %s0, 358
  %v591 = vld [vmem:[%s590] sm:$0x3]
  %s592 = scalar_lea.vmem %s1, 358
  %v593 = vld [vmem:[%s592] sm:$0x3]
  %594 = xla_tuple %v591, %v593
  %595 = xla_tuple %594
  %v596 = vsub.f32 %v591, %v593
  %597 = xla_tuple %v596
  %s598 = scalar_lea.vmem %s2, 358
  %599 = vst [vmem:[%s598] sm:$0x3] %v596
  %s600 = scalar_lea.vmem %s0, 390
  %v601 = vld [vmem:[%s600] sm:$0x3]
  %s602 = scalar_lea.vmem %s1, 390
  %v603 = vld [vmem:[%s602] sm:$0x3]
  %604 = xla_tuple %v601, %v603
  %605 = xla_tuple %604
  %v606 = vsub.f32 %v601, %v603
  %607 = xla_tuple %v606
  %s608 = scalar_lea.vmem %s2, 390
  %609 = vst [vmem:[%s608] sm:$0x3] %v606
  %s610 = scalar_lea.vmem %s0, 422
  %v611 = vld [vmem:[%s610] sm:$0x3]
  %s612 = scalar_lea.vmem %s1, 422
  %v613 = vld [vmem:[%s612] sm:$0x3]
  %614 = xla_tuple %v611, %v613
  %615 = xla_tuple %614
  %v616 = vsub.f32 %v611, %v613
  %617 = xla_tuple %v616
  %s618 = scalar_lea.vmem %s2, 422
  %619 = vst [vmem:[%s618] sm:$0x3] %v616
  %s620 = scalar_lea.vmem %s0, 454
  %v621 = vld [vmem:[%s620] sm:$0x3]
  %s622 = scalar_lea.vmem %s1, 454
  %v623 = vld [vmem:[%s622] sm:$0x3]
  %624 = xla_tuple %v621, %v623
  %625 = xla_tuple %624
  %v626 = vsub.f32 %v621, %v623
  %627 = xla_tuple %v626
  %s628 = scalar_lea.vmem %s2, 454
  %629 = vst [vmem:[%s628] sm:$0x3] %v626
  %s630 = scalar_lea.vmem %s0, 486
  %v631 = vld [vmem:[%s630] sm:$0x3]
  %s632 = scalar_lea.vmem %s1, 486
  %v633 = vld [vmem:[%s632] sm:$0x3]
  %634 = xla_tuple %v631, %v633
  %635 = xla_tuple %634
  %v636 = vsub.f32 %v631, %v633
  %637 = xla_tuple %v636
  %s638 = scalar_lea.vmem %s2, 486
  %639 = vst [vmem:[%s638] sm:$0x3] %v636
  %s640 = scalar_lea.vmem %s0, 8
  %v641 = vld [vmem:[%s640] sm:$0x3]
  %s642 = scalar_lea.vmem %s1, 8
  %v643 = vld [vmem:[%s642] sm:$0x3]
  %644 = xla_tuple %v641, %v643
  %645 = xla_tuple %644
  %v646 = vsub.f32 %v641, %v643
  %647 = xla_tuple %v646
  %s648 = scalar_lea.vmem %s2, 8
  %649 = vst [vmem:[%s648] sm:$0x3] %v646
  %s650 = scalar_lea.vmem %s0, 40
  %v651 = vld [vmem:[%s650] sm:$0x3]
  %s652 = scalar_lea.vmem %s1, 40
  %v653 = vld [vmem:[%s652] sm:$0x3]
  %654 = xla_tuple %v651, %v653
  %655 = xla_tuple %654
  %v656 = vsub.f32 %v651, %v653
  %657 = xla_tuple %v656
  %s658 = scalar_lea.vmem %s2, 40
  %659 = vst [vmem:[%s658] sm:$0x3] %v656
  %s660 = scalar_lea.vmem %s0, 72
  %v661 = vld [vmem:[%s660] sm:$0x3]
  %s662 = scalar_lea.vmem %s1, 72
  %v663 = vld [vmem:[%s662] sm:$0x3]
  %664 = xla_tuple %v661, %v663
  %665 = xla_tuple %664
  %v666 = vsub.f32 %v661, %v663
  %667 = xla_tuple %v666
  %s668 = scalar_lea.vmem %s2, 72
  %669 = vst [vmem:[%s668] sm:$0x3] %v666
  %s670 = scalar_lea.vmem %s0, 104
  %v671 = vld [vmem:[%s670] sm:$0x3]
  %s672 = scalar_lea.vmem %s1, 104
  %v673 = vld [vmem:[%s672] sm:$0x3]
  %674 = xla_tuple %v671, %v673
  %675 = xla_tuple %674
  %v676 = vsub.f32 %v671, %v673
  %677 = xla_tuple %v676
  %s678 = scalar_lea.vmem %s2, 104
  %679 = vst [vmem:[%s678] sm:$0x3] %v676
  %s680 = scalar_lea.vmem %s0, 136
  %v681 = vld [vmem:[%s680] sm:$0x3]
  %s682 = scalar_lea.vmem %s1, 136
  %v683 = vld [vmem:[%s682] sm:$0x3]
  %684 = xla_tuple %v681, %v683
  %685 = xla_tuple %684
  %v686 = vsub.f32 %v681, %v683
  %687 = xla_tuple %v686
  %s688 = scalar_lea.vmem %s2, 136
  %689 = vst [vmem:[%s688] sm:$0x3] %v686
  %s690 = scalar_lea.vmem %s0, 168
  %v691 = vld [vmem:[%s690] sm:$0x3]
  %s692 = scalar_lea.vmem %s1, 168
  %v693 = vld [vmem:[%s692] sm:$0x3]
  %694 = xla_tuple %v691, %v693
  %695 = xla_tuple %694
  %v696 = vsub.f32 %v691, %v693
  %697 = xla_tuple %v696
  %s698 = scalar_lea.vmem %s2, 168
  %699 = vst [vmem:[%s698] sm:$0x3] %v696
  %s700 = scalar_lea.vmem %s0, 200
  %v701 = vld [vmem:[%s700] sm:$0x3]
  %s702 = scalar_lea.vmem %s1, 200
  %v703 = vld [vmem:[%s702] sm:$0x3]
  %704 = xla_tuple %v701, %v703
  %705 = xla_tuple %704
  %v706 = vsub.f32 %v701, %v703
  %707 = xla_tuple %v706
  %s708 = scalar_lea.vmem %s2, 200
  %709 = vst [vmem:[%s708] sm:$0x3] %v706
  %s710 = scalar_lea.vmem %s0, 232
  %v711 = vld [vmem:[%s710] sm:$0x3]
  %s712 = scalar_lea.vmem %s1, 232
  %v713 = vld [vmem:[%s712] sm:$0x3]
  %714 = xla_tuple %v711, %v713
  %715 = xla_tuple %714
  %v716 = vsub.f32 %v711, %v713
  %717 = xla_tuple %v716
  %s718 = scalar_lea.vmem %s2, 232
  %719 = vst [vmem:[%s718] sm:$0x3] %v716
  %s720 = scalar_lea.vmem %s0, 264
  %v721 = vld [vmem:[%s720] sm:$0x3]
  %s722 = scalar_lea.vmem %s1, 264
  %v723 = vld [vmem:[%s722] sm:$0x3]
  %724 = xla_tuple %v721, %v723
  %725 = xla_tuple %724
  %v726 = vsub.f32 %v721, %v723
  %727 = xla_tuple %v726
  %s728 = scalar_lea.vmem %s2, 264
  %729 = vst [vmem:[%s728] sm:$0x3] %v726
  %s730 = scalar_lea.vmem %s0, 296
  %v731 = vld [vmem:[%s730] sm:$0x3]
  %s732 = scalar_lea.vmem %s1, 296
  %v733 = vld [vmem:[%s732] sm:$0x3]
  %734 = xla_tuple %v731, %v733
  %735 = xla_tuple %734
  %v736 = vsub.f32 %v731, %v733
  %737 = xla_tuple %v736
  %s738 = scalar_lea.vmem %s2, 296
  %739 = vst [vmem:[%s738] sm:$0x3] %v736
  %s740 = scalar_lea.vmem %s0, 328
  %v741 = vld [vmem:[%s740] sm:$0x3]
  %s742 = scalar_lea.vmem %s1, 328
  %v743 = vld [vmem:[%s742] sm:$0x3]
  %744 = xla_tuple %v741, %v743
  %745 = xla_tuple %744
  %v746 = vsub.f32 %v741, %v743
  %747 = xla_tuple %v746
  %s748 = scalar_lea.vmem %s2, 328
  %749 = vst [vmem:[%s748] sm:$0x3] %v746
  %s750 = scalar_lea.vmem %s0, 360
  %v751 = vld [vmem:[%s750] sm:$0x3]
  %s752 = scalar_lea.vmem %s1, 360
  %v753 = vld [vmem:[%s752] sm:$0x3]
  %754 = xla_tuple %v751, %v753
  %755 = xla_tuple %754
  %v756 = vsub.f32 %v751, %v753
  %757 = xla_tuple %v756
  %s758 = scalar_lea.vmem %s2, 360
  %759 = vst [vmem:[%s758] sm:$0x3] %v756
  %s760 = scalar_lea.vmem %s0, 392
  %v761 = vld [vmem:[%s760] sm:$0x3]
  %s762 = scalar_lea.vmem %s1, 392
  %v763 = vld [vmem:[%s762] sm:$0x3]
  %764 = xla_tuple %v761, %v763
  %765 = xla_tuple %764
  %v766 = vsub.f32 %v761, %v763
  %767 = xla_tuple %v766
  %s768 = scalar_lea.vmem %s2, 392
  %769 = vst [vmem:[%s768] sm:$0x3] %v766
  %s770 = scalar_lea.vmem %s0, 424
  %v771 = vld [vmem:[%s770] sm:$0x3]
  %s772 = scalar_lea.vmem %s1, 424
  %v773 = vld [vmem:[%s772] sm:$0x3]
  %774 = xla_tuple %v771, %v773
  %775 = xla_tuple %774
  %v776 = vsub.f32 %v771, %v773
  %777 = xla_tuple %v776
  %s778 = scalar_lea.vmem %s2, 424
  %779 = vst [vmem:[%s778] sm:$0x3] %v776
  %s780 = scalar_lea.vmem %s0, 456
  %v781 = vld [vmem:[%s780] sm:$0x3]
  %s782 = scalar_lea.vmem %s1, 456
  %v783 = vld [vmem:[%s782] sm:$0x3]
  %784 = xla_tuple %v781, %v783
  %785 = xla_tuple %784
  %v786 = vsub.f32 %v781, %v783
  %787 = xla_tuple %v786
  %s788 = scalar_lea.vmem %s2, 456
  %789 = vst [vmem:[%s788] sm:$0x3] %v786
  %s790 = scalar_lea.vmem %s0, 488
  %v791 = vld [vmem:[%s790] sm:$0x3]
  %s792 = scalar_lea.vmem %s1, 488
  %v793 = vld [vmem:[%s792] sm:$0x3]
  %794 = xla_tuple %v791, %v793
  %795 = xla_tuple %794
  %v796 = vsub.f32 %v791, %v793
  %797 = xla_tuple %v796
  %s798 = scalar_lea.vmem %s2, 488
  %799 = vst [vmem:[%s798] sm:$0x3] %v796
  %s800 = scalar_lea.vmem %s0, 10
  %v801 = vld [vmem:[%s800] sm:$0x3]
  %s802 = scalar_lea.vmem %s1, 10
  %v803 = vld [vmem:[%s802] sm:$0x3]
  %804 = xla_tuple %v801, %v803
  %805 = xla_tuple %804
  %v806 = vsub.f32 %v801, %v803
  %807 = xla_tuple %v806
  %s808 = scalar_lea.vmem %s2, 10
  %809 = vst [vmem:[%s808] sm:$0x3] %v806
  %s810 = scalar_lea.vmem %s0, 42
  %v811 = vld [vmem:[%s810] sm:$0x3]
  %s812 = scalar_lea.vmem %s1, 42
  %v813 = vld [vmem:[%s812] sm:$0x3]
  %814 = xla_tuple %v811, %v813
  %815 = xla_tuple %814
  %v816 = vsub.f32 %v811, %v813
  %817 = xla_tuple %v816
  %s818 = scalar_lea.vmem %s2, 42
  %819 = vst [vmem:[%s818] sm:$0x3] %v816
  %s820 = scalar_lea.vmem %s0, 74
  %v821 = vld [vmem:[%s820] sm:$0x3]
  %s822 = scalar_lea.vmem %s1, 74
  %v823 = vld [vmem:[%s822] sm:$0x3]
  %824 = xla_tuple %v821, %v823
  %825 = xla_tuple %824
  %v826 = vsub.f32 %v821, %v823
  %827 = xla_tuple %v826
  %s828 = scalar_lea.vmem %s2, 74
  %829 = vst [vmem:[%s828] sm:$0x3] %v826
  %s830 = scalar_lea.vmem %s0, 106
  %v831 = vld [vmem:[%s830] sm:$0x3]
  %s832 = scalar_lea.vmem %s1, 106
  %v833 = vld [vmem:[%s832] sm:$0x3]
  %834 = xla_tuple %v831, %v833
  %835 = xla_tuple %834
  %v836 = vsub.f32 %v831, %v833
  %837 = xla_tuple %v836
  %s838 = scalar_lea.vmem %s2, 106
  %839 = vst [vmem:[%s838] sm:$0x3] %v836
  %s840 = scalar_lea.vmem %s0, 138
  %v841 = vld [vmem:[%s840] sm:$0x3]
  %s842 = scalar_lea.vmem %s1, 138
  %v843 = vld [vmem:[%s842] sm:$0x3]
  %844 = xla_tuple %v841, %v843
  %845 = xla_tuple %844
  %v846 = vsub.f32 %v841, %v843
  %847 = xla_tuple %v846
  %s848 = scalar_lea.vmem %s2, 138
  %849 = vst [vmem:[%s848] sm:$0x3] %v846
  %s850 = scalar_lea.vmem %s0, 170
  %v851 = vld [vmem:[%s850] sm:$0x3]
  %s852 = scalar_lea.vmem %s1, 170
  %v853 = vld [vmem:[%s852] sm:$0x3]
  %854 = xla_tuple %v851, %v853
  %855 = xla_tuple %854
  %v856 = vsub.f32 %v851, %v853
  %857 = xla_tuple %v856
  %s858 = scalar_lea.vmem %s2, 170
  %859 = vst [vmem:[%s858] sm:$0x3] %v856
  %s860 = scalar_lea.vmem %s0, 202
  %v861 = vld [vmem:[%s860] sm:$0x3]
  %s862 = scalar_lea.vmem %s1, 202
  %v863 = vld [vmem:[%s862] sm:$0x3]
  %864 = xla_tuple %v861, %v863
  %865 = xla_tuple %864
  %v866 = vsub.f32 %v861, %v863
  %867 = xla_tuple %v866
  %s868 = scalar_lea.vmem %s2, 202
  %869 = vst [vmem:[%s868] sm:$0x3] %v866
  %s870 = scalar_lea.vmem %s0, 234
  %v871 = vld [vmem:[%s870] sm:$0x3]
  %s872 = scalar_lea.vmem %s1, 234
  %v873 = vld [vmem:[%s872] sm:$0x3]
  %874 = xla_tuple %v871, %v873
  %875 = xla_tuple %874
  %v876 = vsub.f32 %v871, %v873
  %877 = xla_tuple %v876
  %s878 = scalar_lea.vmem %s2, 234
  %879 = vst [vmem:[%s878] sm:$0x3] %v876
  %s880 = scalar_lea.vmem %s0, 266
  %v881 = vld [vmem:[%s880] sm:$0x3]
  %s882 = scalar_lea.vmem %s1, 266
  %v883 = vld [vmem:[%s882] sm:$0x3]
  %884 = xla_tuple %v881, %v883
  %885 = xla_tuple %884
  %v886 = vsub.f32 %v881, %v883
  %887 = xla_tuple %v886
  %s888 = scalar_lea.vmem %s2, 266
  %889 = vst [vmem:[%s888] sm:$0x3] %v886
  %s890 = scalar_lea.vmem %s0, 298
  %v891 = vld [vmem:[%s890] sm:$0x3]
  %s892 = scalar_lea.vmem %s1, 298
  %v893 = vld [vmem:[%s892] sm:$0x3]
  %894 = xla_tuple %v891, %v893
  %895 = xla_tuple %894
  %v896 = vsub.f32 %v891, %v893
  %897 = xla_tuple %v896
  %s898 = scalar_lea.vmem %s2, 298
  %899 = vst [vmem:[%s898] sm:$0x3] %v896
  %s900 = scalar_lea.vmem %s0, 330
  %v901 = vld [vmem:[%s900] sm:$0x3]
  %s902 = scalar_lea.vmem %s1, 330
  %v903 = vld [vmem:[%s902] sm:$0x3]
  %904 = xla_tuple %v901, %v903
  %905 = xla_tuple %904
  %v906 = vsub.f32 %v901, %v903
  %907 = xla_tuple %v906
  %s908 = scalar_lea.vmem %s2, 330
  %909 = vst [vmem:[%s908] sm:$0x3] %v906
  %s910 = scalar_lea.vmem %s0, 362
  %v911 = vld [vmem:[%s910] sm:$0x3]
  %s912 = scalar_lea.vmem %s1, 362
  %v913 = vld [vmem:[%s912] sm:$0x3]
  %914 = xla_tuple %v911, %v913
  %915 = xla_tuple %914
  %v916 = vsub.f32 %v911, %v913
  %917 = xla_tuple %v916
  %s918 = scalar_lea.vmem %s2, 362
  %919 = vst [vmem:[%s918] sm:$0x3] %v916
  %s920 = scalar_lea.vmem %s0, 394
  %v921 = vld [vmem:[%s920] sm:$0x3]
  %s922 = scalar_lea.vmem %s1, 394
  %v923 = vld [vmem:[%s922] sm:$0x3]
  %924 = xla_tuple %v921, %v923
  %925 = xla_tuple %924
  %v926 = vsub.f32 %v921, %v923
  %927 = xla_tuple %v926
  %s928 = scalar_lea.vmem %s2, 394
  %929 = vst [vmem:[%s928] sm:$0x3] %v926
  %s930 = scalar_lea.vmem %s0, 426
  %v931 = vld [vmem:[%s930] sm:$0x3]
  %s932 = scalar_lea.vmem %s1, 426
  %v933 = vld [vmem:[%s932] sm:$0x3]
  %934 = xla_tuple %v931, %v933
  %935 = xla_tuple %934
  %v936 = vsub.f32 %v931, %v933
  %937 = xla_tuple %v936
  %s938 = scalar_lea.vmem %s2, 426
  %939 = vst [vmem:[%s938] sm:$0x3] %v936
  %s940 = scalar_lea.vmem %s0, 458
  %v941 = vld [vmem:[%s940] sm:$0x3]
  %s942 = scalar_lea.vmem %s1, 458
  %v943 = vld [vmem:[%s942] sm:$0x3]
  %944 = xla_tuple %v941, %v943
  %945 = xla_tuple %944
  %v946 = vsub.f32 %v941, %v943
  %947 = xla_tuple %v946
  %s948 = scalar_lea.vmem %s2, 458
  %949 = vst [vmem:[%s948] sm:$0x3] %v946
  %s950 = scalar_lea.vmem %s0, 490
  %v951 = vld [vmem:[%s950] sm:$0x3]
  %s952 = scalar_lea.vmem %s1, 490
  %v953 = vld [vmem:[%s952] sm:$0x3]
  %954 = xla_tuple %v951, %v953
  %955 = xla_tuple %954
  %v956 = vsub.f32 %v951, %v953
  %957 = xla_tuple %v956
  %s958 = scalar_lea.vmem %s2, 490
  %959 = vst [vmem:[%s958] sm:$0x3] %v956
  %s960 = scalar_lea.vmem %s0, 12
  %v961 = vld [vmem:[%s960] sm:$0x3]
  %s962 = scalar_lea.vmem %s1, 12
  %v963 = vld [vmem:[%s962] sm:$0x3]
  %964 = xla_tuple %v961, %v963
  %965 = xla_tuple %964
  %v966 = vsub.f32 %v961, %v963
  %967 = xla_tuple %v966
  %s968 = scalar_lea.vmem %s2, 12
  %969 = vst [vmem:[%s968] sm:$0x3] %v966
  %s970 = scalar_lea.vmem %s0, 44
  %v971 = vld [vmem:[%s970] sm:$0x3]
  %s972 = scalar_lea.vmem %s1, 44
  %v973 = vld [vmem:[%s972] sm:$0x3]
  %974 = xla_tuple %v971, %v973
  %975 = xla_tuple %974
  %v976 = vsub.f32 %v971, %v973
  %977 = xla_tuple %v976
  %s978 = scalar_lea.vmem %s2, 44
  %979 = vst [vmem:[%s978] sm:$0x3] %v976
  %s980 = scalar_lea.vmem %s0, 76
  %v981 = vld [vmem:[%s980] sm:$0x3]
  %s982 = scalar_lea.vmem %s1, 76
  %v983 = vld [vmem:[%s982] sm:$0x3]
  %984 = xla_tuple %v981, %v983
  %985 = xla_tuple %984
  %v986 = vsub.f32 %v981, %v983
  %987 = xla_tuple %v986
  %s988 = scalar_lea.vmem %s2, 76
  %989 = vst [vmem:[%s988] sm:$0x3] %v986
  %s990 = scalar_lea.vmem %s0, 108
  %v991 = vld [vmem:[%s990] sm:$0x3]
  %s992 = scalar_lea.vmem %s1, 108
  %v993 = vld [vmem:[%s992] sm:$0x3]
  %994 = xla_tuple %v991, %v993
  %995 = xla_tuple %994
  %v996 = vsub.f32 %v991, %v993
  %997 = xla_tuple %v996
  %s998 = scalar_lea.vmem %s2, 108
  %999 = vst [vmem:[%s998] sm:$0x3] %v996
  %s1000 = scalar_lea.vmem %s0, 140
  %v1001 = vld [vmem:[%s1000] sm:$0x3]
  %s1002 = scalar_lea.vmem %s1, 140
  %v1003 = vld [vmem:[%s1002] sm:$0x3]
  %1004 = xla_tuple %v1001, %v1003
  %1005 = xla_tuple %1004
  %v1006 = vsub.f32 %v1001, %v1003
  %1007 = xla_tuple %v1006
  %s1008 = scalar_lea.vmem %s2, 140
  %1009 = vst [vmem:[%s1008] sm:$0x3] %v1006
  %s1010 = scalar_lea.vmem %s0, 172
  %v1011 = vld [vmem:[%s1010] sm:$0x3]
  %s1012 = scalar_lea.vmem %s1, 172
  %v1013 = vld [vmem:[%s1012] sm:$0x3]
  %1014 = xla_tuple %v1011, %v1013
  %1015 = xla_tuple %1014
  %v1016 = vsub.f32 %v1011, %v1013
  %1017 = xla_tuple %v1016
  %s1018 = scalar_lea.vmem %s2, 172
  %1019 = vst [vmem:[%s1018] sm:$0x3] %v1016
  %s1020 = scalar_lea.vmem %s0, 204
  %v1021 = vld [vmem:[%s1020] sm:$0x3]
  %s1022 = scalar_lea.vmem %s1, 204
  %v1023 = vld [vmem:[%s1022] sm:$0x3]
  %1024 = xla_tuple %v1021, %v1023
  %1025 = xla_tuple %1024
  %v1026 = vsub.f32 %v1021, %v1023
  %1027 = xla_tuple %v1026
  %s1028 = scalar_lea.vmem %s2, 204
  %1029 = vst [vmem:[%s1028] sm:$0x3] %v1026
  %s1030 = scalar_lea.vmem %s0, 236
  %v1031 = vld [vmem:[%s1030] sm:$0x3]
  %s1032 = scalar_lea.vmem %s1, 236
  %v1033 = vld [vmem:[%s1032] sm:$0x3]
  %1034 = xla_tuple %v1031, %v1033
  %1035 = xla_tuple %1034
  %v1036 = vsub.f32 %v1031, %v1033
  %1037 = xla_tuple %v1036
  %s1038 = scalar_lea.vmem %s2, 236
  %1039 = vst [vmem:[%s1038] sm:$0x3] %v1036
  %s1040 = scalar_lea.vmem %s0, 268
  %v1041 = vld [vmem:[%s1040] sm:$0x3]
  %s1042 = scalar_lea.vmem %s1, 268
  %v1043 = vld [vmem:[%s1042] sm:$0x3]
  %1044 = xla_tuple %v1041, %v1043
  %1045 = xla_tuple %1044
  %v1046 = vsub.f32 %v1041, %v1043
  %1047 = xla_tuple %v1046
  %s1048 = scalar_lea.vmem %s2, 268
  %1049 = vst [vmem:[%s1048] sm:$0x3] %v1046
  %s1050 = scalar_lea.vmem %s0, 300
  %v1051 = vld [vmem:[%s1050] sm:$0x3]
  %s1052 = scalar_lea.vmem %s1, 300
  %v1053 = vld [vmem:[%s1052] sm:$0x3]
  %1054 = xla_tuple %v1051, %v1053
  %1055 = xla_tuple %1054
  %v1056 = vsub.f32 %v1051, %v1053
  %1057 = xla_tuple %v1056
  %s1058 = scalar_lea.vmem %s2, 300
  %1059 = vst [vmem:[%s1058] sm:$0x3] %v1056
  %s1060 = scalar_lea.vmem %s0, 332
  %v1061 = vld [vmem:[%s1060] sm:$0x3]
  %s1062 = scalar_lea.vmem %s1, 332
  %v1063 = vld [vmem:[%s1062] sm:$0x3]
  %1064 = xla_tuple %v1061, %v1063
  %1065 = xla_tuple %1064
  %v1066 = vsub.f32 %v1061, %v1063
  %1067 = xla_tuple %v1066
  %s1068 = scalar_lea.vmem %s2, 332
  %1069 = vst [vmem:[%s1068] sm:$0x3] %v1066
  %s1070 = scalar_lea.vmem %s0, 364
  %v1071 = vld [vmem:[%s1070] sm:$0x3]
  %s1072 = scalar_lea.vmem %s1, 364
  %v1073 = vld [vmem:[%s1072] sm:$0x3]
  %1074 = xla_tuple %v1071, %v1073
  %1075 = xla_tuple %1074
  %v1076 = vsub.f32 %v1071, %v1073
  %1077 = xla_tuple %v1076
  %s1078 = scalar_lea.vmem %s2, 364
  %1079 = vst [vmem:[%s1078] sm:$0x3] %v1076
  %s1080 = scalar_lea.vmem %s0, 396
  %v1081 = vld [vmem:[%s1080] sm:$0x3]
  %s1082 = scalar_lea.vmem %s1, 396
  %v1083 = vld [vmem:[%s1082] sm:$0x3]
  %1084 = xla_tuple %v1081, %v1083
  %1085 = xla_tuple %1084
  %v1086 = vsub.f32 %v1081, %v1083
  %1087 = xla_tuple %v1086
  %s1088 = scalar_lea.vmem %s2, 396
  %1089 = vst [vmem:[%s1088] sm:$0x3] %v1086
  %s1090 = scalar_lea.vmem %s0, 428
  %v1091 = vld [vmem:[%s1090] sm:$0x3]
  %s1092 = scalar_lea.vmem %s1, 428
  %v1093 = vld [vmem:[%s1092] sm:$0x3]
  %1094 = xla_tuple %v1091, %v1093
  %1095 = xla_tuple %1094
  %v1096 = vsub.f32 %v1091, %v1093
  %1097 = xla_tuple %v1096
  %s1098 = scalar_lea.vmem %s2, 428
  %1099 = vst [vmem:[%s1098] sm:$0x3] %v1096
  %s1100 = scalar_lea.vmem %s0, 460
  %v1101 = vld [vmem:[%s1100] sm:$0x3]
  %s1102 = scalar_lea.vmem %s1, 460
  %v1103 = vld [vmem:[%s1102] sm:$0x3]
  %1104 = xla_tuple %v1101, %v1103
  %1105 = xla_tuple %1104
  %v1106 = vsub.f32 %v1101, %v1103
  %1107 = xla_tuple %v1106
  %s1108 = scalar_lea.vmem %s2, 460
  %1109 = vst [vmem:[%s1108] sm:$0x3] %v1106
  %s1110 = scalar_lea.vmem %s0, 492
  %v1111 = vld [vmem:[%s1110] sm:$0x3]
  %s1112 = scalar_lea.vmem %s1, 492
  %v1113 = vld [vmem:[%s1112] sm:$0x3]
  %1114 = xla_tuple %v1111, %v1113
  %1115 = xla_tuple %1114
  %v1116 = vsub.f32 %v1111, %v1113
  %1117 = xla_tuple %v1116
  %s1118 = scalar_lea.vmem %s2, 492
  %1119 = vst [vmem:[%s1118] sm:$0x3] %v1116
  %s1120 = scalar_lea.vmem %s0, 14
  %v1121 = vld [vmem:[%s1120] sm:$0x3]
  %s1122 = scalar_lea.vmem %s1, 14
  %v1123 = vld [vmem:[%s1122] sm:$0x3]
  %1124 = xla_tuple %v1121, %v1123
  %1125 = xla_tuple %1124
  %v1126 = vsub.f32 %v1121, %v1123
  %1127 = xla_tuple %v1126
  %s1128 = scalar_lea.vmem %s2, 14
  %1129 = vst [vmem:[%s1128] sm:$0x3] %v1126
  %s1130 = scalar_lea.vmem %s0, 46
  %v1131 = vld [vmem:[%s1130] sm:$0x3]
  %s1132 = scalar_lea.vmem %s1, 46
  %v1133 = vld [vmem:[%s1132] sm:$0x3]
  %1134 = xla_tuple %v1131, %v1133
  %1135 = xla_tuple %1134
  %v1136 = vsub.f32 %v1131, %v1133
  %1137 = xla_tuple %v1136
  %s1138 = scalar_lea.vmem %s2, 46
  %1139 = vst [vmem:[%s1138] sm:$0x3] %v1136
  %s1140 = scalar_lea.vmem %s0, 78
  %v1141 = vld [vmem:[%s1140] sm:$0x3]
  %s1142 = scalar_lea.vmem %s1, 78
  %v1143 = vld [vmem:[%s1142] sm:$0x3]
  %1144 = xla_tuple %v1141, %v1143
  %1145 = xla_tuple %1144
  %v1146 = vsub.f32 %v1141, %v1143
  %1147 = xla_tuple %v1146
  %s1148 = scalar_lea.vmem %s2, 78
  %1149 = vst [vmem:[%s1148] sm:$0x3] %v1146
  %s1150 = scalar_lea.vmem %s0, 110
  %v1151 = vld [vmem:[%s1150] sm:$0x3]
  %s1152 = scalar_lea.vmem %s1, 110
  %v1153 = vld [vmem:[%s1152] sm:$0x3]
  %1154 = xla_tuple %v1151, %v1153
  %1155 = xla_tuple %1154
  %v1156 = vsub.f32 %v1151, %v1153
  %1157 = xla_tuple %v1156
  %s1158 = scalar_lea.vmem %s2, 110
  %1159 = vst [vmem:[%s1158] sm:$0x3] %v1156
  %s1160 = scalar_lea.vmem %s0, 142
  %v1161 = vld [vmem:[%s1160] sm:$0x3]
  %s1162 = scalar_lea.vmem %s1, 142
  %v1163 = vld [vmem:[%s1162] sm:$0x3]
  %1164 = xla_tuple %v1161, %v1163
  %1165 = xla_tuple %1164
  %v1166 = vsub.f32 %v1161, %v1163
  %1167 = xla_tuple %v1166
  %s1168 = scalar_lea.vmem %s2, 142
  %1169 = vst [vmem:[%s1168] sm:$0x3] %v1166
  %s1170 = scalar_lea.vmem %s0, 174
  %v1171 = vld [vmem:[%s1170] sm:$0x3]
  %s1172 = scalar_lea.vmem %s1, 174
  %v1173 = vld [vmem:[%s1172] sm:$0x3]
  %1174 = xla_tuple %v1171, %v1173
  %1175 = xla_tuple %1174
  %v1176 = vsub.f32 %v1171, %v1173
  %1177 = xla_tuple %v1176
  %s1178 = scalar_lea.vmem %s2, 174
  %1179 = vst [vmem:[%s1178] sm:$0x3] %v1176
  %s1180 = scalar_lea.vmem %s0, 206
  %v1181 = vld [vmem:[%s1180] sm:$0x3]
  %s1182 = scalar_lea.vmem %s1, 206
  %v1183 = vld [vmem:[%s1182] sm:$0x3]
  %1184 = xla_tuple %v1181, %v1183
  %1185 = xla_tuple %1184
  %v1186 = vsub.f32 %v1181, %v1183
  %1187 = xla_tuple %v1186
  %s1188 = scalar_lea.vmem %s2, 206
  %1189 = vst [vmem:[%s1188] sm:$0x3] %v1186
  %s1190 = scalar_lea.vmem %s0, 238
  %v1191 = vld [vmem:[%s1190] sm:$0x3]
  %s1192 = scalar_lea.vmem %s1, 238
  %v1193 = vld [vmem:[%s1192] sm:$0x3]
  %1194 = xla_tuple %v1191, %v1193
  %1195 = xla_tuple %1194
  %v1196 = vsub.f32 %v1191, %v1193
  %1197 = xla_tuple %v1196
  %s1198 = scalar_lea.vmem %s2, 238
  %1199 = vst [vmem:[%s1198] sm:$0x3] %v1196
  %s1200 = scalar_lea.vmem %s0, 270
  %v1201 = vld [vmem:[%s1200] sm:$0x3]
  %s1202 = scalar_lea.vmem %s1, 270
  %v1203 = vld [vmem:[%s1202] sm:$0x3]
  %1204 = xla_tuple %v1201, %v1203
  %1205 = xla_tuple %1204
  %v1206 = vsub.f32 %v1201, %v1203
  %1207 = xla_tuple %v1206
  %s1208 = scalar_lea.vmem %s2, 270
  %1209 = vst [vmem:[%s1208] sm:$0x3] %v1206
  %s1210 = scalar_lea.vmem %s0, 302
  %v1211 = vld [vmem:[%s1210] sm:$0x3]
  %s1212 = scalar_lea.vmem %s1, 302
  %v1213 = vld [vmem:[%s1212] sm:$0x3]
  %1214 = xla_tuple %v1211, %v1213
  %1215 = xla_tuple %1214
  %v1216 = vsub.f32 %v1211, %v1213
  %1217 = xla_tuple %v1216
  %s1218 = scalar_lea.vmem %s2, 302
  %1219 = vst [vmem:[%s1218] sm:$0x3] %v1216
  %s1220 = scalar_lea.vmem %s0, 334
  %v1221 = vld [vmem:[%s1220] sm:$0x3]
  %s1222 = scalar_lea.vmem %s1, 334
  %v1223 = vld [vmem:[%s1222] sm:$0x3]
  %1224 = xla_tuple %v1221, %v1223
  %1225 = xla_tuple %1224
  %v1226 = vsub.f32 %v1221, %v1223
  %1227 = xla_tuple %v1226
  %s1228 = scalar_lea.vmem %s2, 334
  %1229 = vst [vmem:[%s1228] sm:$0x3] %v1226
  %s1230 = scalar_lea.vmem %s0, 366
  %v1231 = vld [vmem:[%s1230] sm:$0x3]
  %s1232 = scalar_lea.vmem %s1, 366
  %v1233 = vld [vmem:[%s1232] sm:$0x3]
  %1234 = xla_tuple %v1231, %v1233
  %1235 = xla_tuple %1234
  %v1236 = vsub.f32 %v1231, %v1233
  %1237 = xla_tuple %v1236
  %s1238 = scalar_lea.vmem %s2, 366
  %1239 = vst [vmem:[%s1238] sm:$0x3] %v1236
  %s1240 = scalar_lea.vmem %s0, 398
  %v1241 = vld [vmem:[%s1240] sm:$0x3]
  %s1242 = scalar_lea.vmem %s1, 398
  %v1243 = vld [vmem:[%s1242] sm:$0x3]
  %1244 = xla_tuple %v1241, %v1243
  %1245 = xla_tuple %1244
  %v1246 = vsub.f32 %v1241, %v1243
  %1247 = xla_tuple %v1246
  %s1248 = scalar_lea.vmem %s2, 398
  %1249 = vst [vmem:[%s1248] sm:$0x3] %v1246
  %s1250 = scalar_lea.vmem %s0, 430
  %v1251 = vld [vmem:[%s1250] sm:$0x3]
  %s1252 = scalar_lea.vmem %s1, 430
  %v1253 = vld [vmem:[%s1252] sm:$0x3]
  %1254 = xla_tuple %v1251, %v1253
  %1255 = xla_tuple %1254
  %v1256 = vsub.f32 %v1251, %v1253
  %1257 = xla_tuple %v1256
  %s1258 = scalar_lea.vmem %s2, 430
  %1259 = vst [vmem:[%s1258] sm:$0x3] %v1256
  %s1260 = scalar_lea.vmem %s0, 462
  %v1261 = vld [vmem:[%s1260] sm:$0x3]
  %s1262 = scalar_lea.vmem %s1, 462
  %v1263 = vld [vmem:[%s1262] sm:$0x3]
  %1264 = xla_tuple %v1261, %v1263
  %1265 = xla_tuple %1264
  %v1266 = vsub.f32 %v1261, %v1263
  %1267 = xla_tuple %v1266
  %s1268 = scalar_lea.vmem %s2, 462
  %1269 = vst [vmem:[%s1268] sm:$0x3] %v1266
  %s1270 = scalar_lea.vmem %s0, 494
  %v1271 = vld [vmem:[%s1270] sm:$0x3]
  %s1272 = scalar_lea.vmem %s1, 494
  %v1273 = vld [vmem:[%s1272] sm:$0x3]
  %1274 = xla_tuple %v1271, %v1273
  %1275 = xla_tuple %1274
  %v1276 = vsub.f32 %v1271, %v1273
  %1277 = xla_tuple %v1276
  %s1278 = scalar_lea.vmem %s2, 494
  %1279 = vst [vmem:[%s1278] sm:$0x3] %v1276
  %s1280 = scalar_lea.vmem %s0, 16
  %v1281 = vld [vmem:[%s1280] sm:$0x3]
  %s1282 = scalar_lea.vmem %s1, 16
  %v1283 = vld [vmem:[%s1282] sm:$0x3]
  %1284 = xla_tuple %v1281, %v1283
  %1285 = xla_tuple %1284
  %v1286 = vsub.f32 %v1281, %v1283
  %1287 = xla_tuple %v1286
  %s1288 = scalar_lea.vmem %s2, 16
  %1289 = vst [vmem:[%s1288] sm:$0x3] %v1286
  %s1290 = scalar_lea.vmem %s0, 48
  %v1291 = vld [vmem:[%s1290] sm:$0x3]
  %s1292 = scalar_lea.vmem %s1, 48
  %v1293 = vld [vmem:[%s1292] sm:$0x3]
  %1294 = xla_tuple %v1291, %v1293
  %1295 = xla_tuple %1294
  %v1296 = vsub.f32 %v1291, %v1293
  %1297 = xla_tuple %v1296
  %s1298 = scalar_lea.vmem %s2, 48
  %1299 = vst [vmem:[%s1298] sm:$0x3] %v1296
  %s1300 = scalar_lea.vmem %s0, 80
  %v1301 = vld [vmem:[%s1300] sm:$0x3]
  %s1302 = scalar_lea.vmem %s1, 80
  %v1303 = vld [vmem:[%s1302] sm:$0x3]
  %1304 = xla_tuple %v1301, %v1303
  %1305 = xla_tuple %1304
  %v1306 = vsub.f32 %v1301, %v1303
  %1307 = xla_tuple %v1306
  %s1308 = scalar_lea.vmem %s2, 80
  %1309 = vst [vmem:[%s1308] sm:$0x3] %v1306
  %s1310 = scalar_lea.vmem %s0, 112
  %v1311 = vld [vmem:[%s1310] sm:$0x3]
  %s1312 = scalar_lea.vmem %s1, 112
  %v1313 = vld [vmem:[%s1312] sm:$0x3]
  %1314 = xla_tuple %v1311, %v1313
  %1315 = xla_tuple %1314
  %v1316 = vsub.f32 %v1311, %v1313
  %1317 = xla_tuple %v1316
  %s1318 = scalar_lea.vmem %s2, 112
  %1319 = vst [vmem:[%s1318] sm:$0x3] %v1316
  %s1320 = scalar_lea.vmem %s0, 144
  %v1321 = vld [vmem:[%s1320] sm:$0x3]
  %s1322 = scalar_lea.vmem %s1, 144
  %v1323 = vld [vmem:[%s1322] sm:$0x3]
  %1324 = xla_tuple %v1321, %v1323
  %1325 = xla_tuple %1324
  %v1326 = vsub.f32 %v1321, %v1323
  %1327 = xla_tuple %v1326
  %s1328 = scalar_lea.vmem %s2, 144
  %1329 = vst [vmem:[%s1328] sm:$0x3] %v1326
  %s1330 = scalar_lea.vmem %s0, 176
  %v1331 = vld [vmem:[%s1330] sm:$0x3]
  %s1332 = scalar_lea.vmem %s1, 176
  %v1333 = vld [vmem:[%s1332] sm:$0x3]
  %1334 = xla_tuple %v1331, %v1333
  %1335 = xla_tuple %1334
  %v1336 = vsub.f32 %v1331, %v1333
  %1337 = xla_tuple %v1336
  %s1338 = scalar_lea.vmem %s2, 176
  %1339 = vst [vmem:[%s1338] sm:$0x3] %v1336
  %s1340 = scalar_lea.vmem %s0, 208
  %v1341 = vld [vmem:[%s1340] sm:$0x3]
  %s1342 = scalar_lea.vmem %s1, 208
  %v1343 = vld [vmem:[%s1342] sm:$0x3]
  %1344 = xla_tuple %v1341, %v1343
  %1345 = xla_tuple %1344
  %v1346 = vsub.f32 %v1341, %v1343
  %1347 = xla_tuple %v1346
  %s1348 = scalar_lea.vmem %s2, 208
  %1349 = vst [vmem:[%s1348] sm:$0x3] %v1346
  %s1350 = scalar_lea.vmem %s0, 240
  %v1351 = vld [vmem:[%s1350] sm:$0x3]
  %s1352 = scalar_lea.vmem %s1, 240
  %v1353 = vld [vmem:[%s1352] sm:$0x3]
  %1354 = xla_tuple %v1351, %v1353
  %1355 = xla_tuple %1354
  %v1356 = vsub.f32 %v1351, %v1353
  %1357 = xla_tuple %v1356
  %s1358 = scalar_lea.vmem %s2, 240
  %1359 = vst [vmem:[%s1358] sm:$0x3] %v1356
  %s1360 = scalar_lea.vmem %s0, 272
  %v1361 = vld [vmem:[%s1360] sm:$0x3]
  %s1362 = scalar_lea.vmem %s1, 272
  %v1363 = vld [vmem:[%s1362] sm:$0x3]
  %1364 = xla_tuple %v1361, %v1363
  %1365 = xla_tuple %1364
  %v1366 = vsub.f32 %v1361, %v1363
  %1367 = xla_tuple %v1366
  %s1368 = scalar_lea.vmem %s2, 272
  %1369 = vst [vmem:[%s1368] sm:$0x3] %v1366
  %s1370 = scalar_lea.vmem %s0, 304
  %v1371 = vld [vmem:[%s1370] sm:$0x3]
  %s1372 = scalar_lea.vmem %s1, 304
  %v1373 = vld [vmem:[%s1372] sm:$0x3]
  %1374 = xla_tuple %v1371, %v1373
  %1375 = xla_tuple %1374
  %v1376 = vsub.f32 %v1371, %v1373
  %1377 = xla_tuple %v1376
  %s1378 = scalar_lea.vmem %s2, 304
  %1379 = vst [vmem:[%s1378] sm:$0x3] %v1376
  %s1380 = scalar_lea.vmem %s0, 336
  %v1381 = vld [vmem:[%s1380] sm:$0x3]
  %s1382 = scalar_lea.vmem %s1, 336
  %v1383 = vld [vmem:[%s1382] sm:$0x3]
  %1384 = xla_tuple %v1381, %v1383
  %1385 = xla_tuple %1384
  %v1386 = vsub.f32 %v1381, %v1383
  %1387 = xla_tuple %v1386
  %s1388 = scalar_lea.vmem %s2, 336
  %1389 = vst [vmem:[%s1388] sm:$0x3] %v1386
  %s1390 = scalar_lea.vmem %s0, 368
  %v1391 = vld [vmem:[%s1390] sm:$0x3]
  %s1392 = scalar_lea.vmem %s1, 368
  %v1393 = vld [vmem:[%s1392] sm:$0x3]
  %1394 = xla_tuple %v1391, %v1393
  %1395 = xla_tuple %1394
  %v1396 = vsub.f32 %v1391, %v1393
  %1397 = xla_tuple %v1396
  %s1398 = scalar_lea.vmem %s2, 368
  %1399 = vst [vmem:[%s1398] sm:$0x3] %v1396
  %s1400 = scalar_lea.vmem %s0, 400
  %v1401 = vld [vmem:[%s1400] sm:$0x3]
  %s1402 = scalar_lea.vmem %s1, 400
  %v1403 = vld [vmem:[%s1402] sm:$0x3]
  %1404 = xla_tuple %v1401, %v1403
  %1405 = xla_tuple %1404
  %v1406 = vsub.f32 %v1401, %v1403
  %1407 = xla_tuple %v1406
  %s1408 = scalar_lea.vmem %s2, 400
  %1409 = vst [vmem:[%s1408] sm:$0x3] %v1406
  %s1410 = scalar_lea.vmem %s0, 432
  %v1411 = vld [vmem:[%s1410] sm:$0x3]
  %s1412 = scalar_lea.vmem %s1, 432
  %v1413 = vld [vmem:[%s1412] sm:$0x3]
  %1414 = xla_tuple %v1411, %v1413
  %1415 = xla_tuple %1414
  %v1416 = vsub.f32 %v1411, %v1413
  %1417 = xla_tuple %v1416
  %s1418 = scalar_lea.vmem %s2, 432
  %1419 = vst [vmem:[%s1418] sm:$0x3] %v1416
  %s1420 = scalar_lea.vmem %s0, 464
  %v1421 = vld [vmem:[%s1420] sm:$0x3]
  %s1422 = scalar_lea.vmem %s1, 464
  %v1423 = vld [vmem:[%s1422] sm:$0x3]
  %1424 = xla_tuple %v1421, %v1423
  %1425 = xla_tuple %1424
  %v1426 = vsub.f32 %v1421, %v1423
  %1427 = xla_tuple %v1426
  %s1428 = scalar_lea.vmem %s2, 464
  %1429 = vst [vmem:[%s1428] sm:$0x3] %v1426
  %s1430 = scalar_lea.vmem %s0, 496
  %v1431 = vld [vmem:[%s1430] sm:$0x3]
  %s1432 = scalar_lea.vmem %s1, 496
  %v1433 = vld [vmem:[%s1432] sm:$0x3]
  %1434 = xla_tuple %v1431, %v1433
  %1435 = xla_tuple %1434
  %v1436 = vsub.f32 %v1431, %v1433
  %1437 = xla_tuple %v1436
  %s1438 = scalar_lea.vmem %s2, 496
  %1439 = vst [vmem:[%s1438] sm:$0x3] %v1436
  %s1440 = scalar_lea.vmem %s0, 18
  %v1441 = vld [vmem:[%s1440] sm:$0x3]
  %s1442 = scalar_lea.vmem %s1, 18
  %v1443 = vld [vmem:[%s1442] sm:$0x3]
  %1444 = xla_tuple %v1441, %v1443
  %1445 = xla_tuple %1444
  %v1446 = vsub.f32 %v1441, %v1443
  %1447 = xla_tuple %v1446
  %s1448 = scalar_lea.vmem %s2, 18
  %1449 = vst [vmem:[%s1448] sm:$0x3] %v1446
  %s1450 = scalar_lea.vmem %s0, 50
  %v1451 = vld [vmem:[%s1450] sm:$0x3]
  %s1452 = scalar_lea.vmem %s1, 50
  %v1453 = vld [vmem:[%s1452] sm:$0x3]
  %1454 = xla_tuple %v1451, %v1453
  %1455 = xla_tuple %1454
  %v1456 = vsub.f32 %v1451, %v1453
  %1457 = xla_tuple %v1456
  %s1458 = scalar_lea.vmem %s2, 50
  %1459 = vst [vmem:[%s1458] sm:$0x3] %v1456
  %s1460 = scalar_lea.vmem %s0, 82
  %v1461 = vld [vmem:[%s1460] sm:$0x3]
  %s1462 = scalar_lea.vmem %s1, 82
  %v1463 = vld [vmem:[%s1462] sm:$0x3]
  %1464 = xla_tuple %v1461, %v1463
  %1465 = xla_tuple %1464
  %v1466 = vsub.f32 %v1461, %v1463
  %1467 = xla_tuple %v1466
  %s1468 = scalar_lea.vmem %s2, 82
  %1469 = vst [vmem:[%s1468] sm:$0x3] %v1466
  %s1470 = scalar_lea.vmem %s0, 114
  %v1471 = vld [vmem:[%s1470] sm:$0x3]
  %s1472 = scalar_lea.vmem %s1, 114
  %v1473 = vld [vmem:[%s1472] sm:$0x3]
  %1474 = xla_tuple %v1471, %v1473
  %1475 = xla_tuple %1474
  %v1476 = vsub.f32 %v1471, %v1473
  %1477 = xla_tuple %v1476
  %s1478 = scalar_lea.vmem %s2, 114
  %1479 = vst [vmem:[%s1478] sm:$0x3] %v1476
  %s1480 = scalar_lea.vmem %s0, 146
  %v1481 = vld [vmem:[%s1480] sm:$0x3]
  %s1482 = scalar_lea.vmem %s1, 146
  %v1483 = vld [vmem:[%s1482] sm:$0x3]
  %1484 = xla_tuple %v1481, %v1483
  %1485 = xla_tuple %1484
  %v1486 = vsub.f32 %v1481, %v1483
  %1487 = xla_tuple %v1486
  %s1488 = scalar_lea.vmem %s2, 146
  %1489 = vst [vmem:[%s1488] sm:$0x3] %v1486
  %s1490 = scalar_lea.vmem %s0, 178
  %v1491 = vld [vmem:[%s1490] sm:$0x3]
  %s1492 = scalar_lea.vmem %s1, 178
  %v1493 = vld [vmem:[%s1492] sm:$0x3]
  %1494 = xla_tuple %v1491, %v1493
  %1495 = xla_tuple %1494
  %v1496 = vsub.f32 %v1491, %v1493
  %1497 = xla_tuple %v1496
  %s1498 = scalar_lea.vmem %s2, 178
  %1499 = vst [vmem:[%s1498] sm:$0x3] %v1496
  %s1500 = scalar_lea.vmem %s0, 210
  %v1501 = vld [vmem:[%s1500] sm:$0x3]
  %s1502 = scalar_lea.vmem %s1, 210
  %v1503 = vld [vmem:[%s1502] sm:$0x3]
  %1504 = xla_tuple %v1501, %v1503
  %1505 = xla_tuple %1504
  %v1506 = vsub.f32 %v1501, %v1503
  %1507 = xla_tuple %v1506
  %s1508 = scalar_lea.vmem %s2, 210
  %1509 = vst [vmem:[%s1508] sm:$0x3] %v1506
  %s1510 = scalar_lea.vmem %s0, 242
  %v1511 = vld [vmem:[%s1510] sm:$0x3]
  %s1512 = scalar_lea.vmem %s1, 242
  %v1513 = vld [vmem:[%s1512] sm:$0x3]
  %1514 = xla_tuple %v1511, %v1513
  %1515 = xla_tuple %1514
  %v1516 = vsub.f32 %v1511, %v1513
  %1517 = xla_tuple %v1516
  %s1518 = scalar_lea.vmem %s2, 242
  %1519 = vst [vmem:[%s1518] sm:$0x3] %v1516
  %s1520 = scalar_lea.vmem %s0, 274
  %v1521 = vld [vmem:[%s1520] sm:$0x3]
  %s1522 = scalar_lea.vmem %s1, 274
  %v1523 = vld [vmem:[%s1522] sm:$0x3]
  %1524 = xla_tuple %v1521, %v1523
  %1525 = xla_tuple %1524
  %v1526 = vsub.f32 %v1521, %v1523
  %1527 = xla_tuple %v1526
  %s1528 = scalar_lea.vmem %s2, 274
  %1529 = vst [vmem:[%s1528] sm:$0x3] %v1526
  %s1530 = scalar_lea.vmem %s0, 306
  %v1531 = vld [vmem:[%s1530] sm:$0x3]
  %s1532 = scalar_lea.vmem %s1, 306
  %v1533 = vld [vmem:[%s1532] sm:$0x3]
  %1534 = xla_tuple %v1531, %v1533
  %1535 = xla_tuple %1534
  %v1536 = vsub.f32 %v1531, %v1533
  %1537 = xla_tuple %v1536
  %s1538 = scalar_lea.vmem %s2, 306
  %1539 = vst [vmem:[%s1538] sm:$0x3] %v1536
  %s1540 = scalar_lea.vmem %s0, 338
  %v1541 = vld [vmem:[%s1540] sm:$0x3]
  %s1542 = scalar_lea.vmem %s1, 338
  %v1543 = vld [vmem:[%s1542] sm:$0x3]
  %1544 = xla_tuple %v1541, %v1543
  %1545 = xla_tuple %1544
  %v1546 = vsub.f32 %v1541, %v1543
  %1547 = xla_tuple %v1546
  %s1548 = scalar_lea.vmem %s2, 338
  %1549 = vst [vmem:[%s1548] sm:$0x3] %v1546
  %s1550 = scalar_lea.vmem %s0, 370
  %v1551 = vld [vmem:[%s1550] sm:$0x3]
  %s1552 = scalar_lea.vmem %s1, 370
  %v1553 = vld [vmem:[%s1552] sm:$0x3]
  %1554 = xla_tuple %v1551, %v1553
  %1555 = xla_tuple %1554
  %v1556 = vsub.f32 %v1551, %v1553
  %1557 = xla_tuple %v1556
  %s1558 = scalar_lea.vmem %s2, 370
  %1559 = vst [vmem:[%s1558] sm:$0x3] %v1556
  %s1560 = scalar_lea.vmem %s0, 402
  %v1561 = vld [vmem:[%s1560] sm:$0x3]
  %s1562 = scalar_lea.vmem %s1, 402
  %v1563 = vld [vmem:[%s1562] sm:$0x3]
  %1564 = xla_tuple %v1561, %v1563
  %1565 = xla_tuple %1564
  %v1566 = vsub.f32 %v1561, %v1563
  %1567 = xla_tuple %v1566
  %s1568 = scalar_lea.vmem %s2, 402
  %1569 = vst [vmem:[%s1568] sm:$0x3] %v1566
  %s1570 = scalar_lea.vmem %s0, 434
  %v1571 = vld [vmem:[%s1570] sm:$0x3]
  %s1572 = scalar_lea.vmem %s1, 434
  %v1573 = vld [vmem:[%s1572] sm:$0x3]
  %1574 = xla_tuple %v1571, %v1573
  %1575 = xla_tuple %1574
  %v1576 = vsub.f32 %v1571, %v1573
  %1577 = xla_tuple %v1576
  %s1578 = scalar_lea.vmem %s2, 434
  %1579 = vst [vmem:[%s1578] sm:$0x3] %v1576
  %s1580 = scalar_lea.vmem %s0, 466
  %v1581 = vld [vmem:[%s1580] sm:$0x3]
  %s1582 = scalar_lea.vmem %s1, 466
  %v1583 = vld [vmem:[%s1582] sm:$0x3]
  %1584 = xla_tuple %v1581, %v1583
  %1585 = xla_tuple %1584
  %v1586 = vsub.f32 %v1581, %v1583
  %1587 = xla_tuple %v1586
  %s1588 = scalar_lea.vmem %s2, 466
  %1589 = vst [vmem:[%s1588] sm:$0x3] %v1586
  %s1590 = scalar_lea.vmem %s0, 498
  %v1591 = vld [vmem:[%s1590] sm:$0x3]
  %s1592 = scalar_lea.vmem %s1, 498
  %v1593 = vld [vmem:[%s1592] sm:$0x3]
  %1594 = xla_tuple %v1591, %v1593
  %1595 = xla_tuple %1594
  %v1596 = vsub.f32 %v1591, %v1593
  %1597 = xla_tuple %v1596
  %s1598 = scalar_lea.vmem %s2, 498
  %1599 = vst [vmem:[%s1598] sm:$0x3] %v1596
  %s1600 = scalar_lea.vmem %s0, 20
  %v1601 = vld [vmem:[%s1600] sm:$0x3]
  %s1602 = scalar_lea.vmem %s1, 20
  %v1603 = vld [vmem:[%s1602] sm:$0x3]
  %1604 = xla_tuple %v1601, %v1603
  %1605 = xla_tuple %1604
  %v1606 = vsub.f32 %v1601, %v1603
  %1607 = xla_tuple %v1606
  %s1608 = scalar_lea.vmem %s2, 20
  %1609 = vst [vmem:[%s1608] sm:$0x3] %v1606
  %s1610 = scalar_lea.vmem %s0, 52
  %v1611 = vld [vmem:[%s1610] sm:$0x3]
  %s1612 = scalar_lea.vmem %s1, 52
  %v1613 = vld [vmem:[%s1612] sm:$0x3]
  %1614 = xla_tuple %v1611, %v1613
  %1615 = xla_tuple %1614
  %v1616 = vsub.f32 %v1611, %v1613
  %1617 = xla_tuple %v1616
  %s1618 = scalar_lea.vmem %s2, 52
  %1619 = vst [vmem:[%s1618] sm:$0x3] %v1616
  %s1620 = scalar_lea.vmem %s0, 84
  %v1621 = vld [vmem:[%s1620] sm:$0x3]
  %s1622 = scalar_lea.vmem %s1, 84
  %v1623 = vld [vmem:[%s1622] sm:$0x3]
  %1624 = xla_tuple %v1621, %v1623
  %1625 = xla_tuple %1624
  %v1626 = vsub.f32 %v1621, %v1623
  %1627 = xla_tuple %v1626
  %s1628 = scalar_lea.vmem %s2, 84
  %1629 = vst [vmem:[%s1628] sm:$0x3] %v1626
  %s1630 = scalar_lea.vmem %s0, 116
  %v1631 = vld [vmem:[%s1630] sm:$0x3]
  %s1632 = scalar_lea.vmem %s1, 116
  %v1633 = vld [vmem:[%s1632] sm:$0x3]
  %1634 = xla_tuple %v1631, %v1633
  %1635 = xla_tuple %1634
  %v1636 = vsub.f32 %v1631, %v1633
  %1637 = xla_tuple %v1636
  %s1638 = scalar_lea.vmem %s2, 116
  %1639 = vst [vmem:[%s1638] sm:$0x3] %v1636
  %s1640 = scalar_lea.vmem %s0, 148
  %v1641 = vld [vmem:[%s1640] sm:$0x3]
  %s1642 = scalar_lea.vmem %s1, 148
  %v1643 = vld [vmem:[%s1642] sm:$0x3]
  %1644 = xla_tuple %v1641, %v1643
  %1645 = xla_tuple %1644
  %v1646 = vsub.f32 %v1641, %v1643
  %1647 = xla_tuple %v1646
  %s1648 = scalar_lea.vmem %s2, 148
  %1649 = vst [vmem:[%s1648] sm:$0x3] %v1646
  %s1650 = scalar_lea.vmem %s0, 180
  %v1651 = vld [vmem:[%s1650] sm:$0x3]
  %s1652 = scalar_lea.vmem %s1, 180
  %v1653 = vld [vmem:[%s1652] sm:$0x3]
  %1654 = xla_tuple %v1651, %v1653
  %1655 = xla_tuple %1654
  %v1656 = vsub.f32 %v1651, %v1653
  %1657 = xla_tuple %v1656
  %s1658 = scalar_lea.vmem %s2, 180
  %1659 = vst [vmem:[%s1658] sm:$0x3] %v1656
  %s1660 = scalar_lea.vmem %s0, 212
  %v1661 = vld [vmem:[%s1660] sm:$0x3]
  %s1662 = scalar_lea.vmem %s1, 212
  %v1663 = vld [vmem:[%s1662] sm:$0x3]
  %1664 = xla_tuple %v1661, %v1663
  %1665 = xla_tuple %1664
  %v1666 = vsub.f32 %v1661, %v1663
  %1667 = xla_tuple %v1666
  %s1668 = scalar_lea.vmem %s2, 212
  %1669 = vst [vmem:[%s1668] sm:$0x3] %v1666
  %s1670 = scalar_lea.vmem %s0, 244
  %v1671 = vld [vmem:[%s1670] sm:$0x3]
  %s1672 = scalar_lea.vmem %s1, 244
  %v1673 = vld [vmem:[%s1672] sm:$0x3]
  %1674 = xla_tuple %v1671, %v1673
  %1675 = xla_tuple %1674
  %v1676 = vsub.f32 %v1671, %v1673
  %1677 = xla_tuple %v1676
  %s1678 = scalar_lea.vmem %s2, 244
  %1679 = vst [vmem:[%s1678] sm:$0x3] %v1676
  %s1680 = scalar_lea.vmem %s0, 276
  %v1681 = vld [vmem:[%s1680] sm:$0x3]
  %s1682 = scalar_lea.vmem %s1, 276
  %v1683 = vld [vmem:[%s1682] sm:$0x3]
  %1684 = xla_tuple %v1681, %v1683
  %1685 = xla_tuple %1684
  %v1686 = vsub.f32 %v1681, %v1683
  %1687 = xla_tuple %v1686
  %s1688 = scalar_lea.vmem %s2, 276
  %1689 = vst [vmem:[%s1688] sm:$0x3] %v1686
  %s1690 = scalar_lea.vmem %s0, 308
  %v1691 = vld [vmem:[%s1690] sm:$0x3]
  %s1692 = scalar_lea.vmem %s1, 308
  %v1693 = vld [vmem:[%s1692] sm:$0x3]
  %1694 = xla_tuple %v1691, %v1693
  %1695 = xla_tuple %1694
  %v1696 = vsub.f32 %v1691, %v1693
  %1697 = xla_tuple %v1696
  %s1698 = scalar_lea.vmem %s2, 308
  %1699 = vst [vmem:[%s1698] sm:$0x3] %v1696
  %s1700 = scalar_lea.vmem %s0, 340
  %v1701 = vld [vmem:[%s1700] sm:$0x3]
  %s1702 = scalar_lea.vmem %s1, 340
  %v1703 = vld [vmem:[%s1702] sm:$0x3]
  %1704 = xla_tuple %v1701, %v1703
  %1705 = xla_tuple %1704
  %v1706 = vsub.f32 %v1701, %v1703
  %1707 = xla_tuple %v1706
  %s1708 = scalar_lea.vmem %s2, 340
  %1709 = vst [vmem:[%s1708] sm:$0x3] %v1706
  %s1710 = scalar_lea.vmem %s0, 372
  %v1711 = vld [vmem:[%s1710] sm:$0x3]
  %s1712 = scalar_lea.vmem %s1, 372
  %v1713 = vld [vmem:[%s1712] sm:$0x3]
  %1714 = xla_tuple %v1711, %v1713
  %1715 = xla_tuple %1714
  %v1716 = vsub.f32 %v1711, %v1713
  %1717 = xla_tuple %v1716
  %s1718 = scalar_lea.vmem %s2, 372
  %1719 = vst [vmem:[%s1718] sm:$0x3] %v1716
  %s1720 = scalar_lea.vmem %s0, 404
  %v1721 = vld [vmem:[%s1720] sm:$0x3]
  %s1722 = scalar_lea.vmem %s1, 404
  %v1723 = vld [vmem:[%s1722] sm:$0x3]
  %1724 = xla_tuple %v1721, %v1723
  %1725 = xla_tuple %1724
  %v1726 = vsub.f32 %v1721, %v1723
  %1727 = xla_tuple %v1726
  %s1728 = scalar_lea.vmem %s2, 404
  %1729 = vst [vmem:[%s1728] sm:$0x3] %v1726
  %s1730 = scalar_lea.vmem %s0, 436
  %v1731 = vld [vmem:[%s1730] sm:$0x3]
  %s1732 = scalar_lea.vmem %s1, 436
  %v1733 = vld [vmem:[%s1732] sm:$0x3]
  %1734 = xla_tuple %v1731, %v1733
  %1735 = xla_tuple %1734
  %v1736 = vsub.f32 %v1731, %v1733
  %1737 = xla_tuple %v1736
  %s1738 = scalar_lea.vmem %s2, 436
  %1739 = vst [vmem:[%s1738] sm:$0x3] %v1736
  %s1740 = scalar_lea.vmem %s0, 468
  %v1741 = vld [vmem:[%s1740] sm:$0x3]
  %s1742 = scalar_lea.vmem %s1, 468
  %v1743 = vld [vmem:[%s1742] sm:$0x3]
  %1744 = xla_tuple %v1741, %v1743
  %1745 = xla_tuple %1744
  %v1746 = vsub.f32 %v1741, %v1743
  %1747 = xla_tuple %v1746
  %s1748 = scalar_lea.vmem %s2, 468
  %1749 = vst [vmem:[%s1748] sm:$0x3] %v1746
  %s1750 = scalar_lea.vmem %s0, 500
  %v1751 = vld [vmem:[%s1750] sm:$0x3]
  %s1752 = scalar_lea.vmem %s1, 500
  %v1753 = vld [vmem:[%s1752] sm:$0x3]
  %1754 = xla_tuple %v1751, %v1753
  %1755 = xla_tuple %1754
  %v1756 = vsub.f32 %v1751, %v1753
  %1757 = xla_tuple %v1756
  %s1758 = scalar_lea.vmem %s2, 500
  %1759 = vst [vmem:[%s1758] sm:$0x3] %v1756
  %s1760 = scalar_lea.vmem %s0, 22
  %v1761 = vld [vmem:[%s1760] sm:$0x3]
  %s1762 = scalar_lea.vmem %s1, 22
  %v1763 = vld [vmem:[%s1762] sm:$0x3]
  %1764 = xla_tuple %v1761, %v1763
  %1765 = xla_tuple %1764
  %v1766 = vsub.f32 %v1761, %v1763
  %1767 = xla_tuple %v1766
  %s1768 = scalar_lea.vmem %s2, 22
  %1769 = vst [vmem:[%s1768] sm:$0x3] %v1766
  %s1770 = scalar_lea.vmem %s0, 54
  %v1771 = vld [vmem:[%s1770] sm:$0x3]
  %s1772 = scalar_lea.vmem %s1, 54
  %v1773 = vld [vmem:[%s1772] sm:$0x3]
  %1774 = xla_tuple %v1771, %v1773
  %1775 = xla_tuple %1774
  %v1776 = vsub.f32 %v1771, %v1773
  %1777 = xla_tuple %v1776
  %s1778 = scalar_lea.vmem %s2, 54
  %1779 = vst [vmem:[%s1778] sm:$0x3] %v1776
  %s1780 = scalar_lea.vmem %s0, 86
  %v1781 = vld [vmem:[%s1780] sm:$0x3]
  %s1782 = scalar_lea.vmem %s1, 86
  %v1783 = vld [vmem:[%s1782] sm:$0x3]
  %1784 = xla_tuple %v1781, %v1783
  %1785 = xla_tuple %1784
  %v1786 = vsub.f32 %v1781, %v1783
  %1787 = xla_tuple %v1786
  %s1788 = scalar_lea.vmem %s2, 86
  %1789 = vst [vmem:[%s1788] sm:$0x3] %v1786
  %s1790 = scalar_lea.vmem %s0, 118
  %v1791 = vld [vmem:[%s1790] sm:$0x3]
  %s1792 = scalar_lea.vmem %s1, 118
  %v1793 = vld [vmem:[%s1792] sm:$0x3]
  %1794 = xla_tuple %v1791, %v1793
  %1795 = xla_tuple %1794
  %v1796 = vsub.f32 %v1791, %v1793
  %1797 = xla_tuple %v1796
  %s1798 = scalar_lea.vmem %s2, 118
  %1799 = vst [vmem:[%s1798] sm:$0x3] %v1796
  %s1800 = scalar_lea.vmem %s0, 150
  %v1801 = vld [vmem:[%s1800] sm:$0x3]
  %s1802 = scalar_lea.vmem %s1, 150
  %v1803 = vld [vmem:[%s1802] sm:$0x3]
  %1804 = xla_tuple %v1801, %v1803
  %1805 = xla_tuple %1804
  %v1806 = vsub.f32 %v1801, %v1803
  %1807 = xla_tuple %v1806
  %s1808 = scalar_lea.vmem %s2, 150
  %1809 = vst [vmem:[%s1808] sm:$0x3] %v1806
  %s1810 = scalar_lea.vmem %s0, 182
  %v1811 = vld [vmem:[%s1810] sm:$0x3]
  %s1812 = scalar_lea.vmem %s1, 182
  %v1813 = vld [vmem:[%s1812] sm:$0x3]
  %1814 = xla_tuple %v1811, %v1813
  %1815 = xla_tuple %1814
  %v1816 = vsub.f32 %v1811, %v1813
  %1817 = xla_tuple %v1816
  %s1818 = scalar_lea.vmem %s2, 182
  %1819 = vst [vmem:[%s1818] sm:$0x3] %v1816
  %s1820 = scalar_lea.vmem %s0, 214
  %v1821 = vld [vmem:[%s1820] sm:$0x3]
  %s1822 = scalar_lea.vmem %s1, 214
  %v1823 = vld [vmem:[%s1822] sm:$0x3]
  %1824 = xla_tuple %v1821, %v1823
  %1825 = xla_tuple %1824
  %v1826 = vsub.f32 %v1821, %v1823
  %1827 = xla_tuple %v1826
  %s1828 = scalar_lea.vmem %s2, 214
  %1829 = vst [vmem:[%s1828] sm:$0x3] %v1826
  %s1830 = scalar_lea.vmem %s0, 246
  %v1831 = vld [vmem:[%s1830] sm:$0x3]
  %s1832 = scalar_lea.vmem %s1, 246
  %v1833 = vld [vmem:[%s1832] sm:$0x3]
  %1834 = xla_tuple %v1831, %v1833
  %1835 = xla_tuple %1834
  %v1836 = vsub.f32 %v1831, %v1833
  %1837 = xla_tuple %v1836
  %s1838 = scalar_lea.vmem %s2, 246
  %1839 = vst [vmem:[%s1838] sm:$0x3] %v1836
  %s1840 = scalar_lea.vmem %s0, 278
  %v1841 = vld [vmem:[%s1840] sm:$0x3]
  %s1842 = scalar_lea.vmem %s1, 278
  %v1843 = vld [vmem:[%s1842] sm:$0x3]
  %1844 = xla_tuple %v1841, %v1843
  %1845 = xla_tuple %1844
  %v1846 = vsub.f32 %v1841, %v1843
  %1847 = xla_tuple %v1846
  %s1848 = scalar_lea.vmem %s2, 278
  %1849 = vst [vmem:[%s1848] sm:$0x3] %v1846
  %s1850 = scalar_lea.vmem %s0, 310
  %v1851 = vld [vmem:[%s1850] sm:$0x3]
  %s1852 = scalar_lea.vmem %s1, 310
  %v1853 = vld [vmem:[%s1852] sm:$0x3]
  %1854 = xla_tuple %v1851, %v1853
  %1855 = xla_tuple %1854
  %v1856 = vsub.f32 %v1851, %v1853
  %1857 = xla_tuple %v1856
  %s1858 = scalar_lea.vmem %s2, 310
  %1859 = vst [vmem:[%s1858] sm:$0x3] %v1856
  %s1860 = scalar_lea.vmem %s0, 342
  %v1861 = vld [vmem:[%s1860] sm:$0x3]
  %s1862 = scalar_lea.vmem %s1, 342
  %v1863 = vld [vmem:[%s1862] sm:$0x3]
  %1864 = xla_tuple %v1861, %v1863
  %1865 = xla_tuple %1864
  %v1866 = vsub.f32 %v1861, %v1863
  %1867 = xla_tuple %v1866
  %s1868 = scalar_lea.vmem %s2, 342
  %1869 = vst [vmem:[%s1868] sm:$0x3] %v1866
  %s1870 = scalar_lea.vmem %s0, 374
  %v1871 = vld [vmem:[%s1870] sm:$0x3]
  %s1872 = scalar_lea.vmem %s1, 374
  %v1873 = vld [vmem:[%s1872] sm:$0x3]
  %1874 = xla_tuple %v1871, %v1873
  %1875 = xla_tuple %1874
  %v1876 = vsub.f32 %v1871, %v1873
  %1877 = xla_tuple %v1876
  %s1878 = scalar_lea.vmem %s2, 374
  %1879 = vst [vmem:[%s1878] sm:$0x3] %v1876
  %s1880 = scalar_lea.vmem %s0, 406
  %v1881 = vld [vmem:[%s1880] sm:$0x3]
  %s1882 = scalar_lea.vmem %s1, 406
  %v1883 = vld [vmem:[%s1882] sm:$0x3]
  %1884 = xla_tuple %v1881, %v1883
  %1885 = xla_tuple %1884
  %v1886 = vsub.f32 %v1881, %v1883
  %1887 = xla_tuple %v1886
  %s1888 = scalar_lea.vmem %s2, 406
  %1889 = vst [vmem:[%s1888] sm:$0x3] %v1886
  %s1890 = scalar_lea.vmem %s0, 438
  %v1891 = vld [vmem:[%s1890] sm:$0x3]
  %s1892 = scalar_lea.vmem %s1, 438
  %v1893 = vld [vmem:[%s1892] sm:$0x3]
  %1894 = xla_tuple %v1891, %v1893
  %1895 = xla_tuple %1894
  %v1896 = vsub.f32 %v1891, %v1893
  %1897 = xla_tuple %v1896
  %s1898 = scalar_lea.vmem %s2, 438
  %1899 = vst [vmem:[%s1898] sm:$0x3] %v1896
  %s1900 = scalar_lea.vmem %s0, 470
  %v1901 = vld [vmem:[%s1900] sm:$0x3]
  %s1902 = scalar_lea.vmem %s1, 470
  %v1903 = vld [vmem:[%s1902] sm:$0x3]
  %1904 = xla_tuple %v1901, %v1903
  %1905 = xla_tuple %1904
  %v1906 = vsub.f32 %v1901, %v1903
  %1907 = xla_tuple %v1906
  %s1908 = scalar_lea.vmem %s2, 470
  %1909 = vst [vmem:[%s1908] sm:$0x3] %v1906
  %s1910 = scalar_lea.vmem %s0, 502
  %v1911 = vld [vmem:[%s1910] sm:$0x3]
  %s1912 = scalar_lea.vmem %s1, 502
  %v1913 = vld [vmem:[%s1912] sm:$0x3]
  %1914 = xla_tuple %v1911, %v1913
  %1915 = xla_tuple %1914
  %v1916 = vsub.f32 %v1911, %v1913
  %1917 = xla_tuple %v1916
  %s1918 = scalar_lea.vmem %s2, 502
  %1919 = vst [vmem:[%s1918] sm:$0x3] %v1916
  %s1920 = scalar_lea.vmem %s0, 24
  %v1921 = vld [vmem:[%s1920] sm:$0x3]
  %s1922 = scalar_lea.vmem %s1, 24
  %v1923 = vld [vmem:[%s1922] sm:$0x3]
  %1924 = xla_tuple %v1921, %v1923
  %1925 = xla_tuple %1924
  %v1926 = vsub.f32 %v1921, %v1923
  %1927 = xla_tuple %v1926
  %s1928 = scalar_lea.vmem %s2, 24
  %1929 = vst [vmem:[%s1928] sm:$0x3] %v1926
  %s1930 = scalar_lea.vmem %s0, 56
  %v1931 = vld [vmem:[%s1930] sm:$0x3]
  %s1932 = scalar_lea.vmem %s1, 56
  %v1933 = vld [vmem:[%s1932] sm:$0x3]
  %1934 = xla_tuple %v1931, %v1933
  %1935 = xla_tuple %1934
  %v1936 = vsub.f32 %v1931, %v1933
  %1937 = xla_tuple %v1936
  %s1938 = scalar_lea.vmem %s2, 56
  %1939 = vst [vmem:[%s1938] sm:$0x3] %v1936
  %s1940 = scalar_lea.vmem %s0, 88
  %v1941 = vld [vmem:[%s1940] sm:$0x3]
  %s1942 = scalar_lea.vmem %s1, 88
  %v1943 = vld [vmem:[%s1942] sm:$0x3]
  %1944 = xla_tuple %v1941, %v1943
  %1945 = xla_tuple %1944
  %v1946 = vsub.f32 %v1941, %v1943
  %1947 = xla_tuple %v1946
  %s1948 = scalar_lea.vmem %s2, 88
  %1949 = vst [vmem:[%s1948] sm:$0x3] %v1946
  %s1950 = scalar_lea.vmem %s0, 120
  %v1951 = vld [vmem:[%s1950] sm:$0x3]
  %s1952 = scalar_lea.vmem %s1, 120
  %v1953 = vld [vmem:[%s1952] sm:$0x3]
  %1954 = xla_tuple %v1951, %v1953
  %1955 = xla_tuple %1954
  %v1956 = vsub.f32 %v1951, %v1953
  %1957 = xla_tuple %v1956
  %s1958 = scalar_lea.vmem %s2, 120
  %1959 = vst [vmem:[%s1958] sm:$0x3] %v1956
  %s1960 = scalar_lea.vmem %s0, 152
  %v1961 = vld [vmem:[%s1960] sm:$0x3]
  %s1962 = scalar_lea.vmem %s1, 152
  %v1963 = vld [vmem:[%s1962] sm:$0x3]
  %1964 = xla_tuple %v1961, %v1963
  %1965 = xla_tuple %1964
  %v1966 = vsub.f32 %v1961, %v1963
  %1967 = xla_tuple %v1966
  %s1968 = scalar_lea.vmem %s2, 152
  %1969 = vst [vmem:[%s1968] sm:$0x3] %v1966
  %s1970 = scalar_lea.vmem %s0, 184
  %v1971 = vld [vmem:[%s1970] sm:$0x3]
  %s1972 = scalar_lea.vmem %s1, 184
  %v1973 = vld [vmem:[%s1972] sm:$0x3]
  %1974 = xla_tuple %v1971, %v1973
  %1975 = xla_tuple %1974
  %v1976 = vsub.f32 %v1971, %v1973
  %1977 = xla_tuple %v1976
  %s1978 = scalar_lea.vmem %s2, 184
  %1979 = vst [vmem:[%s1978] sm:$0x3] %v1976
  %s1980 = scalar_lea.vmem %s0, 216
  %v1981 = vld [vmem:[%s1980] sm:$0x3]
  %s1982 = scalar_lea.vmem %s1, 216
  %v1983 = vld [vmem:[%s1982] sm:$0x3]
  %1984 = xla_tuple %v1981, %v1983
  %1985 = xla_tuple %1984
  %v1986 = vsub.f32 %v1981, %v1983
  %1987 = xla_tuple %v1986
  %s1988 = scalar_lea.vmem %s2, 216
  %1989 = vst [vmem:[%s1988] sm:$0x3] %v1986
  %s1990 = scalar_lea.vmem %s0, 248
  %v1991 = vld [vmem:[%s1990] sm:$0x3]
  %s1992 = scalar_lea.vmem %s1, 248
  %v1993 = vld [vmem:[%s1992] sm:$0x3]
  %1994 = xla_tuple %v1991, %v1993
  %1995 = xla_tuple %1994
  %v1996 = vsub.f32 %v1991, %v1993
  %1997 = xla_tuple %v1996
  %s1998 = scalar_lea.vmem %s2, 248
  %1999 = vst [vmem:[%s1998] sm:$0x3] %v1996
  %s2000 = scalar_lea.vmem %s0, 280
  %v2001 = vld [vmem:[%s2000] sm:$0x3]
  %s2002 = scalar_lea.vmem %s1, 280
  %v2003 = vld [vmem:[%s2002] sm:$0x3]
  %2004 = xla_tuple %v2001, %v2003
  %2005 = xla_tuple %2004
  %v2006 = vsub.f32 %v2001, %v2003
  %2007 = xla_tuple %v2006
  %s2008 = scalar_lea.vmem %s2, 280
  %2009 = vst [vmem:[%s2008] sm:$0x3] %v2006
  %s2010 = scalar_lea.vmem %s0, 312
  %v2011 = vld [vmem:[%s2010] sm:$0x3]
  %s2012 = scalar_lea.vmem %s1, 312
  %v2013 = vld [vmem:[%s2012] sm:$0x3]
  %2014 = xla_tuple %v2011, %v2013
  %2015 = xla_tuple %2014
  %v2016 = vsub.f32 %v2011, %v2013
  %2017 = xla_tuple %v2016
  %s2018 = scalar_lea.vmem %s2, 312
  %2019 = vst [vmem:[%s2018] sm:$0x3] %v2016
  %s2020 = scalar_lea.vmem %s0, 344
  %v2021 = vld [vmem:[%s2020] sm:$0x3]
  %s2022 = scalar_lea.vmem %s1, 344
  %v2023 = vld [vmem:[%s2022] sm:$0x3]
  %2024 = xla_tuple %v2021, %v2023
  %2025 = xla_tuple %2024
  %v2026 = vsub.f32 %v2021, %v2023
  %2027 = xla_tuple %v2026
  %s2028 = scalar_lea.vmem %s2, 344
  %2029 = vst [vmem:[%s2028] sm:$0x3] %v2026
  %s2030 = scalar_lea.vmem %s0, 376
  %v2031 = vld [vmem:[%s2030] sm:$0x3]
  %s2032 = scalar_lea.vmem %s1, 376
  %v2033 = vld [vmem:[%s2032] sm:$0x3]
  %2034 = xla_tuple %v2031, %v2033
  %2035 = xla_tuple %2034
  %v2036 = vsub.f32 %v2031, %v2033
  %2037 = xla_tuple %v2036
  %s2038 = scalar_lea.vmem %s2, 376
  %2039 = vst [vmem:[%s2038] sm:$0x3] %v2036
  %s2040 = scalar_lea.vmem %s0, 408
  %v2041 = vld [vmem:[%s2040] sm:$0x3]
  %s2042 = scalar_lea.vmem %s1, 408
  %v2043 = vld [vmem:[%s2042] sm:$0x3]
  %2044 = xla_tuple %v2041, %v2043
  %2045 = xla_tuple %2044
  %v2046 = vsub.f32 %v2041, %v2043
  %2047 = xla_tuple %v2046
  %s2048 = scalar_lea.vmem %s2, 408
  %2049 = vst [vmem:[%s2048] sm:$0x3] %v2046
  %s2050 = scalar_lea.vmem %s0, 440
  %v2051 = vld [vmem:[%s2050] sm:$0x3]
  %s2052 = scalar_lea.vmem %s1, 440
  %v2053 = vld [vmem:[%s2052] sm:$0x3]
  %2054 = xla_tuple %v2051, %v2053
  %2055 = xla_tuple %2054
  %v2056 = vsub.f32 %v2051, %v2053
  %2057 = xla_tuple %v2056
  %s2058 = scalar_lea.vmem %s2, 440
  %2059 = vst [vmem:[%s2058] sm:$0x3] %v2056
  %s2060 = scalar_lea.vmem %s0, 472
  %v2061 = vld [vmem:[%s2060] sm:$0x3]
  %s2062 = scalar_lea.vmem %s1, 472
  %v2063 = vld [vmem:[%s2062] sm:$0x3]
  %2064 = xla_tuple %v2061, %v2063
  %2065 = xla_tuple %2064
  %v2066 = vsub.f32 %v2061, %v2063
  %2067 = xla_tuple %v2066
  %s2068 = scalar_lea.vmem %s2, 472
  %2069 = vst [vmem:[%s2068] sm:$0x3] %v2066
  %s2070 = scalar_lea.vmem %s0, 504
  %v2071 = vld [vmem:[%s2070] sm:$0x3]
  %s2072 = scalar_lea.vmem %s1, 504
  %v2073 = vld [vmem:[%s2072] sm:$0x3]
  %2074 = xla_tuple %v2071, %v2073
  %2075 = xla_tuple %2074
  %v2076 = vsub.f32 %v2071, %v2073
  %2077 = xla_tuple %v2076
  %s2078 = scalar_lea.vmem %s2, 504
  %2079 = vst [vmem:[%s2078] sm:$0x3] %v2076
  %s2080 = scalar_lea.vmem %s0, 26
  %v2081 = vld [vmem:[%s2080] sm:$0x3]
  %s2082 = scalar_lea.vmem %s1, 26
  %v2083 = vld [vmem:[%s2082] sm:$0x3]
  %2084 = xla_tuple %v2081, %v2083
  %2085 = xla_tuple %2084
  %v2086 = vsub.f32 %v2081, %v2083
  %2087 = xla_tuple %v2086
  %s2088 = scalar_lea.vmem %s2, 26
  %2089 = vst [vmem:[%s2088] sm:$0x3] %v2086
  %s2090 = scalar_lea.vmem %s0, 58
  %v2091 = vld [vmem:[%s2090] sm:$0x3]
  %s2092 = scalar_lea.vmem %s1, 58
  %v2093 = vld [vmem:[%s2092] sm:$0x3]
  %2094 = xla_tuple %v2091, %v2093
  %2095 = xla_tuple %2094
  %v2096 = vsub.f32 %v2091, %v2093
  %2097 = xla_tuple %v2096
  %s2098 = scalar_lea.vmem %s2, 58
  %2099 = vst [vmem:[%s2098] sm:$0x3] %v2096
  %s2100 = scalar_lea.vmem %s0, 90
  %v2101 = vld [vmem:[%s2100] sm:$0x3]
  %s2102 = scalar_lea.vmem %s1, 90
  %v2103 = vld [vmem:[%s2102] sm:$0x3]
  %2104 = xla_tuple %v2101, %v2103
  %2105 = xla_tuple %2104
  %v2106 = vsub.f32 %v2101, %v2103
  %2107 = xla_tuple %v2106
  %s2108 = scalar_lea.vmem %s2, 90
  %2109 = vst [vmem:[%s2108] sm:$0x3] %v2106
  %s2110 = scalar_lea.vmem %s0, 122
  %v2111 = vld [vmem:[%s2110] sm:$0x3]
  %s2112 = scalar_lea.vmem %s1, 122
  %v2113 = vld [vmem:[%s2112] sm:$0x3]
  %2114 = xla_tuple %v2111, %v2113
  %2115 = xla_tuple %2114
  %v2116 = vsub.f32 %v2111, %v2113
  %2117 = xla_tuple %v2116
  %s2118 = scalar_lea.vmem %s2, 122
  %2119 = vst [vmem:[%s2118] sm:$0x3] %v2116
  %s2120 = scalar_lea.vmem %s0, 154
  %v2121 = vld [vmem:[%s2120] sm:$0x3]
  %s2122 = scalar_lea.vmem %s1, 154
  %v2123 = vld [vmem:[%s2122] sm:$0x3]
  %2124 = xla_tuple %v2121, %v2123
  %2125 = xla_tuple %2124
  %v2126 = vsub.f32 %v2121, %v2123
  %2127 = xla_tuple %v2126
  %s2128 = scalar_lea.vmem %s2, 154
  %2129 = vst [vmem:[%s2128] sm:$0x3] %v2126
  %s2130 = scalar_lea.vmem %s0, 186
  %v2131 = vld [vmem:[%s2130] sm:$0x3]
  %s2132 = scalar_lea.vmem %s1, 186
  %v2133 = vld [vmem:[%s2132] sm:$0x3]
  %2134 = xla_tuple %v2131, %v2133
  %2135 = xla_tuple %2134
  %v2136 = vsub.f32 %v2131, %v2133
  %2137 = xla_tuple %v2136
  %s2138 = scalar_lea.vmem %s2, 186
  %2139 = vst [vmem:[%s2138] sm:$0x3] %v2136
  %s2140 = scalar_lea.vmem %s0, 218
  %v2141 = vld [vmem:[%s2140] sm:$0x3]
  %s2142 = scalar_lea.vmem %s1, 218
  %v2143 = vld [vmem:[%s2142] sm:$0x3]
  %2144 = xla_tuple %v2141, %v2143
  %2145 = xla_tuple %2144
  %v2146 = vsub.f32 %v2141, %v2143
  %2147 = xla_tuple %v2146
  %s2148 = scalar_lea.vmem %s2, 218
  %2149 = vst [vmem:[%s2148] sm:$0x3] %v2146
  %s2150 = scalar_lea.vmem %s0, 250
  %v2151 = vld [vmem:[%s2150] sm:$0x3]
  %s2152 = scalar_lea.vmem %s1, 250
  %v2153 = vld [vmem:[%s2152] sm:$0x3]
  %2154 = xla_tuple %v2151, %v2153
  %2155 = xla_tuple %2154
  %v2156 = vsub.f32 %v2151, %v2153
  %2157 = xla_tuple %v2156
  %s2158 = scalar_lea.vmem %s2, 250
  %2159 = vst [vmem:[%s2158] sm:$0x3] %v2156
  %s2160 = scalar_lea.vmem %s0, 282
  %v2161 = vld [vmem:[%s2160] sm:$0x3]
  %s2162 = scalar_lea.vmem %s1, 282
  %v2163 = vld [vmem:[%s2162] sm:$0x3]
  %2164 = xla_tuple %v2161, %v2163
  %2165 = xla_tuple %2164
  %v2166 = vsub.f32 %v2161, %v2163
  %2167 = xla_tuple %v2166
  %s2168 = scalar_lea.vmem %s2, 282
  %2169 = vst [vmem:[%s2168] sm:$0x3] %v2166
  %s2170 = scalar_lea.vmem %s0, 314
  %v2171 = vld [vmem:[%s2170] sm:$0x3]
  %s2172 = scalar_lea.vmem %s1, 314
  %v2173 = vld [vmem:[%s2172] sm:$0x3]
  %2174 = xla_tuple %v2171, %v2173
  %2175 = xla_tuple %2174
  %v2176 = vsub.f32 %v2171, %v2173
  %2177 = xla_tuple %v2176
  %s2178 = scalar_lea.vmem %s2, 314
  %2179 = vst [vmem:[%s2178] sm:$0x3] %v2176
  %s2180 = scalar_lea.vmem %s0, 346
  %v2181 = vld [vmem:[%s2180] sm:$0x3]
  %s2182 = scalar_lea.vmem %s1, 346
  %v2183 = vld [vmem:[%s2182] sm:$0x3]
  %2184 = xla_tuple %v2181, %v2183
  %2185 = xla_tuple %2184
  %v2186 = vsub.f32 %v2181, %v2183
  %2187 = xla_tuple %v2186
  %s2188 = scalar_lea.vmem %s2, 346
  %2189 = vst [vmem:[%s2188] sm:$0x3] %v2186
  %s2190 = scalar_lea.vmem %s0, 378
  %v2191 = vld [vmem:[%s2190] sm:$0x3]
  %s2192 = scalar_lea.vmem %s1, 378
  %v2193 = vld [vmem:[%s2192] sm:$0x3]
  %2194 = xla_tuple %v2191, %v2193
  %2195 = xla_tuple %2194
  %v2196 = vsub.f32 %v2191, %v2193
  %2197 = xla_tuple %v2196
  %s2198 = scalar_lea.vmem %s2, 378
  %2199 = vst [vmem:[%s2198] sm:$0x3] %v2196
  %s2200 = scalar_lea.vmem %s0, 410
  %v2201 = vld [vmem:[%s2200] sm:$0x3]
  %s2202 = scalar_lea.vmem %s1, 410
  %v2203 = vld [vmem:[%s2202] sm:$0x3]
  %2204 = xla_tuple %v2201, %v2203
  %2205 = xla_tuple %2204
  %v2206 = vsub.f32 %v2201, %v2203
  %2207 = xla_tuple %v2206
  %s2208 = scalar_lea.vmem %s2, 410
  %2209 = vst [vmem:[%s2208] sm:$0x3] %v2206
  %s2210 = scalar_lea.vmem %s0, 442
  %v2211 = vld [vmem:[%s2210] sm:$0x3]
  %s2212 = scalar_lea.vmem %s1, 442
  %v2213 = vld [vmem:[%s2212] sm:$0x3]
  %2214 = xla_tuple %v2211, %v2213
  %2215 = xla_tuple %2214
  %v2216 = vsub.f32 %v2211, %v2213
  %2217 = xla_tuple %v2216
  %s2218 = scalar_lea.vmem %s2, 442
  %2219 = vst [vmem:[%s2218] sm:$0x3] %v2216
  %s2220 = scalar_lea.vmem %s0, 474
  %v2221 = vld [vmem:[%s2220] sm:$0x3]
  %s2222 = scalar_lea.vmem %s1, 474
  %v2223 = vld [vmem:[%s2222] sm:$0x3]
  %2224 = xla_tuple %v2221, %v2223
  %2225 = xla_tuple %2224
  %v2226 = vsub.f32 %v2221, %v2223
  %2227 = xla_tuple %v2226
  %s2228 = scalar_lea.vmem %s2, 474
  %2229 = vst [vmem:[%s2228] sm:$0x3] %v2226
  %s2230 = scalar_lea.vmem %s0, 506
  %v2231 = vld [vmem:[%s2230] sm:$0x3]
  %s2232 = scalar_lea.vmem %s1, 506
  %v2233 = vld [vmem:[%s2232] sm:$0x3]
  %2234 = xla_tuple %v2231, %v2233
  %2235 = xla_tuple %2234
  %v2236 = vsub.f32 %v2231, %v2233
  %2237 = xla_tuple %v2236
  %s2238 = scalar_lea.vmem %s2, 506
  %2239 = vst [vmem:[%s2238] sm:$0x3] %v2236
  %s2240 = scalar_lea.vmem %s0, 28
  %v2241 = vld [vmem:[%s2240] sm:$0x3]
  %s2242 = scalar_lea.vmem %s1, 28
  %v2243 = vld [vmem:[%s2242] sm:$0x3]
  %2244 = xla_tuple %v2241, %v2243
  %2245 = xla_tuple %2244
  %v2246 = vsub.f32 %v2241, %v2243
  %2247 = xla_tuple %v2246
  %s2248 = scalar_lea.vmem %s2, 28
  %2249 = vst [vmem:[%s2248] sm:$0x3] %v2246
  %s2250 = scalar_lea.vmem %s0, 60
  %v2251 = vld [vmem:[%s2250] sm:$0x3]
  %s2252 = scalar_lea.vmem %s1, 60
  %v2253 = vld [vmem:[%s2252] sm:$0x3]
  %2254 = xla_tuple %v2251, %v2253
  %2255 = xla_tuple %2254
  %v2256 = vsub.f32 %v2251, %v2253
  %2257 = xla_tuple %v2256
  %s2258 = scalar_lea.vmem %s2, 60
  %2259 = vst [vmem:[%s2258] sm:$0x3] %v2256
  %s2260 = scalar_lea.vmem %s0, 92
  %v2261 = vld [vmem:[%s2260] sm:$0x3]
  %s2262 = scalar_lea.vmem %s1, 92
  %v2263 = vld [vmem:[%s2262] sm:$0x3]
  %2264 = xla_tuple %v2261, %v2263
  %2265 = xla_tuple %2264
  %v2266 = vsub.f32 %v2261, %v2263
  %2267 = xla_tuple %v2266
  %s2268 = scalar_lea.vmem %s2, 92
  %2269 = vst [vmem:[%s2268] sm:$0x3] %v2266
  %s2270 = scalar_lea.vmem %s0, 124
  %v2271 = vld [vmem:[%s2270] sm:$0x3]
  %s2272 = scalar_lea.vmem %s1, 124
  %v2273 = vld [vmem:[%s2272] sm:$0x3]
  %2274 = xla_tuple %v2271, %v2273
  %2275 = xla_tuple %2274
  %v2276 = vsub.f32 %v2271, %v2273
  %2277 = xla_tuple %v2276
  %s2278 = scalar_lea.vmem %s2, 124
  %2279 = vst [vmem:[%s2278] sm:$0x3] %v2276
  %s2280 = scalar_lea.vmem %s0, 156
  %v2281 = vld [vmem:[%s2280] sm:$0x3]
  %s2282 = scalar_lea.vmem %s1, 156
  %v2283 = vld [vmem:[%s2282] sm:$0x3]
  %2284 = xla_tuple %v2281, %v2283
  %2285 = xla_tuple %2284
  %v2286 = vsub.f32 %v2281, %v2283
  %2287 = xla_tuple %v2286
  %s2288 = scalar_lea.vmem %s2, 156
  %2289 = vst [vmem:[%s2288] sm:$0x3] %v2286
  %s2290 = scalar_lea.vmem %s0, 188
  %v2291 = vld [vmem:[%s2290] sm:$0x3]
  %s2292 = scalar_lea.vmem %s1, 188
  %v2293 = vld [vmem:[%s2292] sm:$0x3]
  %2294 = xla_tuple %v2291, %v2293
  %2295 = xla_tuple %2294
  %v2296 = vsub.f32 %v2291, %v2293
  %2297 = xla_tuple %v2296
  %s2298 = scalar_lea.vmem %s2, 188
  %2299 = vst [vmem:[%s2298] sm:$0x3] %v2296
  %s2300 = scalar_lea.vmem %s0, 220
  %v2301 = vld [vmem:[%s2300] sm:$0x3]
  %s2302 = scalar_lea.vmem %s1, 220
  %v2303 = vld [vmem:[%s2302] sm:$0x3]
  %2304 = xla_tuple %v2301, %v2303
  %2305 = xla_tuple %2304
  %v2306 = vsub.f32 %v2301, %v2303
  %2307 = xla_tuple %v2306
  %s2308 = scalar_lea.vmem %s2, 220
  %2309 = vst [vmem:[%s2308] sm:$0x3] %v2306
  %s2310 = scalar_lea.vmem %s0, 252
  %v2311 = vld [vmem:[%s2310] sm:$0x3]
  %s2312 = scalar_lea.vmem %s1, 252
  %v2313 = vld [vmem:[%s2312] sm:$0x3]
  %2314 = xla_tuple %v2311, %v2313
  %2315 = xla_tuple %2314
  %v2316 = vsub.f32 %v2311, %v2313
  %2317 = xla_tuple %v2316
  %s2318 = scalar_lea.vmem %s2, 252
  %2319 = vst [vmem:[%s2318] sm:$0x3] %v2316
  %s2320 = scalar_lea.vmem %s0, 284
  %v2321 = vld [vmem:[%s2320] sm:$0x3]
  %s2322 = scalar_lea.vmem %s1, 284
  %v2323 = vld [vmem:[%s2322] sm:$0x3]
  %2324 = xla_tuple %v2321, %v2323
  %2325 = xla_tuple %2324
  %v2326 = vsub.f32 %v2321, %v2323
  %2327 = xla_tuple %v2326
  %s2328 = scalar_lea.vmem %s2, 284
  %2329 = vst [vmem:[%s2328] sm:$0x3] %v2326
  %s2330 = scalar_lea.vmem %s0, 316
  %v2331 = vld [vmem:[%s2330] sm:$0x3]
  %s2332 = scalar_lea.vmem %s1, 316
  %v2333 = vld [vmem:[%s2332] sm:$0x3]
  %2334 = xla_tuple %v2331, %v2333
  %2335 = xla_tuple %2334
  %v2336 = vsub.f32 %v2331, %v2333
  %2337 = xla_tuple %v2336
  %s2338 = scalar_lea.vmem %s2, 316
  %2339 = vst [vmem:[%s2338] sm:$0x3] %v2336
  %s2340 = scalar_lea.vmem %s0, 348
  %v2341 = vld [vmem:[%s2340] sm:$0x3]
  %s2342 = scalar_lea.vmem %s1, 348
  %v2343 = vld [vmem:[%s2342] sm:$0x3]
  %2344 = xla_tuple %v2341, %v2343
  %2345 = xla_tuple %2344
  %v2346 = vsub.f32 %v2341, %v2343
  %2347 = xla_tuple %v2346
  %s2348 = scalar_lea.vmem %s2, 348
  %2349 = vst [vmem:[%s2348] sm:$0x3] %v2346
  %s2350 = scalar_lea.vmem %s0, 380
  %v2351 = vld [vmem:[%s2350] sm:$0x3]
  %s2352 = scalar_lea.vmem %s1, 380
  %v2353 = vld [vmem:[%s2352] sm:$0x3]
  %2354 = xla_tuple %v2351, %v2353
  %2355 = xla_tuple %2354
  %v2356 = vsub.f32 %v2351, %v2353
  %2357 = xla_tuple %v2356
  %s2358 = scalar_lea.vmem %s2, 380
  %2359 = vst [vmem:[%s2358] sm:$0x3] %v2356
  %s2360 = scalar_lea.vmem %s0, 412
  %v2361 = vld [vmem:[%s2360] sm:$0x3]
  %s2362 = scalar_lea.vmem %s1, 412
  %v2363 = vld [vmem:[%s2362] sm:$0x3]
  %2364 = xla_tuple %v2361, %v2363
  %2365 = xla_tuple %2364
  %v2366 = vsub.f32 %v2361, %v2363
  %2367 = xla_tuple %v2366
  %s2368 = scalar_lea.vmem %s2, 412
  %2369 = vst [vmem:[%s2368] sm:$0x3] %v2366
  %s2370 = scalar_lea.vmem %s0, 444
  %v2371 = vld [vmem:[%s2370] sm:$0x3]
  %s2372 = scalar_lea.vmem %s1, 444
  %v2373 = vld [vmem:[%s2372] sm:$0x3]
  %2374 = xla_tuple %v2371, %v2373
  %2375 = xla_tuple %2374
  %v2376 = vsub.f32 %v2371, %v2373
  %2377 = xla_tuple %v2376
  %s2378 = scalar_lea.vmem %s2, 444
  %2379 = vst [vmem:[%s2378] sm:$0x3] %v2376
  %s2380 = scalar_lea.vmem %s0, 476
  %v2381 = vld [vmem:[%s2380] sm:$0x3]
  %s2382 = scalar_lea.vmem %s1, 476
  %v2383 = vld [vmem:[%s2382] sm:$0x3]
  %2384 = xla_tuple %v2381, %v2383
  %2385 = xla_tuple %2384
  %v2386 = vsub.f32 %v2381, %v2383
  %2387 = xla_tuple %v2386
  %s2388 = scalar_lea.vmem %s2, 476
  %2389 = vst [vmem:[%s2388] sm:$0x3] %v2386
  %s2390 = scalar_lea.vmem %s0, 508
  %v2391 = vld [vmem:[%s2390] sm:$0x3]
  %s2392 = scalar_lea.vmem %s1, 508
  %v2393 = vld [vmem:[%s2392] sm:$0x3]
  %2394 = xla_tuple %v2391, %v2393
  %2395 = xla_tuple %2394
  %v2396 = vsub.f32 %v2391, %v2393
  %2397 = xla_tuple %v2396
  %s2398 = scalar_lea.vmem %s2, 508
  %2399 = vst [vmem:[%s2398] sm:$0x3] %v2396
  %s2400 = scalar_lea.vmem %s0, 30
  %v2401 = vld [vmem:[%s2400] sm:$0x3]
  %s2402 = scalar_lea.vmem %s1, 30
  %v2403 = vld [vmem:[%s2402] sm:$0x3]
  %2404 = xla_tuple %v2401, %v2403
  %2405 = xla_tuple %2404
  %v2406 = vsub.f32 %v2401, %v2403
  %2407 = xla_tuple %v2406
  %s2408 = scalar_lea.vmem %s2, 30
  %2409 = vst [vmem:[%s2408] sm:$0x3] %v2406
  %s2410 = scalar_lea.vmem %s0, 62
  %v2411 = vld [vmem:[%s2410] sm:$0x3]
  %s2412 = scalar_lea.vmem %s1, 62
  %v2413 = vld [vmem:[%s2412] sm:$0x3]
  %2414 = xla_tuple %v2411, %v2413
  %2415 = xla_tuple %2414
  %v2416 = vsub.f32 %v2411, %v2413
  %2417 = xla_tuple %v2416
  %s2418 = scalar_lea.vmem %s2, 62
  %2419 = vst [vmem:[%s2418] sm:$0x3] %v2416
  %s2420 = scalar_lea.vmem %s0, 94
  %v2421 = vld [vmem:[%s2420] sm:$0x3]
  %s2422 = scalar_lea.vmem %s1, 94
  %v2423 = vld [vmem:[%s2422] sm:$0x3]
  %2424 = xla_tuple %v2421, %v2423
  %2425 = xla_tuple %2424
  %v2426 = vsub.f32 %v2421, %v2423
  %2427 = xla_tuple %v2426
  %s2428 = scalar_lea.vmem %s2, 94
  %2429 = vst [vmem:[%s2428] sm:$0x3] %v2426
  %s2430 = scalar_lea.vmem %s0, 126
  %v2431 = vld [vmem:[%s2430] sm:$0x3]
  %s2432 = scalar_lea.vmem %s1, 126
  %v2433 = vld [vmem:[%s2432] sm:$0x3]
  %2434 = xla_tuple %v2431, %v2433
  %2435 = xla_tuple %2434
  %v2436 = vsub.f32 %v2431, %v2433
  %2437 = xla_tuple %v2436
  %s2438 = scalar_lea.vmem %s2, 126
  %2439 = vst [vmem:[%s2438] sm:$0x3] %v2436
  %s2440 = scalar_lea.vmem %s0, 158
  %v2441 = vld [vmem:[%s2440] sm:$0x3]
  %s2442 = scalar_lea.vmem %s1, 158
  %v2443 = vld [vmem:[%s2442] sm:$0x3]
  %2444 = xla_tuple %v2441, %v2443
  %2445 = xla_tuple %2444
  %v2446 = vsub.f32 %v2441, %v2443
  %2447 = xla_tuple %v2446
  %s2448 = scalar_lea.vmem %s2, 158
  %2449 = vst [vmem:[%s2448] sm:$0x3] %v2446
  %s2450 = scalar_lea.vmem %s0, 190
  %v2451 = vld [vmem:[%s2450] sm:$0x3]
  %s2452 = scalar_lea.vmem %s1, 190
  %v2453 = vld [vmem:[%s2452] sm:$0x3]
  %2454 = xla_tuple %v2451, %v2453
  %2455 = xla_tuple %2454
  %v2456 = vsub.f32 %v2451, %v2453
  %2457 = xla_tuple %v2456
  %s2458 = scalar_lea.vmem %s2, 190
  %2459 = vst [vmem:[%s2458] sm:$0x3] %v2456
  %s2460 = scalar_lea.vmem %s0, 222
  %v2461 = vld [vmem:[%s2460] sm:$0x3]
  %s2462 = scalar_lea.vmem %s1, 222
  %v2463 = vld [vmem:[%s2462] sm:$0x3]
  %2464 = xla_tuple %v2461, %v2463
  %2465 = xla_tuple %2464
  %v2466 = vsub.f32 %v2461, %v2463
  %2467 = xla_tuple %v2466
  %s2468 = scalar_lea.vmem %s2, 222
  %2469 = vst [vmem:[%s2468] sm:$0x3] %v2466
  %s2470 = scalar_lea.vmem %s0, 254
  %v2471 = vld [vmem:[%s2470] sm:$0x3]
  %s2472 = scalar_lea.vmem %s1, 254
  %v2473 = vld [vmem:[%s2472] sm:$0x3]
  %2474 = xla_tuple %v2471, %v2473
  %2475 = xla_tuple %2474
  %v2476 = vsub.f32 %v2471, %v2473
  %2477 = xla_tuple %v2476
  %s2478 = scalar_lea.vmem %s2, 254
  %2479 = vst [vmem:[%s2478] sm:$0x3] %v2476
  %s2480 = scalar_lea.vmem %s0, 286
  %v2481 = vld [vmem:[%s2480] sm:$0x3]
  %s2482 = scalar_lea.vmem %s1, 286
  %v2483 = vld [vmem:[%s2482] sm:$0x3]
  %2484 = xla_tuple %v2481, %v2483
  %2485 = xla_tuple %2484
  %v2486 = vsub.f32 %v2481, %v2483
  %2487 = xla_tuple %v2486
  %s2488 = scalar_lea.vmem %s2, 286
  %2489 = vst [vmem:[%s2488] sm:$0x3] %v2486
  %s2490 = scalar_lea.vmem %s0, 318
  %v2491 = vld [vmem:[%s2490] sm:$0x3]
  %s2492 = scalar_lea.vmem %s1, 318
  %v2493 = vld [vmem:[%s2492] sm:$0x3]
  %2494 = xla_tuple %v2491, %v2493
  %2495 = xla_tuple %2494
  %v2496 = vsub.f32 %v2491, %v2493
  %2497 = xla_tuple %v2496
  %s2498 = scalar_lea.vmem %s2, 318
  %2499 = vst [vmem:[%s2498] sm:$0x3] %v2496
  %s2500 = scalar_lea.vmem %s0, 350
  %v2501 = vld [vmem:[%s2500] sm:$0x3]
  %s2502 = scalar_lea.vmem %s1, 350
  %v2503 = vld [vmem:[%s2502] sm:$0x3]
  %2504 = xla_tuple %v2501, %v2503
  %2505 = xla_tuple %2504
  %v2506 = vsub.f32 %v2501, %v2503
  %2507 = xla_tuple %v2506
  %s2508 = scalar_lea.vmem %s2, 350
  %2509 = vst [vmem:[%s2508] sm:$0x3] %v2506
  %s2510 = scalar_lea.vmem %s0, 382
  %v2511 = vld [vmem:[%s2510] sm:$0x3]
  %s2512 = scalar_lea.vmem %s1, 382
  %v2513 = vld [vmem:[%s2512] sm:$0x3]
  %2514 = xla_tuple %v2511, %v2513
  %2515 = xla_tuple %2514
  %v2516 = vsub.f32 %v2511, %v2513
  %2517 = xla_tuple %v2516
  %s2518 = scalar_lea.vmem %s2, 382
  %2519 = vst [vmem:[%s2518] sm:$0x3] %v2516
  %s2520 = scalar_lea.vmem %s0, 414
  %v2521 = vld [vmem:[%s2520] sm:$0x3]
  %s2522 = scalar_lea.vmem %s1, 414
  %v2523 = vld [vmem:[%s2522] sm:$0x3]
  %2524 = xla_tuple %v2521, %v2523
  %2525 = xla_tuple %2524
  %v2526 = vsub.f32 %v2521, %v2523
  %2527 = xla_tuple %v2526
  %s2528 = scalar_lea.vmem %s2, 414
  %2529 = vst [vmem:[%s2528] sm:$0x3] %v2526
  %s2530 = scalar_lea.vmem %s0, 446
  %v2531 = vld [vmem:[%s2530] sm:$0x3]
  %s2532 = scalar_lea.vmem %s1, 446
  %v2533 = vld [vmem:[%s2532] sm:$0x3]
  %2534 = xla_tuple %v2531, %v2533
  %2535 = xla_tuple %2534
  %v2536 = vsub.f32 %v2531, %v2533
  %2537 = xla_tuple %v2536
  %s2538 = scalar_lea.vmem %s2, 446
  %2539 = vst [vmem:[%s2538] sm:$0x3] %v2536
  %s2540 = scalar_lea.vmem %s0, 478
  %v2541 = vld [vmem:[%s2540] sm:$0x3]
  %s2542 = scalar_lea.vmem %s1, 478
  %v2543 = vld [vmem:[%s2542] sm:$0x3]
  %2544 = xla_tuple %v2541, %v2543
  %2545 = xla_tuple %2544
  %v2546 = vsub.f32 %v2541, %v2543
  %2547 = xla_tuple %v2546
  %s2548 = scalar_lea.vmem %s2, 478
  %2549 = vst [vmem:[%s2548] sm:$0x3] %v2546
  %s2550 = scalar_lea.vmem %s0, 510
  %v2551 = vld [vmem:[%s2550] sm:$0x3]
  %s2552 = scalar_lea.vmem %s1, 510
  %v2553 = vld [vmem:[%s2552] sm:$0x3]
  %2554 = xla_tuple %v2551, %v2553
  %2555 = xla_tuple %2554
  %v2556 = vsub.f32 %v2551, %v2553
  %2557 = xla_tuple %v2556
  %s2558 = scalar_lea.vmem %s2, 510
  %2559 = vst [vmem:[%s2558] sm:$0x3] %v2556

</llo_original>
